<compile_context>
chip_gen: v6e
topology: v6e:2x2x1
jax: 0.10.0
libtpu: 0.0.40
codegen_flags: <defaults>
</compile_context>

<pallas_src>
import jax
import jax.numpy as jnp
import numpy as np
from jax.experimental import pallas as pl
from jax.experimental.pallas import tpu as pltpu

# Model dims (match GNSSGenerator defaults).
INPUT_DIM = 6
HIDDEN_DIM = 64
OUTPUT_DIM = 6
HALF_DIM = HIDDEN_DIM // 2   # 32
NGATES = 4

# Example shapes.
BATCH = 2
SEQ = 8


def gnss_generator_kernel(
    x_ref,                          # (B, S, D_in)        f32
    w_ih0_ref, b0_ref,              # (D_in, 4H) bf16, (1, 4H) f32
    w_hh0_ref,                      # (H, 4H)    bf16
    w_ih1_ref, w_hh1_ref, b1_ref,   # (H, 4H) bf16 x2, (1, 4H) f32
    wp1_ref, bp1_ref,               # (H, H/2) bf16, (1, H/2) f32
    wp2_ref, bp2_ref,               # (H/2, D_out) bf16, (1, D_out) f32
    out_ref,                        # (B, S, D_out)       f32
):
    B, S, D_in = x_ref.shape
    H = HIDDEN_DIM
    f32 = jnp.float32
    bf16 = jnp.bfloat16

    # ---- Off-chain prologue: layer-0 input contribution for ALL timesteps in
    # one MXU push (removes 8 wide K-concat matmuls from the serial chain).
    x_flat = x_ref[...].reshape(B * S, D_in).astype(bf16)          # free reshape
    gx0 = (jnp.dot(x_flat, w_ih0_ref[...], preferred_element_type=f32)
           + b0_ref[...]).reshape(B, S, NGATES * H)

    b1 = b1_ref[...]

    def gate_act(gates, c_prev):
        # Gate order (i, f, o, g): one sigmoid over the first 3 blocks, one tanh.
        sig = jax.nn.sigmoid(gates[:, : 3 * H])
        i = sig[:, 0 * H:1 * H]
        f = sig[:, 1 * H:2 * H]
        o = sig[:, 2 * H:3 * H]
        g = jnp.tanh(gates[:, 3 * H:])
        c = f * c_prev + i * g
        h = o * jnp.tanh(c)
        return h, c

    # Recurrent state lives in registers (loop-carried traced values).
    h0 = jnp.zeros((B, H), f32)
    c0 = jnp.zeros((B, H), f32)
    h1 = jnp.zeros((B, H), f32)
    c1 = jnp.zeros((B, H), f32)

    h1_steps = []
    for t in range(S):  # S is static -> fully unrolled recurrence
        # Layer 0: only the recurrent (H x 4H) matmul is on the serial chain.
        # Weight refs are read at the dot sites so they stream from VMEM
        # instead of living in vregs across the whole unroll.
        g0 = gx0[:, t, :] + jnp.dot(h0.astype(bf16), w_hh0_ref[...],
                                    preferred_element_type=f32)
        h0, c0 = gate_act(g0, c0)
        # (Inter-layer dropout is identity in eval mode.)
        # Layer 1: split matmul; the h1_{t-1} term depends only on the
        # previous step so it can overlap with layer 0 of this step.
        g1 = (jnp.dot(h0.astype(bf16), w_ih1_ref[...], preferred_element_type=f32)
              + jnp.dot(h1.astype(bf16), w_hh1_ref[...], preferred_element_type=f32)
              + b1)
        h1, c1 = gate_act(g1, c1)
        h1_steps.append(h1[:, None, :])

    # ---- Off-chain epilogue: batched MLP head over all B*S rows -> two MXU
    # pushes and a single dense output store.
    hs = jnp.concatenate(h1_steps, axis=1).reshape(B * S, H).astype(bf16)
    z = jnp.maximum(
        jnp.dot(hs, wp1_ref[...], preferred_element_type=f32) + bp1_ref[...], 0.0)
    # (Head dropout is identity in eval mode.)
    y = jnp.dot(z.astype(bf16), wp2_ref[...], preferred_element_type=f32) + bp2_ref[...]
    out_ref[...] = y.reshape(B, S, OUTPUT_DIM).astype(out_ref.dtype)


def _reorder_ifgo_to_ifog(w):
    """Reorder gate columns from PyTorch order (i,f,g,o) to kernel order (i,f,o,g)."""
    i, f, g, o = jnp.split(w, NGATES, axis=-1)
    return jnp.concatenate([i, f, o, g], axis=-1)


def pack_params(params):
    """Reorder gates and cast MXU weight operands to bf16 (biases stay f32)."""
    bf = lambda a: a.astype(jnp.bfloat16)
    return (
        bf(_reorder_ifgo_to_ifog(params["w_ih0"])),
        _reorder_ifgo_to_ifog(params["b0"]),
        bf(_reorder_ifgo_to_ifog(params["w_hh0"])),
        bf(_reorder_ifgo_to_ifog(params["w_ih1"])),
        bf(_reorder_ifgo_to_ifog(params["w_hh1"])),
        _reorder_ifgo_to_ifog(params["b1"]),
        bf(params["w_p1"]), params["b_p1"],
        bf(params["w_p2"]), params["b_p2"],
    )


def gnss_generator_forward(x, params, *, num_cores=1):
    """x: (B, S, D_in) float32 -> (B, S, D_out) float32.

    num_cores > 1 (v7x megacore): shard the batch axis across TensorCores via a
    "parallel" grid dimension.  Default (1) keeps the single-block design, which
    is correct and fastest on single-TC chips (v5e/v6e).
    """
    B, S, D_in = x.shape
    inputs = (x,) + pack_params(params)
    out_shape = jax.ShapeDtypeStruct((B, S, OUTPUT_DIM), jnp.float32)

    if num_cores <= 1 or B % num_cores != 0:
        vmem = pl.BlockSpec(memory_space=pltpu.MemorySpace.VMEM)
        return pl.pallas_call(
            gnss_generator_kernel,
            out_shape=out_shape,
            in_specs=[vmem] * len(inputs),
            out_specs=vmem,
        )(*inputs)

    # v7x path: one batch block per TensorCore (independent sequences).
    bb = B // num_cores

    def full_spec(a):
        return pl.BlockSpec(a.shape, lambda i, _nd=a.ndim: (0,) * _nd)

    in_specs = [pl.BlockSpec((bb, S, D_in), lambda i: (i, 0, 0))]
    in_specs += [full_spec(a) for a in inputs[1:]]
    return pl.pallas_call(
        gnss_generator_kernel,
        out_shape=out_shape,
        grid=(num_cores,),
        in_specs=in_specs,
        out_specs=pl.BlockSpec((bb, S, OUTPUT_DIM), lambda i: (i, 0, 0)),
        compiler_params=pltpu.CompilerParams(dimension_semantics=("parallel",)),
    )(*inputs)


def init_params(key):
    """Deterministic parameter init mirroring PyTorch's shapes/distributions.

    LSTM: uniform(-1/sqrt(H), 1/sqrt(H)); Linear: xavier_uniform, zero bias.
    Weights stored pre-transposed so the math is x @ W (gate order i,f,g,o).
    """
    ks = jax.random.split(key, 12)
    k_lstm = 1.0 / np.sqrt(HIDDEN_DIM)
    u = lambda k, shape: jax.random.uniform(
        k, shape, jnp.float32, minval=-k_lstm, maxval=k_lstm)

    def xavier(k, fan_in, fan_out):
        bound = float(np.sqrt(6.0 / (fan_in + fan_out)))
        return jax.random.uniform(
            k, (fan_in, fan_out), jnp.float32, minval=-bound, maxval=bound)

    return {
        # layer 0: (D_in, 4H), (H, 4H); combined bias b_ih + b_hh -> (1, 4H)
        "w_ih0": u(ks[0], (INPUT_DIM, 4 * HIDDEN_DIM)),
        "w_hh0": u(ks[1], (HIDDEN_DIM, 4 * HIDDEN_DIM)),
        "b0": u(ks[2], (1, 4 * HIDDEN_DIM)) + u(ks[3], (1, 4 * HIDDEN_DIM)),
        # layer 1: (H, 4H), (H, 4H)
        "w_ih1": u(ks[4], (HIDDEN_DIM, 4 * HIDDEN_DIM)),
        "w_hh1": u(ks[5], (HIDDEN_DIM, 4 * HIDDEN_DIM)),
        "b1": u(ks[6], (1, 4 * HIDDEN_DIM)) + u(ks[7], (1, 4 * HIDDEN_DIM)),
        # projection head
        "w_p1": xavier(ks[8], HIDDEN_DIM, HALF_DIM),
        "b_p1": jnp.zeros((1, HALF_DIM), jnp.float32),
        "w_p2": xavier(ks[9], HALF_DIM, OUTPUT_DIM),
        "b_p2": jnp.zeros((1, OUTPUT_DIM), jnp.float32),
    }


def _lstm_cell_ref(x, h_prev, c_prev, w_ih, w_hh, b, hidden):
    """PyTorch LSTMCell math with unfused weights (gate order i,f,g,o)."""
    gates = x @ w_ih + h_prev @ w_hh + b
    i = jax.nn.sigmoid(gates[:, 0 * hidden:1 * hidden])
    f = jax.nn.sigmoid(gates[:, 1 * hidden:2 * hidden])
    g = jnp.tanh(gates[:, 2 * hidden:3 * hidden])
    o = jax.nn.sigmoid(gates[:, 3 * hidden:4 * hidden])
    c = f * c_prev + i * g
    h = o * jnp.tanh(c)
    return h, c


def reference_forward(x, params):
    """Pure-JAX reference (same math, unfused/unreordered weights)."""
    def step(carry, x_t):
        h0, c0, h1, c1 = carry
        h0, c0 = _lstm_cell_ref(x_t, h0, c0, params["w_ih0"], params["w_hh0"],
                                params["b0"], HIDDEN_DIM)
        h1, c1 = _lstm_cell_ref(h0, h1, c1, params["w_ih1"], params["w_hh1"],
                                params["b1"], HIDDEN_DIM)
        z = jnp.maximum(h1 @ params["w_p1"] + params["b_p1"], 0.0)
        y = z @ params["w_p2"] + params["b_p2"]
        return (h0, c0, h1, c1), y

    B = x.shape[0]
    zeros = jnp.zeros((B, HIDDEN_DIM), jnp.float32)
    _, ys = jax.lax.scan(step, (zeros, zeros, zeros, zeros),
                         jnp.transpose(x, (1, 0, 2)))
    return jnp.transpose(ys, (1, 0, 2))


if __name__ == "__main__":
    key = jax.random.PRNGKey(0)
    k_param, k_x = jax.random.split(key)
    params = init_params(k_param)
    x = jax.random.normal(k_x, (BATCH, SEQ, INPUT_DIM), jnp.float32)

    out = gnss_generator_forward(x, params)
    out = jax.block_until_ready(out)
    assert out.shape == (BATCH, SEQ, OUTPUT_DIM), out.shape

    # Reference uses the same bf16-rounded weight values the kernel feeds the
    # MXU (biases / elementwise math stay f32 in both), isolating kernel-math
    # correctness from the deliberate bf16 operand quantization.
    params_ref = dict(params)
    for k in ("w_ih0", "w_hh0", "w_ih1", "w_hh1", "w_p1", "w_p2"):
        params_ref[k] = params[k].astype(jnp.bfloat16).astype(jnp.float32)
    ref = jax.block_until_ready(reference_forward(x, params_ref))
    np.testing.assert_allclose(np.asarray(out), np.asarray(ref),
                               rtol=2e-2, atol=2e-2)

    print("KERNEL_OK")
</pallas_src>

<mosaic_0001>
module attributes {stable_mosaic.version = 11 : i64} {
  func.func @gnss_generator_kernel(%arg0: memref<2x8x6xf32, #tpu.memory_space<vmem>>, %arg1: memref<6x256xbf16, #tpu.memory_space<vmem>>, %arg2: memref<1x256xf32, #tpu.memory_space<vmem>>, %arg3: memref<64x256xbf16, #tpu.memory_space<vmem>>, %arg4: memref<64x256xbf16, #tpu.memory_space<vmem>>, %arg5: memref<64x256xbf16, #tpu.memory_space<vmem>>, %arg6: memref<1x256xf32, #tpu.memory_space<vmem>>, %arg7: memref<64x32xbf16, #tpu.memory_space<vmem>>, %arg8: memref<1x32xf32, #tpu.memory_space<vmem>>, %arg9: memref<32x6xbf16, #tpu.memory_space<vmem>>, %arg10: memref<1x6xf32, #tpu.memory_space<vmem>>, %arg11: memref<2x8x6xf32, #tpu.memory_space<vmem>>) attributes {dimension_semantics = [], scalar_prefetch = 0 : i64, scratch_operands = 0 : i64, tpu.core_type = #tpu.core_type<tc>} {
    %c0 = arith.constant 0 : index
    %c0_0 = arith.constant 0 : index
    %c0_1 = arith.constant 0 : index
    %0 = vector.load %arg0[%c0, %c0_0, %c0_1] : memref<2x8x6xf32, #tpu.memory_space<vmem>>, vector<2x8x6xf32>
    %1 = vector.shape_cast %0 : vector<2x8x6xf32> to vector<16x6xf32>
    %2 = arith.truncf %1 : vector<16x6xf32> to vector<16x6xbf16>
    %c0_2 = arith.constant 0 : index
    %c0_3 = arith.constant 0 : index
    %3 = vector.load %arg1[%c0_2, %c0_3] : memref<6x256xbf16, #tpu.memory_space<vmem>>, vector<6x256xbf16>
    %cst = arith.constant dense<0.000000e+00> : vector<16x256xf32>
    %4 = tpu.matmul %2, %3, %cst {dimension_numbers = #tpu.dot_dimension_numbers<[1], [0], [0], [1], [0, 0, 1, 1], [], []>} : vector<16x6xbf16>, vector<6x256xbf16>, vector<16x256xf32> -> vector<16x256xf32>
    %c0_4 = arith.constant 0 : index
    %c0_5 = arith.constant 0 : index
    %5 = vector.load %arg2[%c0_4, %c0_5] : memref<1x256xf32, #tpu.memory_space<vmem>>, vector<1x256xf32>
    %6 = vector.broadcast %5 : vector<1x256xf32> to vector<16x256xf32>
    %7 = arith.addf %4, %6 : vector<16x256xf32>
    %8 = vector.shape_cast %7 : vector<16x256xf32> to vector<2x8x256xf32>
    %c0_6 = arith.constant 0 : index
    %c0_7 = arith.constant 0 : index
    %9 = vector.load %arg6[%c0_6, %c0_7] : memref<1x256xf32, #tpu.memory_space<vmem>>, vector<1x256xf32>
    %cst_8 = arith.constant 0.000000e+00 : f32
    %10 = vector.broadcast %cst_8 : f32 to vector<2x64xf32>
    %cst_9 = arith.constant 0.000000e+00 : f32
    %11 = vector.broadcast %cst_9 : f32 to vector<2x64xf32>
    %cst_10 = arith.constant 0.000000e+00 : f32
    %12 = vector.broadcast %cst_10 : f32 to vector<2x64xf32>
    %cst_11 = arith.constant 0.000000e+00 : f32
    %13 = vector.broadcast %cst_11 : f32 to vector<2x64xf32>
    %14 = vector.extract_strided_slice %8 {offsets = [0, 0, 0], sizes = [2, 1, 256], strides = [1, 1, 1]} : vector<2x8x256xf32> to vector<2x1x256xf32>
    %15 = vector.shape_cast %14 : vector<2x1x256xf32> to vector<2x256xf32>
    %16 = arith.truncf %10 : vector<2x64xf32> to vector<2x64xbf16>
    %c0_12 = arith.constant 0 : index
    %c0_13 = arith.constant 0 : index
    %17 = vector.load %arg3[%c0_12, %c0_13] : memref<64x256xbf16, #tpu.memory_space<vmem>>, vector<64x256xbf16>
    %cst_14 = arith.constant dense<0.000000e+00> : vector<2x256xf32>
    %18 = tpu.matmul %16, %17, %cst_14 {dimension_numbers = #tpu.dot_dimension_numbers<[1], [0], [0], [1], [0, 0, 1, 1], [], []>} : vector<2x64xbf16>, vector<64x256xbf16>, vector<2x256xf32> -> vector<2x256xf32>
    %19 = arith.addf %15, %18 : vector<2x256xf32>
    %20 = vector.extract_strided_slice %19 {offsets = [0, 0], sizes = [2, 192], strides = [1, 1]} : vector<2x256xf32> to vector<2x192xf32>
    %21 = arith.negf %20 : vector<2x192xf32>
    %22 = math.exp %21 : vector<2x192xf32>
    %cst_15 = arith.constant 1.000000e+00 : f32
    %23 = vector.broadcast %cst_15 : f32 to vector<2x192xf32>
    %24 = arith.addf %23, %22 : vector<2x192xf32>
    %25 = arith.divf %23, %24 : vector<2x192xf32>
    %26 = vector.extract_strided_slice %25 {offsets = [0, 0], sizes = [2, 64], strides = [1, 1]} : vector<2x192xf32> to vector<2x64xf32>
    %27 = vector.extract_strided_slice %25 {offsets = [0, 64], sizes = [2, 64], strides = [1, 1]} : vector<2x192xf32> to vector<2x64xf32>
    %28 = vector.extract_strided_slice %25 {offsets = [0, 128], sizes = [2, 64], strides = [1, 1]} : vector<2x192xf32> to vector<2x64xf32>
    %29 = vector.extract_strided_slice %19 {offsets = [0, 192], sizes = [2, 64], strides = [1, 1]} : vector<2x256xf32> to vector<2x64xf32>
    %30 = math.tanh %29 : vector<2x64xf32>
    %31 = arith.mulf %27, %11 : vector<2x64xf32>
    %32 = arith.mulf %26, %30 : vector<2x64xf32>
    %33 = arith.addf %31, %32 : vector<2x64xf32>
    %34 = math.tanh %33 : vector<2x64xf32>
    %35 = arith.mulf %28, %34 : vector<2x64xf32>
    %36 = arith.truncf %35 : vector<2x64xf32> to vector<2x64xbf16>
    %c0_16 = arith.constant 0 : index
    %c0_17 = arith.constant 0 : index
    %37 = vector.load %arg4[%c0_16, %c0_17] : memref<64x256xbf16, #tpu.memory_space<vmem>>, vector<64x256xbf16>
    %cst_18 = arith.constant dense<0.000000e+00> : vector<2x256xf32>
    %38 = tpu.matmul %36, %37, %cst_18 {dimension_numbers = #tpu.dot_dimension_numbers<[1], [0], [0], [1], [0, 0, 1, 1], [], []>} : vector<2x64xbf16>, vector<64x256xbf16>, vector<2x256xf32> -> vector<2x256xf32>
    %39 = arith.truncf %12 : vector<2x64xf32> to vector<2x64xbf16>
    %c0_19 = arith.constant 0 : index
    %c0_20 = arith.constant 0 : index
    %40 = vector.load %arg5[%c0_19, %c0_20] : memref<64x256xbf16, #tpu.memory_space<vmem>>, vector<64x256xbf16>
    %cst_21 = arith.constant dense<0.000000e+00> : vector<2x256xf32>
    %41 = tpu.matmul %39, %40, %cst_21 {dimension_numbers = #tpu.dot_dimension_numbers<[1], [0], [0], [1], [0, 0, 1, 1], [], []>} : vector<2x64xbf16>, vector<64x256xbf16>, vector<2x256xf32> -> vector<2x256xf32>
    %42 = arith.addf %38, %41 : vector<2x256xf32>
    %43 = vector.broadcast %9 : vector<1x256xf32> to vector<2x256xf32>
    %44 = arith.addf %42, %43 : vector<2x256xf32>
    %45 = vector.extract_strided_slice %44 {offsets = [0, 0], sizes = [2, 192], strides = [1, 1]} : vector<2x256xf32> to vector<2x192xf32>
    %46 = arith.negf %45 : vector<2x192xf32>
    %47 = math.exp %46 : vector<2x192xf32>
    %cst_22 = arith.constant 1.000000e+00 : f32
    %48 = vector.broadcast %cst_22 : f32 to vector<2x192xf32>
    %49 = arith.addf %48, %47 : vector<2x192xf32>
    %50 = arith.divf %48, %49 : vector<2x192xf32>
    %51 = vector.extract_strided_slice %50 {offsets = [0, 0], sizes = [2, 64], strides = [1, 1]} : vector<2x192xf32> to vector<2x64xf32>
    %52 = vector.extract_strided_slice %50 {offsets = [0, 64], sizes = [2, 64], strides = [1, 1]} : vector<2x192xf32> to vector<2x64xf32>
    %53 = vector.extract_strided_slice %50 {offsets = [0, 128], sizes = [2, 64], strides = [1, 1]} : vector<2x192xf32> to vector<2x64xf32>
    %54 = vector.extract_strided_slice %44 {offsets = [0, 192], sizes = [2, 64], strides = [1, 1]} : vector<2x256xf32> to vector<2x64xf32>
    %55 = math.tanh %54 : vector<2x64xf32>
    %56 = arith.mulf %52, %13 : vector<2x64xf32>
    %57 = arith.mulf %51, %55 : vector<2x64xf32>
    %58 = arith.addf %56, %57 : vector<2x64xf32>
    %59 = math.tanh %58 : vector<2x64xf32>
    %60 = arith.mulf %53, %59 : vector<2x64xf32>
    %61 = vector.shape_cast %60 : vector<2x64xf32> to vector<2x1x64xf32>
    %62 = vector.extract_strided_slice %8 {offsets = [0, 1, 0], sizes = [2, 1, 256], strides = [1, 1, 1]} : vector<2x8x256xf32> to vector<2x1x256xf32>
    %63 = vector.shape_cast %62 : vector<2x1x256xf32> to vector<2x256xf32>
    %64 = arith.truncf %35 : vector<2x64xf32> to vector<2x64xbf16>
    %c0_23 = arith.constant 0 : index
    %c0_24 = arith.constant 0 : index
    %65 = vector.load %arg3[%c0_23, %c0_24] : memref<64x256xbf16, #tpu.memory_space<vmem>>, vector<64x256xbf16>
    %cst_25 = arith.constant dense<0.000000e+00> : vector<2x256xf32>
    %66 = tpu.matmul %64, %65, %cst_25 {dimension_numbers = #tpu.dot_dimension_numbers<[1], [0], [0], [1], [0, 0, 1, 1], [], []>} : vector<2x64xbf16>, vector<64x256xbf16>, vector<2x256xf32> -> vector<2x256xf32>
    %67 = arith.addf %63, %66 : vector<2x256xf32>
    %68 = vector.extract_strided_slice %67 {offsets = [0, 0], sizes = [2, 192], strides = [1, 1]} : vector<2x256xf32> to vector<2x192xf32>
    %69 = arith.negf %68 : vector<2x192xf32>
    %70 = math.exp %69 : vector<2x192xf32>
    %cst_26 = arith.constant 1.000000e+00 : f32
    %71 = vector.broadcast %cst_26 : f32 to vector<2x192xf32>
    %72 = arith.addf %71, %70 : vector<2x192xf32>
    %73 = arith.divf %71, %72 : vector<2x192xf32>
    %74 = vector.extract_strided_slice %73 {offsets = [0, 0], sizes = [2, 64], strides = [1, 1]} : vector<2x192xf32> to vector<2x64xf32>
    %75 = vector.extract_strided_slice %73 {offsets = [0, 64], sizes = [2, 64], strides = [1, 1]} : vector<2x192xf32> to vector<2x64xf32>
    %76 = vector.extract_strided_slice %73 {offsets = [0, 128], sizes = [2, 64], strides = [1, 1]} : vector<2x192xf32> to vector<2x64xf32>
    %77 = vector.extract_strided_slice %67 {offsets = [0, 192], sizes = [2, 64], strides = [1, 1]} : vector<2x256xf32> to vector<2x64xf32>
    %78 = math.tanh %77 : vector<2x64xf32>
    %79 = arith.mulf %75, %33 : vector<2x64xf32>
    %80 = arith.mulf %74, %78 : vector<2x64xf32>
    %81 = arith.addf %79, %80 : vector<2x64xf32>
    %82 = math.tanh %81 : vector<2x64xf32>
    %83 = arith.mulf %76, %82 : vector<2x64xf32>
    %84 = arith.truncf %83 : vector<2x64xf32> to vector<2x64xbf16>
    %c0_27 = arith.constant 0 : index
    %c0_28 = arith.constant 0 : index
    %85 = vector.load %arg4[%c0_27, %c0_28] : memref<64x256xbf16, #tpu.memory_space<vmem>>, vector<64x256xbf16>
    %cst_29 = arith.constant dense<0.000000e+00> : vector<2x256xf32>
    %86 = tpu.matmul %84, %85, %cst_29 {dimension_numbers = #tpu.dot_dimension_numbers<[1], [0], [0], [1], [0, 0, 1, 1], [], []>} : vector<2x64xbf16>, vector<64x256xbf16>, vector<2x256xf32> -> vector<2x256xf32>
    %87 = arith.truncf %60 : vector<2x64xf32> to vector<2x64xbf16>
    %c0_30 = arith.constant 0 : index
    %c0_31 = arith.constant 0 : index
    %88 = vector.load %arg5[%c0_30, %c0_31] : memref<64x256xbf16, #tpu.memory_space<vmem>>, vector<64x256xbf16>
    %cst_32 = arith.constant dense<0.000000e+00> : vector<2x256xf32>
    %89 = tpu.matmul %87, %88, %cst_32 {dimension_numbers = #tpu.dot_dimension_numbers<[1], [0], [0], [1], [0, 0, 1, 1], [], []>} : vector<2x64xbf16>, vector<64x256xbf16>, vector<2x256xf32> -> vector<2x256xf32>
    %90 = arith.addf %86, %89 : vector<2x256xf32>
    %91 = vector.broadcast %9 : vector<1x256xf32> to vector<2x256xf32>
    %92 = arith.addf %90, %91 : vector<2x256xf32>
    %93 = vector.extract_strided_slice %92 {offsets = [0, 0], sizes = [2, 192], strides = [1, 1]} : vector<2x256xf32> to vector<2x192xf32>
    %94 = arith.negf %93 : vector<2x192xf32>
    %95 = math.exp %94 : vector<2x192xf32>
    %cst_33 = arith.constant 1.000000e+00 : f32
    %96 = vector.broadcast %cst_33 : f32 to vector<2x192xf32>
    %97 = arith.addf %96, %95 : vector<2x192xf32>
    %98 = arith.divf %96, %97 : vector<2x192xf32>
    %99 = vector.extract_strided_slice %98 {offsets = [0, 0], sizes = [2, 64], strides = [1, 1]} : vector<2x192xf32> to vector<2x64xf32>
    %100 = vector.extract_strided_slice %98 {offsets = [0, 64], sizes = [2, 64], strides = [1, 1]} : vector<2x192xf32> to vector<2x64xf32>
    %101 = vector.extract_strided_slice %98 {offsets = [0, 128], sizes = [2, 64], strides = [1, 1]} : vector<2x192xf32> to vector<2x64xf32>
    %102 = vector.extract_strided_slice %92 {offsets = [0, 192], sizes = [2, 64], strides = [1, 1]} : vector<2x256xf32> to vector<2x64xf32>
    %103 = math.tanh %102 : vector<2x64xf32>
    %104 = arith.mulf %100, %58 : vector<2x64xf32>
    %105 = arith.mulf %99, %103 : vector<2x64xf32>
    %106 = arith.addf %104, %105 : vector<2x64xf32>
    %107 = math.tanh %106 : vector<2x64xf32>
    %108 = arith.mulf %101, %107 : vector<2x64xf32>
    %109 = vector.shape_cast %108 : vector<2x64xf32> to vector<2x1x64xf32>
    %110 = vector.extract_strided_slice %8 {offsets = [0, 2, 0], sizes = [2, 1, 256], strides = [1, 1, 1]} : vector<2x8x256xf32> to vector<2x1x256xf32>
    %111 = vector.shape_cast %110 : vector<2x1x256xf32> to vector<2x256xf32>
    %112 = arith.truncf %83 : vector<2x64xf32> to vector<2x64xbf16>
    %c0_34 = arith.constant 0 : index
    %c0_35 = arith.constant 0 : index
    %113 = vector.load %arg3[%c0_34, %c0_35] : memref<64x256xbf16, #tpu.memory_space<vmem>>, vector<64x256xbf16>
    %cst_36 = arith.constant dense<0.000000e+00> : vector<2x256xf32>
    %114 = tpu.matmul %112, %113, %cst_36 {dimension_numbers = #tpu.dot_dimension_numbers<[1], [0], [0], [1], [0, 0, 1, 1], [], []>} : vector<2x64xbf16>, vector<64x256xbf16>, vector<2x256xf32> -> vector<2x256xf32>
    %115 = arith.addf %111, %114 : vector<2x256xf32>
    %116 = vector.extract_strided_slice %115 {offsets = [0, 0], sizes = [2, 192], strides = [1, 1]} : vector<2x256xf32> to vector<2x192xf32>
    %117 = arith.negf %116 : vector<2x192xf32>
    %118 = math.exp %117 : vector<2x192xf32>
    %cst_37 = arith.constant 1.000000e+00 : f32
    %119 = vector.broadcast %cst_37 : f32 to vector<2x192xf32>
    %120 = arith.addf %119, %118 : vector<2x192xf32>
    %121 = arith.divf %119, %120 : vector<2x192xf32>
    %122 = vector.extract_strided_slice %121 {offsets = [0, 0], sizes = [2, 64], strides = [1, 1]} : vector<2x192xf32> to vector<2x64xf32>
    %123 = vector.extract_strided_slice %121 {offsets = [0, 64], sizes = [2, 64], strides = [1, 1]} : vector<2x192xf32> to vector<2x64xf32>
    %124 = vector.extract_strided_slice %121 {offsets = [0, 128], sizes = [2, 64], strides = [1, 1]} : vector<2x192xf32> to vector<2x64xf32>
    %125 = vector.extract_strided_slice %115 {offsets = [0, 192], sizes = [2, 64], strides = [1, 1]} : vector<2x256xf32> to vector<2x64xf32>
    %126 = math.tanh %125 : vector<2x64xf32>
    %127 = arith.mulf %123, %81 : vector<2x64xf32>
    %128 = arith.mulf %122, %126 : vector<2x64xf32>
    %129 = arith.addf %127, %128 : vector<2x64xf32>
    %130 = math.tanh %129 : vector<2x64xf32>
    %131 = arith.mulf %124, %130 : vector<2x64xf32>
    %132 = arith.truncf %131 : vector<2x64xf32> to vector<2x64xbf16>
    %c0_38 = arith.constant 0 : index
    %c0_39 = arith.constant 0 : index
    %133 = vector.load %arg4[%c0_38, %c0_39] : memref<64x256xbf16, #tpu.memory_space<vmem>>, vector<64x256xbf16>
    %cst_40 = arith.constant dense<0.000000e+00> : vector<2x256xf32>
    %134 = tpu.matmul %132, %133, %cst_40 {dimension_numbers = #tpu.dot_dimension_numbers<[1], [0], [0], [1], [0, 0, 1, 1], [], []>} : vector<2x64xbf16>, vector<64x256xbf16>, vector<2x256xf32> -> vector<2x256xf32>
    %135 = arith.truncf %108 : vector<2x64xf32> to vector<2x64xbf16>
    %c0_41 = arith.constant 0 : index
    %c0_42 = arith.constant 0 : index
    %136 = vector.load %arg5[%c0_41, %c0_42] : memref<64x256xbf16, #tpu.memory_space<vmem>>, vector<64x256xbf16>
    %cst_43 = arith.constant dense<0.000000e+00> : vector<2x256xf32>
    %137 = tpu.matmul %135, %136, %cst_43 {dimension_numbers = #tpu.dot_dimension_numbers<[1], [0], [0], [1], [0, 0, 1, 1], [], []>} : vector<2x64xbf16>, vector<64x256xbf16>, vector<2x256xf32> -> vector<2x256xf32>
    %138 = arith.addf %134, %137 : vector<2x256xf32>
    %139 = vector.broadcast %9 : vector<1x256xf32> to vector<2x256xf32>
    %140 = arith.addf %138, %139 : vector<2x256xf32>
    %141 = vector.extract_strided_slice %140 {offsets = [0, 0], sizes = [2, 192], strides = [1, 1]} : vector<2x256xf32> to vector<2x192xf32>
    %142 = arith.negf %141 : vector<2x192xf32>
    %143 = math.exp %142 : vector<2x192xf32>
    %cst_44 = arith.constant 1.000000e+00 : f32
    %144 = vector.broadcast %cst_44 : f32 to vector<2x192xf32>
    %145 = arith.addf %144, %143 : vector<2x192xf32>
    %146 = arith.divf %144, %145 : vector<2x192xf32>
    %147 = vector.extract_strided_slice %146 {offsets = [0, 0], sizes = [2, 64], strides = [1, 1]} : vector<2x192xf32> to vector<2x64xf32>
    %148 = vector.extract_strided_slice %146 {offsets = [0, 64], sizes = [2, 64], strides = [1, 1]} : vector<2x192xf32> to vector<2x64xf32>
    %149 = vector.extract_strided_slice %146 {offsets = [0, 128], sizes = [2, 64], strides = [1, 1]} : vector<2x192xf32> to vector<2x64xf32>
    %150 = vector.extract_strided_slice %140 {offsets = [0, 192], sizes = [2, 64], strides = [1, 1]} : vector<2x256xf32> to vector<2x64xf32>
    %151 = math.tanh %150 : vector<2x64xf32>
    %152 = arith.mulf %148, %106 : vector<2x64xf32>
    %153 = arith.mulf %147, %151 : vector<2x64xf32>
    %154 = arith.addf %152, %153 : vector<2x64xf32>
    %155 = math.tanh %154 : vector<2x64xf32>
    %156 = arith.mulf %149, %155 : vector<2x64xf32>
    %157 = vector.shape_cast %156 : vector<2x64xf32> to vector<2x1x64xf32>
    %158 = vector.extract_strided_slice %8 {offsets = [0, 3, 0], sizes = [2, 1, 256], strides = [1, 1, 1]} : vector<2x8x256xf32> to vector<2x1x256xf32>
    %159 = vector.shape_cast %158 : vector<2x1x256xf32> to vector<2x256xf32>
    %160 = arith.truncf %131 : vector<2x64xf32> to vector<2x64xbf16>
    %c0_45 = arith.constant 0 : index
    %c0_46 = arith.constant 0 : index
    %161 = vector.load %arg3[%c0_45, %c0_46] : memref<64x256xbf16, #tpu.memory_space<vmem>>, vector<64x256xbf16>
    %cst_47 = arith.constant dense<0.000000e+00> : vector<2x256xf32>
    %162 = tpu.matmul %160, %161, %cst_47 {dimension_numbers = #tpu.dot_dimension_numbers<[1], [0], [0], [1], [0, 0, 1, 1], [], []>} : vector<2x64xbf16>, vector<64x256xbf16>, vector<2x256xf32> -> vector<2x256xf32>
    %163 = arith.addf %159, %162 : vector<2x256xf32>
    %164 = vector.extract_strided_slice %163 {offsets = [0, 0], sizes = [2, 192], strides = [1, 1]} : vector<2x256xf32> to vector<2x192xf32>
    %165 = arith.negf %164 : vector<2x192xf32>
    %166 = math.exp %165 : vector<2x192xf32>
    %cst_48 = arith.constant 1.000000e+00 : f32
    %167 = vector.broadcast %cst_48 : f32 to vector<2x192xf32>
    %168 = arith.addf %167, %166 : vector<2x192xf32>
    %169 = arith.divf %167, %168 : vector<2x192xf32>
    %170 = vector.extract_strided_slice %169 {offsets = [0, 0], sizes = [2, 64], strides = [1, 1]} : vector<2x192xf32> to vector<2x64xf32>
    %171 = vector.extract_strided_slice %169 {offsets = [0, 64], sizes = [2, 64], strides = [1, 1]} : vector<2x192xf32> to vector<2x64xf32>
    %172 = vector.extract_strided_slice %169 {offsets = [0, 128], sizes = [2, 64], strides = [1, 1]} : vector<2x192xf32> to vector<2x64xf32>
    %173 = vector.extract_strided_slice %163 {offsets = [0, 192], sizes = [2, 64], strides = [1, 1]} : vector<2x256xf32> to vector<2x64xf32>
    %174 = math.tanh %173 : vector<2x64xf32>
    %175 = arith.mulf %171, %129 : vector<2x64xf32>
    %176 = arith.mulf %170, %174 : vector<2x64xf32>
    %177 = arith.addf %175, %176 : vector<2x64xf32>
    %178 = math.tanh %177 : vector<2x64xf32>
    %179 = arith.mulf %172, %178 : vector<2x64xf32>
    %180 = arith.truncf %179 : vector<2x64xf32> to vector<2x64xbf16>
    %c0_49 = arith.constant 0 : index
    %c0_50 = arith.constant 0 : index
    %181 = vector.load %arg4[%c0_49, %c0_50] : memref<64x256xbf16, #tpu.memory_space<vmem>>, vector<64x256xbf16>
    %cst_51 = arith.constant dense<0.000000e+00> : vector<2x256xf32>
    %182 = tpu.matmul %180, %181, %cst_51 {dimension_numbers = #tpu.dot_dimension_numbers<[1], [0], [0], [1], [0, 0, 1, 1], [], []>} : vector<2x64xbf16>, vector<64x256xbf16>, vector<2x256xf32> -> vector<2x256xf32>
    %183 = arith.truncf %156 : vector<2x64xf32> to vector<2x64xbf16>
    %c0_52 = arith.constant 0 : index
    %c0_53 = arith.constant 0 : index
    %184 = vector.load %arg5[%c0_52, %c0_53] : memref<64x256xbf16, #tpu.memory_space<vmem>>, vector<64x256xbf16>
    %cst_54 = arith.constant dense<0.000000e+00> : vector<2x256xf32>
    %185 = tpu.matmul %183, %184, %cst_54 {dimension_numbers = #tpu.dot_dimension_numbers<[1], [0], [0], [1], [0, 0, 1, 1], [], []>} : vector<2x64xbf16>, vector<64x256xbf16>, vector<2x256xf32> -> vector<2x256xf32>
    %186 = arith.addf %182, %185 : vector<2x256xf32>
    %187 = vector.broadcast %9 : vector<1x256xf32> to vector<2x256xf32>
    %188 = arith.addf %186, %187 : vector<2x256xf32>
    %189 = vector.extract_strided_slice %188 {offsets = [0, 0], sizes = [2, 192], strides = [1, 1]} : vector<2x256xf32> to vector<2x192xf32>
    %190 = arith.negf %189 : vector<2x192xf32>
    %191 = math.exp %190 : vector<2x192xf32>
    %cst_55 = arith.constant 1.000000e+00 : f32
    %192 = vector.broadcast %cst_55 : f32 to vector<2x192xf32>
    %193 = arith.addf %192, %191 : vector<2x192xf32>
    %194 = arith.divf %192, %193 : vector<2x192xf32>
    %195 = vector.extract_strided_slice %194 {offsets = [0, 0], sizes = [2, 64], strides = [1, 1]} : vector<2x192xf32> to vector<2x64xf32>
    %196 = vector.extract_strided_slice %194 {offsets = [0, 64], sizes = [2, 64], strides = [1, 1]} : vector<2x192xf32> to vector<2x64xf32>
    %197 = vector.extract_strided_slice %194 {offsets = [0, 128], sizes = [2, 64], strides = [1, 1]} : vector<2x192xf32> to vector<2x64xf32>
    %198 = vector.extract_strided_slice %188 {offsets = [0, 192], sizes = [2, 64], strides = [1, 1]} : vector<2x256xf32> to vector<2x64xf32>
    %199 = math.tanh %198 : vector<2x64xf32>
    %200 = arith.mulf %196, %154 : vector<2x64xf32>
    %201 = arith.mulf %195, %199 : vector<2x64xf32>
    %202 = arith.addf %200, %201 : vector<2x64xf32>
    %203 = math.tanh %202 : vector<2x64xf32>
    %204 = arith.mulf %197, %203 : vector<2x64xf32>
    %205 = vector.shape_cast %204 : vector<2x64xf32> to vector<2x1x64xf32>
    %206 = vector.extract_strided_slice %8 {offsets = [0, 4, 0], sizes = [2, 1, 256], strides = [1, 1, 1]} : vector<2x8x256xf32> to vector<2x1x256xf32>
    %207 = vector.shape_cast %206 : vector<2x1x256xf32> to vector<2x256xf32>
    %208 = arith.truncf %179 : vector<2x64xf32> to vector<2x64xbf16>
    %c0_56 = arith.constant 0 : index
    %c0_57 = arith.constant 0 : index
    %209 = vector.load %arg3[%c0_56, %c0_57] : memref<64x256xbf16, #tpu.memory_space<vmem>>, vector<64x256xbf16>
    %cst_58 = arith.constant dense<0.000000e+00> : vector<2x256xf32>
    %210 = tpu.matmul %208, %209, %cst_58 {dimension_numbers = #tpu.dot_dimension_numbers<[1], [0], [0], [1], [0, 0, 1, 1], [], []>} : vector<2x64xbf16>, vector<64x256xbf16>, vector<2x256xf32> -> vector<2x256xf32>
    %211 = arith.addf %207, %210 : vector<2x256xf32>
    %212 = vector.extract_strided_slice %211 {offsets = [0, 0], sizes = [2, 192], strides = [1, 1]} : vector<2x256xf32> to vector<2x192xf32>
    %213 = arith.negf %212 : vector<2x192xf32>
    %214 = math.exp %213 : vector<2x192xf32>
    %cst_59 = arith.constant 1.000000e+00 : f32
    %215 = vector.broadcast %cst_59 : f32 to vector<2x192xf32>
    %216 = arith.addf %215, %214 : vector<2x192xf32>
    %217 = arith.divf %215, %216 : vector<2x192xf32>
    %218 = vector.extract_strided_slice %217 {offsets = [0, 0], sizes = [2, 64], strides = [1, 1]} : vector<2x192xf32> to vector<2x64xf32>
    %219 = vector.extract_strided_slice %217 {offsets = [0, 64], sizes = [2, 64], strides = [1, 1]} : vector<2x192xf32> to vector<2x64xf32>
    %220 = vector.extract_strided_slice %217 {offsets = [0, 128], sizes = [2, 64], strides = [1, 1]} : vector<2x192xf32> to vector<2x64xf32>
    %221 = vector.extract_strided_slice %211 {offsets = [0, 192], sizes = [2, 64], strides = [1, 1]} : vector<2x256xf32> to vector<2x64xf32>
    %222 = math.tanh %221 : vector<2x64xf32>
    %223 = arith.mulf %219, %177 : vector<2x64xf32>
    %224 = arith.mulf %218, %222 : vector<2x64xf32>
    %225 = arith.addf %223, %224 : vector<2x64xf32>
    %226 = math.tanh %225 : vector<2x64xf32>
    %227 = arith.mulf %220, %226 : vector<2x64xf32>
    %228 = arith.truncf %227 : vector<2x64xf32> to vector<2x64xbf16>
    %c0_60 = arith.constant 0 : index
    %c0_61 = arith.constant 0 : index
    %229 = vector.load %arg4[%c0_60, %c0_61] : memref<64x256xbf16, #tpu.memory_space<vmem>>, vector<64x256xbf16>
    %cst_62 = arith.constant dense<0.000000e+00> : vector<2x256xf32>
    %230 = tpu.matmul %228, %229, %cst_62 {dimension_numbers = #tpu.dot_dimension_numbers<[1], [0], [0], [1], [0, 0, 1, 1], [], []>} : vector<2x64xbf16>, vector<64x256xbf16>, vector<2x256xf32> -> vector<2x256xf32>
    %231 = arith.truncf %204 : vector<2x64xf32> to vector<2x64xbf16>
    %c0_63 = arith.constant 0 : index
    %c0_64 = arith.constant 0 : index
    %232 = vector.load %arg5[%c0_63, %c0_64] : memref<64x256xbf16, #tpu.memory_space<vmem>>, vector<64x256xbf16>
    %cst_65 = arith.constant dense<0.000000e+00> : vector<2x256xf32>
    %233 = tpu.matmul %231, %232, %cst_65 {dimension_numbers = #tpu.dot_dimension_numbers<[1], [0], [0], [1], [0, 0, 1, 1], [], []>} : vector<2x64xbf16>, vector<64x256xbf16>, vector<2x256xf32> -> vector<2x256xf32>
    %234 = arith.addf %230, %233 : vector<2x256xf32>
    %235 = vector.broadcast %9 : vector<1x256xf32> to vector<2x256xf32>
    %236 = arith.addf %234, %235 : vector<2x256xf32>
    %237 = vector.extract_strided_slice %236 {offsets = [0, 0], sizes = [2, 192], strides = [1, 1]} : vector<2x256xf32> to vector<2x192xf32>
    %238 = arith.negf %237 : vector<2x192xf32>
    %239 = math.exp %238 : vector<2x192xf32>
    %cst_66 = arith.constant 1.000000e+00 : f32
    %240 = vector.broadcast %cst_66 : f32 to vector<2x192xf32>
    %241 = arith.addf %240, %239 : vector<2x192xf32>
    %242 = arith.divf %240, %241 : vector<2x192xf32>
    %243 = vector.extract_strided_slice %242 {offsets = [0, 0], sizes = [2, 64], strides = [1, 1]} : vector<2x192xf32> to vector<2x64xf32>
    %244 = vector.extract_strided_slice %242 {offsets = [0, 64], sizes = [2, 64], strides = [1, 1]} : vector<2x192xf32> to vector<2x64xf32>
    %245 = vector.extract_strided_slice %242 {offsets = [0, 128], sizes = [2, 64], strides = [1, 1]} : vector<2x192xf32> to vector<2x64xf32>
    %246 = vector.extract_strided_slice %236 {offsets = [0, 192], sizes = [2, 64], strides = [1, 1]} : vector<2x256xf32> to vector<2x64xf32>
    %247 = math.tanh %246 : vector<2x64xf32>
    %248 = arith.mulf %244, %202 : vector<2x64xf32>
    %249 = arith.mulf %243, %247 : vector<2x64xf32>
    %250 = arith.addf %248, %249 : vector<2x64xf32>
    %251 = math.tanh %250 : vector<2x64xf32>
    %252 = arith.mulf %245, %251 : vector<2x64xf32>
    %253 = vector.shape_cast %252 : vector<2x64xf32> to vector<2x1x64xf32>
    %254 = vector.extract_strided_slice %8 {offsets = [0, 5, 0], sizes = [2, 1, 256], strides = [1, 1, 1]} : vector<2x8x256xf32> to vector<2x1x256xf32>
    %255 = vector.shape_cast %254 : vector<2x1x256xf32> to vector<2x256xf32>
    %256 = arith.truncf %227 : vector<2x64xf32> to vector<2x64xbf16>
    %c0_67 = arith.constant 0 : index
    %c0_68 = arith.constant 0 : index
    %257 = vector.load %arg3[%c0_67, %c0_68] : memref<64x256xbf16, #tpu.memory_space<vmem>>, vector<64x256xbf16>
    %cst_69 = arith.constant dense<0.000000e+00> : vector<2x256xf32>
    %258 = tpu.matmul %256, %257, %cst_69 {dimension_numbers = #tpu.dot_dimension_numbers<[1], [0], [0], [1], [0, 0, 1, 1], [], []>} : vector<2x64xbf16>, vector<64x256xbf16>, vector<2x256xf32> -> vector<2x256xf32>
    %259 = arith.addf %255, %258 : vector<2x256xf32>
    %260 = vector.extract_strided_slice %259 {offsets = [0, 0], sizes = [2, 192], strides = [1, 1]} : vector<2x256xf32> to vector<2x192xf32>
    %261 = arith.negf %260 : vector<2x192xf32>
    %262 = math.exp %261 : vector<2x192xf32>
    %cst_70 = arith.constant 1.000000e+00 : f32
    %263 = vector.broadcast %cst_70 : f32 to vector<2x192xf32>
    %264 = arith.addf %263, %262 : vector<2x192xf32>
    %265 = arith.divf %263, %264 : vector<2x192xf32>
    %266 = vector.extract_strided_slice %265 {offsets = [0, 0], sizes = [2, 64], strides = [1, 1]} : vector<2x192xf32> to vector<2x64xf32>
    %267 = vector.extract_strided_slice %265 {offsets = [0, 64], sizes = [2, 64], strides = [1, 1]} : vector<2x192xf32> to vector<2x64xf32>
    %268 = vector.extract_strided_slice %265 {offsets = [0, 128], sizes = [2, 64], strides = [1, 1]} : vector<2x192xf32> to vector<2x64xf32>
    %269 = vector.extract_strided_slice %259 {offsets = [0, 192], sizes = [2, 64], strides = [1, 1]} : vector<2x256xf32> to vector<2x64xf32>
    %270 = math.tanh %269 : vector<2x64xf32>
    %271 = arith.mulf %267, %225 : vector<2x64xf32>
    %272 = arith.mulf %266, %270 : vector<2x64xf32>
    %273 = arith.addf %271, %272 : vector<2x64xf32>
    %274 = math.tanh %273 : vector<2x64xf32>
    %275 = arith.mulf %268, %274 : vector<2x64xf32>
    %276 = arith.truncf %275 : vector<2x64xf32> to vector<2x64xbf16>
    %c0_71 = arith.constant 0 : index
    %c0_72 = arith.constant 0 : index
    %277 = vector.load %arg4[%c0_71, %c0_72] : memref<64x256xbf16, #tpu.memory_space<vmem>>, vector<64x256xbf16>
    %cst_73 = arith.constant dense<0.000000e+00> : vector<2x256xf32>
    %278 = tpu.matmul %276, %277, %cst_73 {dimension_numbers = #tpu.dot_dimension_numbers<[1], [0], [0], [1], [0, 0, 1, 1], [], []>} : vector<2x64xbf16>, vector<64x256xbf16>, vector<2x256xf32> -> vector<2x256xf32>
    %279 = arith.truncf %252 : vector<2x64xf32> to vector<2x64xbf16>
    %c0_74 = arith.constant 0 : index
    %c0_75 = arith.constant 0 : index
    %280 = vector.load %arg5[%c0_74, %c0_75] : memref<64x256xbf16, #tpu.memory_space<vmem>>, vector<64x256xbf16>
    %cst_76 = arith.constant dense<0.000000e+00> : vector<2x256xf32>
    %281 = tpu.matmul %279, %280, %cst_76 {dimension_numbers = #tpu.dot_dimension_numbers<[1], [0], [0], [1], [0, 0, 1, 1], [], []>} : vector<2x64xbf16>, vector<64x256xbf16>, vector<2x256xf32> -> vector<2x256xf32>
    %282 = arith.addf %278, %281 : vector<2x256xf32>
    %283 = vector.broadcast %9 : vector<1x256xf32> to vector<2x256xf32>
    %284 = arith.addf %282, %283 : vector<2x256xf32>
    %285 = vector.extract_strided_slice %284 {offsets = [0, 0], sizes = [2, 192], strides = [1, 1]} : vector<2x256xf32> to vector<2x192xf32>
    %286 = arith.negf %285 : vector<2x192xf32>
    %287 = math.exp %286 : vector<2x192xf32>
    %cst_77 = arith.constant 1.000000e+00 : f32
    %288 = vector.broadcast %cst_77 : f32 to vector<2x192xf32>
    %289 = arith.addf %288, %287 : vector<2x192xf32>
    %290 = arith.divf %288, %289 : vector<2x192xf32>
    %291 = vector.extract_strided_slice %290 {offsets = [0, 0], sizes = [2, 64], strides = [1, 1]} : vector<2x192xf32> to vector<2x64xf32>
    %292 = vector.extract_strided_slice %290 {offsets = [0, 64], sizes = [2, 64], strides = [1, 1]} : vector<2x192xf32> to vector<2x64xf32>
    %293 = vector.extract_strided_slice %290 {offsets = [0, 128], sizes = [2, 64], strides = [1, 1]} : vector<2x192xf32> to vector<2x64xf32>
    %294 = vector.extract_strided_slice %284 {offsets = [0, 192], sizes = [2, 64], strides = [1, 1]} : vector<2x256xf32> to vector<2x64xf32>
    %295 = math.tanh %294 : vector<2x64xf32>
    %296 = arith.mulf %292, %250 : vector<2x64xf32>
    %297 = arith.mulf %291, %295 : vector<2x64xf32>
    %298 = arith.addf %296, %297 : vector<2x64xf32>
    %299 = math.tanh %298 : vector<2x64xf32>
    %300 = arith.mulf %293, %299 : vector<2x64xf32>
    %301 = vector.shape_cast %300 : vector<2x64xf32> to vector<2x1x64xf32>
    %302 = vector.extract_strided_slice %8 {offsets = [0, 6, 0], sizes = [2, 1, 256], strides = [1, 1, 1]} : vector<2x8x256xf32> to vector<2x1x256xf32>
    %303 = vector.shape_cast %302 : vector<2x1x256xf32> to vector<2x256xf32>
    %304 = arith.truncf %275 : vector<2x64xf32> to vector<2x64xbf16>
    %c0_78 = arith.constant 0 : index
    %c0_79 = arith.constant 0 : index
    %305 = vector.load %arg3[%c0_78, %c0_79] : memref<64x256xbf16, #tpu.memory_space<vmem>>, vector<64x256xbf16>
    %cst_80 = arith.constant dense<0.000000e+00> : vector<2x256xf32>
    %306 = tpu.matmul %304, %305, %cst_80 {dimension_numbers = #tpu.dot_dimension_numbers<[1], [0], [0], [1], [0, 0, 1, 1], [], []>} : vector<2x64xbf16>, vector<64x256xbf16>, vector<2x256xf32> -> vector<2x256xf32>
    %307 = arith.addf %303, %306 : vector<2x256xf32>
    %308 = vector.extract_strided_slice %307 {offsets = [0, 0], sizes = [2, 192], strides = [1, 1]} : vector<2x256xf32> to vector<2x192xf32>
    %309 = arith.negf %308 : vector<2x192xf32>
    %310 = math.exp %309 : vector<2x192xf32>
    %cst_81 = arith.constant 1.000000e+00 : f32
    %311 = vector.broadcast %cst_81 : f32 to vector<2x192xf32>
    %312 = arith.addf %311, %310 : vector<2x192xf32>
    %313 = arith.divf %311, %312 : vector<2x192xf32>
    %314 = vector.extract_strided_slice %313 {offsets = [0, 0], sizes = [2, 64], strides = [1, 1]} : vector<2x192xf32> to vector<2x64xf32>
    %315 = vector.extract_strided_slice %313 {offsets = [0, 64], sizes = [2, 64], strides = [1, 1]} : vector<2x192xf32> to vector<2x64xf32>
    %316 = vector.extract_strided_slice %313 {offsets = [0, 128], sizes = [2, 64], strides = [1, 1]} : vector<2x192xf32> to vector<2x64xf32>
    %317 = vector.extract_strided_slice %307 {offsets = [0, 192], sizes = [2, 64], strides = [1, 1]} : vector<2x256xf32> to vector<2x64xf32>
    %318 = math.tanh %317 : vector<2x64xf32>
    %319 = arith.mulf %315, %273 : vector<2x64xf32>
    %320 = arith.mulf %314, %318 : vector<2x64xf32>
    %321 = arith.addf %319, %320 : vector<2x64xf32>
    %322 = math.tanh %321 : vector<2x64xf32>
    %323 = arith.mulf %316, %322 : vector<2x64xf32>
    %324 = arith.truncf %323 : vector<2x64xf32> to vector<2x64xbf16>
    %c0_82 = arith.constant 0 : index
    %c0_83 = arith.constant 0 : index
    %325 = vector.load %arg4[%c0_82, %c0_83] : memref<64x256xbf16, #tpu.memory_space<vmem>>, vector<64x256xbf16>
    %cst_84 = arith.constant dense<0.000000e+00> : vector<2x256xf32>
    %326 = tpu.matmul %324, %325, %cst_84 {dimension_numbers = #tpu.dot_dimension_numbers<[1], [0], [0], [1], [0, 0, 1, 1], [], []>} : vector<2x64xbf16>, vector<64x256xbf16>, vector<2x256xf32> -> vector<2x256xf32>
    %327 = arith.truncf %300 : vector<2x64xf32> to vector<2x64xbf16>
    %c0_85 = arith.constant 0 : index
    %c0_86 = arith.constant 0 : index
    %328 = vector.load %arg5[%c0_85, %c0_86] : memref<64x256xbf16, #tpu.memory_space<vmem>>, vector<64x256xbf16>
    %cst_87 = arith.constant dense<0.000000e+00> : vector<2x256xf32>
    %329 = tpu.matmul %327, %328, %cst_87 {dimension_numbers = #tpu.dot_dimension_numbers<[1], [0], [0], [1], [0, 0, 1, 1], [], []>} : vector<2x64xbf16>, vector<64x256xbf16>, vector<2x256xf32> -> vector<2x256xf32>
    %330 = arith.addf %326, %329 : vector<2x256xf32>
    %331 = vector.broadcast %9 : vector<1x256xf32> to vector<2x256xf32>
    %332 = arith.addf %330, %331 : vector<2x256xf32>
    %333 = vector.extract_strided_slice %332 {offsets = [0, 0], sizes = [2, 192], strides = [1, 1]} : vector<2x256xf32> to vector<2x192xf32>
    %334 = arith.negf %333 : vector<2x192xf32>
    %335 = math.exp %334 : vector<2x192xf32>
    %cst_88 = arith.constant 1.000000e+00 : f32
    %336 = vector.broadcast %cst_88 : f32 to vector<2x192xf32>
    %337 = arith.addf %336, %335 : vector<2x192xf32>
    %338 = arith.divf %336, %337 : vector<2x192xf32>
    %339 = vector.extract_strided_slice %338 {offsets = [0, 0], sizes = [2, 64], strides = [1, 1]} : vector<2x192xf32> to vector<2x64xf32>
    %340 = vector.extract_strided_slice %338 {offsets = [0, 64], sizes = [2, 64], strides = [1, 1]} : vector<2x192xf32> to vector<2x64xf32>
    %341 = vector.extract_strided_slice %338 {offsets = [0, 128], sizes = [2, 64], strides = [1, 1]} : vector<2x192xf32> to vector<2x64xf32>
    %342 = vector.extract_strided_slice %332 {offsets = [0, 192], sizes = [2, 64], strides = [1, 1]} : vector<2x256xf32> to vector<2x64xf32>
    %343 = math.tanh %342 : vector<2x64xf32>
    %344 = arith.mulf %340, %298 : vector<2x64xf32>
    %345 = arith.mulf %339, %343 : vector<2x64xf32>
    %346 = arith.addf %344, %345 : vector<2x64xf32>
    %347 = math.tanh %346 : vector<2x64xf32>
    %348 = arith.mulf %341, %347 : vector<2x64xf32>
    %349 = vector.shape_cast %348 : vector<2x64xf32> to vector<2x1x64xf32>
    %350 = vector.extract_strided_slice %8 {offsets = [0, 7, 0], sizes = [2, 1, 256], strides = [1, 1, 1]} : vector<2x8x256xf32> to vector<2x1x256xf32>
    %351 = vector.shape_cast %350 : vector<2x1x256xf32> to vector<2x256xf32>
    %352 = arith.truncf %323 : vector<2x64xf32> to vector<2x64xbf16>
    %c0_89 = arith.constant 0 : index
    %c0_90 = arith.constant 0 : index
    %353 = vector.load %arg3[%c0_89, %c0_90] : memref<64x256xbf16, #tpu.memory_space<vmem>>, vector<64x256xbf16>
    %cst_91 = arith.constant dense<0.000000e+00> : vector<2x256xf32>
    %354 = tpu.matmul %352, %353, %cst_91 {dimension_numbers = #tpu.dot_dimension_numbers<[1], [0], [0], [1], [0, 0, 1, 1], [], []>} : vector<2x64xbf16>, vector<64x256xbf16>, vector<2x256xf32> -> vector<2x256xf32>
    %355 = arith.addf %351, %354 : vector<2x256xf32>
    %356 = vector.extract_strided_slice %355 {offsets = [0, 0], sizes = [2, 192], strides = [1, 1]} : vector<2x256xf32> to vector<2x192xf32>
    %357 = arith.negf %356 : vector<2x192xf32>
    %358 = math.exp %357 : vector<2x192xf32>
    %cst_92 = arith.constant 1.000000e+00 : f32
    %359 = vector.broadcast %cst_92 : f32 to vector<2x192xf32>
    %360 = arith.addf %359, %358 : vector<2x192xf32>
    %361 = arith.divf %359, %360 : vector<2x192xf32>
    %362 = vector.extract_strided_slice %361 {offsets = [0, 0], sizes = [2, 64], strides = [1, 1]} : vector<2x192xf32> to vector<2x64xf32>
    %363 = vector.extract_strided_slice %361 {offsets = [0, 64], sizes = [2, 64], strides = [1, 1]} : vector<2x192xf32> to vector<2x64xf32>
    %364 = vector.extract_strided_slice %361 {offsets = [0, 128], sizes = [2, 64], strides = [1, 1]} : vector<2x192xf32> to vector<2x64xf32>
    %365 = vector.extract_strided_slice %355 {offsets = [0, 192], sizes = [2, 64], strides = [1, 1]} : vector<2x256xf32> to vector<2x64xf32>
    %366 = math.tanh %365 : vector<2x64xf32>
    %367 = arith.mulf %363, %321 : vector<2x64xf32>
    %368 = arith.mulf %362, %366 : vector<2x64xf32>
    %369 = arith.addf %367, %368 : vector<2x64xf32>
    %370 = math.tanh %369 : vector<2x64xf32>
    %371 = arith.mulf %364, %370 : vector<2x64xf32>
    %372 = arith.truncf %371 : vector<2x64xf32> to vector<2x64xbf16>
    %c0_93 = arith.constant 0 : index
    %c0_94 = arith.constant 0 : index
    %373 = vector.load %arg4[%c0_93, %c0_94] : memref<64x256xbf16, #tpu.memory_space<vmem>>, vector<64x256xbf16>
    %cst_95 = arith.constant dense<0.000000e+00> : vector<2x256xf32>
    %374 = tpu.matmul %372, %373, %cst_95 {dimension_numbers = #tpu.dot_dimension_numbers<[1], [0], [0], [1], [0, 0, 1, 1], [], []>} : vector<2x64xbf16>, vector<64x256xbf16>, vector<2x256xf32> -> vector<2x256xf32>
    %375 = arith.truncf %348 : vector<2x64xf32> to vector<2x64xbf16>
    %c0_96 = arith.constant 0 : index
    %c0_97 = arith.constant 0 : index
    %376 = vector.load %arg5[%c0_96, %c0_97] : memref<64x256xbf16, #tpu.memory_space<vmem>>, vector<64x256xbf16>
    %cst_98 = arith.constant dense<0.000000e+00> : vector<2x256xf32>
    %377 = tpu.matmul %375, %376, %cst_98 {dimension_numbers = #tpu.dot_dimension_numbers<[1], [0], [0], [1], [0, 0, 1, 1], [], []>} : vector<2x64xbf16>, vector<64x256xbf16>, vector<2x256xf32> -> vector<2x256xf32>
    %378 = arith.addf %374, %377 : vector<2x256xf32>
    %379 = vector.broadcast %9 : vector<1x256xf32> to vector<2x256xf32>
    %380 = arith.addf %378, %379 : vector<2x256xf32>
    %381 = vector.extract_strided_slice %380 {offsets = [0, 0], sizes = [2, 192], strides = [1, 1]} : vector<2x256xf32> to vector<2x192xf32>
    %382 = arith.negf %381 : vector<2x192xf32>
    %383 = math.exp %382 : vector<2x192xf32>
    %cst_99 = arith.constant 1.000000e+00 : f32
    %384 = vector.broadcast %cst_99 : f32 to vector<2x192xf32>
    %385 = arith.addf %384, %383 : vector<2x192xf32>
    %386 = arith.divf %384, %385 : vector<2x192xf32>
    %387 = vector.extract_strided_slice %386 {offsets = [0, 0], sizes = [2, 64], strides = [1, 1]} : vector<2x192xf32> to vector<2x64xf32>
    %388 = vector.extract_strided_slice %386 {offsets = [0, 64], sizes = [2, 64], strides = [1, 1]} : vector<2x192xf32> to vector<2x64xf32>
    %389 = vector.extract_strided_slice %386 {offsets = [0, 128], sizes = [2, 64], strides = [1, 1]} : vector<2x192xf32> to vector<2x64xf32>
    %390 = vector.extract_strided_slice %380 {offsets = [0, 192], sizes = [2, 64], strides = [1, 1]} : vector<2x256xf32> to vector<2x64xf32>
    %391 = math.tanh %390 : vector<2x64xf32>
    %392 = arith.mulf %388, %346 : vector<2x64xf32>
    %393 = arith.mulf %387, %391 : vector<2x64xf32>
    %394 = arith.addf %392, %393 : vector<2x64xf32>
    %395 = math.tanh %394 : vector<2x64xf32>
    %396 = arith.mulf %389, %395 : vector<2x64xf32>
    %397 = vector.shape_cast %396 : vector<2x64xf32> to vector<2x1x64xf32>
    %398 = tpu.concatenate %61, %109, %157, %205, %253, %301, %349, %397 in 1 : vector<2x1x64xf32>, vector<2x1x64xf32>, vector<2x1x64xf32>, vector<2x1x64xf32>, vector<2x1x64xf32>, vector<2x1x64xf32>, vector<2x1x64xf32>, vector<2x1x64xf32> -> vector<2x8x64xf32>
    %399 = vector.shape_cast %398 : vector<2x8x64xf32> to vector<16x64xf32>
    %400 = arith.truncf %399 : vector<16x64xf32> to vector<16x64xbf16>
    %c0_100 = arith.constant 0 : index
    %c0_101 = arith.constant 0 : index
    %401 = vector.load %arg7[%c0_100, %c0_101] : memref<64x32xbf16, #tpu.memory_space<vmem>>, vector<64x32xbf16>
    %cst_102 = arith.constant dense<0.000000e+00> : vector<16x32xf32>
    %402 = tpu.matmul %400, %401, %cst_102 {dimension_numbers = #tpu.dot_dimension_numbers<[1], [0], [0], [1], [0, 0, 1, 1], [], []>} : vector<16x64xbf16>, vector<64x32xbf16>, vector<16x32xf32> -> vector<16x32xf32>
    %c0_103 = arith.constant 0 : index
    %c0_104 = arith.constant 0 : index
    %403 = vector.load %arg8[%c0_103, %c0_104] : memref<1x32xf32, #tpu.memory_space<vmem>>, vector<1x32xf32>
    %404 = vector.broadcast %403 : vector<1x32xf32> to vector<16x32xf32>
    %405 = arith.addf %402, %404 : vector<16x32xf32>
    %cst_105 = arith.constant 0.000000e+00 : f32
    %406 = vector.broadcast %cst_105 : f32 to vector<16x32xf32>
    %407 = arith.maximumf %405, %406 : vector<16x32xf32>
    %408 = arith.truncf %407 : vector<16x32xf32> to vector<16x32xbf16>
    %c0_106 = arith.constant 0 : index
    %c0_107 = arith.constant 0 : index
    %409 = vector.load %arg9[%c0_106, %c0_107] : memref<32x6xbf16, #tpu.memory_space<vmem>>, vector<32x6xbf16>
    %cst_108 = arith.constant dense<0.000000e+00> : vector<16x6xf32>
    %410 = tpu.matmul %408, %409, %cst_108 {dimension_numbers = #tpu.dot_dimension_numbers<[1], [0], [0], [1], [0, 0, 1, 1], [], []>} : vector<16x32xbf16>, vector<32x6xbf16>, vector<16x6xf32> -> vector<16x6xf32>
    %c0_109 = arith.constant 0 : index
    %c0_110 = arith.constant 0 : index
    %411 = vector.load %arg10[%c0_109, %c0_110] : memref<1x6xf32, #tpu.memory_space<vmem>>, vector<1x6xf32>
    %412 = vector.broadcast %411 : vector<1x6xf32> to vector<16x6xf32>
    %413 = arith.addf %410, %412 : vector<16x6xf32>
    %414 = vector.shape_cast %413 : vector<16x6xf32> to vector<2x8x6xf32>
    %c0_111 = arith.constant 0 : index
    %c0_112 = arith.constant 0 : index
    %c0_113 = arith.constant 0 : index
    %415 = vector.load %arg11[%c0_111, %c0_112, %c0_113] : memref<2x8x6xf32, #tpu.memory_space<vmem>>, vector<2x8x6xf32>
    tpu.vector_store %arg11[%c0_111, %c0_112, %c0_113], %414 {strides = array<i32>} : memref<2x8x6xf32, #tpu.memory_space<vmem>>, vector<2x8x6xf32>,
    return
  }
}

</mosaic_0001>

<llo_original>
// kernel: tpu_custom_call.1
$region0: #{tpu_custom_call.1}
  #allocation0 [shape = 'u32[]', space=smem, size = 0x4, offset = 0x4, fixed_abs, tag = 'smem constant byte address 0x4 - core index']
  #allocation1 [shape = 'u32[144,128]{1,0:T(1,128)}', space=vmem, size = 0x12000, scoped, tag = 'internal scratch']
  %s0 = inlined_call_operand.vmem [shape: f32[2,8,6], index: 0, kind: input, shape index: {}]
  %s1 = inlined_call_operand.vmem [shape: bf16[6,256], index: 1, kind: input, shape index: {}]
  %s2 = inlined_call_operand.vmem [shape: f32[1,256], index: 2, kind: input, shape index: {}]
  %s3 = inlined_call_operand.vmem [shape: bf16[64,256], index: 3, kind: input, shape index: {}]
  %s4 = inlined_call_operand.hbm [shape: bf16[64,256], index: 4, kind: input, shape index: {}]
  %s5 = inlined_call_operand.hbm [shape: bf16[64,256], index: 5, kind: input, shape index: {}]
  %s6 = inlined_call_operand.vmem [shape: f32[1,256], index: 6, kind: input, shape index: {}]
  %s7 = inlined_call_operand.vmem [shape: bf16[64,32], index: 7, kind: input, shape index: {}]
  %s8 = inlined_call_operand.vmem [shape: f32[1,32], index: 8, kind: input, shape index: {}]
  %s9 = inlined_call_operand.vmem [shape: bf16[32,6], index: 9, kind: input, shape index: {}]
  %s10 = inlined_call_operand.vmem [shape: f32[1,6], index: 10, kind: input, shape index: {}]
  %s11 = inlined_call_operand.vmem [shape: f32[2,8,6], index: 11, kind: output, shape index: {}]
  %s12 = sld [smem:[#allocation0]]
  $region62: #{tpu_custom_call.1} parent=0
    _
  %s14 = ssub.s32 1, %s12
  %s15 = scalar_select 0, %s14, %s12
  $region1: #{tpu_custom_call.1} parent=0
    #allocation2 [shape = 'u8[32768]{0}', space=vmem, size = 0x8000, scoped, tag = 'input window, operand 4, single buffered']
    #allocation3 [shape = 's32[1]{0}', space=sflag, size = 0x4, scoped, tag = 'scoped memory for tpu_custom_call.1']
    #allocation4 [shape = 'u8[32768]{0}', space=vmem, size = 0x8000, scoped, tag = 'input window, operand 5, single buffered']
    #allocation5 [shape = 's32[1]{0}', space=sflag, size = 0x4, scoped, tag = 'scoped memory for tpu_custom_call.1']
    %16 = vsyncpa [#allocation3], 0
    %17 = vsyncpa [#allocation5], 0
    // Predicated region
    $region2: #{tpu_custom_call.1} parent=1 // pred_check
      _
    $region3: #{tpu_custom_call.1} parent=1 // pred_check_branch
      %19 = sbr.rel (0) target = $region5
    $region4: #{tpu_custom_call.1} parent=1 // pred_region
      _
    $region5: #{tpu_custom_call.1} parent=1 // pred_fallthru
      _
    // Predicated region
    $region6: #{tpu_custom_call.1} parent=1 // pred_check
      _
    $region7: #{tpu_custom_call.1} parent=1 // pred_check_branch
      %21 = sbr.rel (0) target = $region9
    $region8: #{tpu_custom_call.1} parent=1 // pred_region
      _
    $region9: #{tpu_custom_call.1} parent=1 // pred_fallthru
      _
    // Predicated region
    $region10: #{tpu_custom_call.1} parent=1 // pred_check
      _
    $region11: #{tpu_custom_call.1} parent=1 // pred_check_branch
      %23 = sbr.rel (0) target = $region13
    $region12: #{tpu_custom_call.1} parent=1 // pred_region
      _
    $region13: #{tpu_custom_call.1} parent=1 // pred_fallthru
      _
    // Predicated region
    $region14: #{tpu_custom_call.1} parent=1 // pred_check
      _
    $region15: #{tpu_custom_call.1} parent=1 // pred_check_branch
      %25 = sbr.rel (0) target = $region17
    $region16: #{tpu_custom_call.1} parent=1 // pred_region
      _
    $region17: #{tpu_custom_call.1} parent=1 // pred_fallthru
      _
    // Predicated region
    $region18: #{tpu_custom_call.1} parent=1 // pred_check
      _
    $region19: #{tpu_custom_call.1} parent=1 // pred_check_branch
      %27 = sbr.rel (0) target = $region21
    $region20: #{tpu_custom_call.1} parent=1 // pred_region
      %s29 = ssub.s32 1024, 1024
      %30 = vsyncadd [#allocation3], %s29
      %s31 = sshll.u32 [#allocation2], 4
      %s32 = int_to_ptr.vmem [resolvable:$true] %s31
      %37 = dma.hbm_to_vmem [thread:$0]  %s4, 1024, %s32, [#allocation3], 128, 128, 8
    $region21: #{tpu_custom_call.1} parent=1 // pred_fallthru
      _
    // Predicated region
    $region22: #{tpu_custom_call.1} parent=1 // pred_check
      _
    $region23: #{tpu_custom_call.1} parent=1 // pred_check_branch
      %39 = sbr.rel (0) target = $region25
    $region24: #{tpu_custom_call.1} parent=1 // pred_region
      %s41 = ssub.s32 1024, 1024
      %42 = vsyncadd [#allocation5], %s41
      %s43 = sshll.u32 [#allocation4], 4
      %s44 = int_to_ptr.vmem [resolvable:$true] %s43
      %49 = dma.hbm_to_vmem [thread:$0]  %s5, 1024, %s44, [#allocation5], 128, 128, 8
    $region25: #{tpu_custom_call.1} parent=1 // pred_fallthru
      _
    // Predicated region
    $region26: #{tpu_custom_call.1} parent=1 // pred_check
      _
    $region27: #{tpu_custom_call.1} parent=1 // pred_check_branch
      %51 = sbr.rel (0) target = $region29
    $region28: #{tpu_custom_call.1} parent=1 // pred_region
      _
    $region29: #{tpu_custom_call.1} parent=1 // pred_fallthru
      _
    // Predicated region
    $region30: #{tpu_custom_call.1} parent=1 // pred_check
      _
    $region31: #{tpu_custom_call.1} parent=1 // pred_check_branch
      %53 = sbr.rel (0) target = $region33
    $region32: #{tpu_custom_call.1} parent=1 // pred_region
      _
    $region33: #{tpu_custom_call.1} parent=1 // pred_fallthru
      _
    // Predicated region
    $region34: #{tpu_custom_call.1} parent=1 // pred_check
      _
    $region35: #{tpu_custom_call.1} parent=1 // pred_check_branch
      %55 = sbr.rel (0) target = $region37
    $region36: #{tpu_custom_call.1} parent=1 // pred_region
      _
    $region37: #{tpu_custom_call.1} parent=1 // pred_fallthru
      _
    // Predicated region
    $region38: #{tpu_custom_call.1} parent=1 // pred_check
      _
    $region39: #{tpu_custom_call.1} parent=1 // pred_check_branch
      %57 = sbr.rel (0) target = $region41
    $region40: #{tpu_custom_call.1} parent=1 // pred_region
      _
    $region41: #{tpu_custom_call.1} parent=1 // pred_fallthru
      _
    // Predicated region
    $region42: #{tpu_custom_call.1} parent=1 // pred_check
      _
    $region43: #{tpu_custom_call.1} parent=1 // pred_check_branch
      %59 = sbr.rel (0) target = $region45
    $region44: #{tpu_custom_call.1} parent=1 // pred_region
      _
    $region45: #{tpu_custom_call.1} parent=1 // pred_fallthru
      _
    // Predicated region
    $region46: #{tpu_custom_call.1} parent=1 // pred_check
      _
    $region47: #{tpu_custom_call.1} parent=1 // pred_check_branch
      %61 = sbr.rel (0) target = $region49
    $region48: #{tpu_custom_call.1} parent=1 // pred_region
      %62 = dma.done [#allocation3], 1024
    $region49: #{tpu_custom_call.1} parent=1 // pred_fallthru
      _
    // Predicated region
    $region50: #{tpu_custom_call.1} parent=1 // pred_check
      _
    $region51: #{tpu_custom_call.1} parent=1 // pred_check_branch
      %64 = sbr.rel (0) target = $region53
    $region52: #{tpu_custom_call.1} parent=1 // pred_region
      %65 = dma.done [#allocation5], 1024
    $region53: #{tpu_custom_call.1} parent=1 // pred_fallthru
      _
    %v67 = vld [vmem:[%s0] sm:$0xff]
    %v68 = vld [vmem:[%s0 + $0x8] sm:$0xff]
    %v69 = vpack.c.bf16 %v68, %v67
    %v70 = vld [vmem:[%s1] sm:$0x77]
    %v71 = vld [vmem:[%s2] sm:$0x3]
    %v73 = vlaneseq
    %v74 = vshrl.u32 %v73, 7
    %v75 = vsub.s32 0, %v74
    %v76 = vrot.slane %v71, %v75
    %v77 = vlaneseq
    %v78 = vshrl.u32 %v77, 7
    %v79 = vsub.s32 1, %v78
    %v80 = vrot.slane %v71, %v79
    %v84 = vunpack.c.l.b16 %v70
    %v85 = vunpack.c.h.b16 %v70
    %v86 = vpack.c.b16 %v84, %v84
    %v87 = vpack.c.b16 %v85, %v85
    %vm88 = vcmask 48128
    %v90 = vsel %vm88, %v69, 0
    %vm92 = vcmask 1042432
    %v94 = vsel %vm92, %v86, 0
    %v97 = vsel %vm92, %v87, 0
    %99 = vmatprep.subr.bf16.mxu0 0
    %100 = vmatpush1.bf16.msra.mxu0 0
    %101 = vmatprep.subr.bf16.mxu0 0
    %102 = vmatpush1.bf16.msra.mxu0 0
    %103 = vmatprep.subr.bf16.mxu0 0
    %104 = vmatpush1.bf16.msra.mxu0 0
    %105 = vmatprep.subr.bf16.mxu0 0
    %106 = vmatpush1.bf16.msra.mxu0 0
    %107 = vmatprep.subr.bf16.mxu0 0
    %108 = vmatpush1.bf16.msra.mxu0 0
    %109 = vmatprep.subr.bf16.mxu0 0
    %110 = vmatpush1.bf16.msra.mxu0 0
    %111 = vmatprep.subr.bf16.mxu0 0
    %112 = vmatpush1.bf16.msra.mxu0 0
    %113 = vmatprep.subr.bf16.mxu0 %v97
    %114 = vmatpush1.bf16.msra.mxu0 %v94
    %115 = vmatprep.subr.bf16.mxu0 0
    %116 = vmatpush2.bf16.msra.mxu0 0
    %117 = vmatprep.subr.bf16.mxu0 0
    %118 = vmatpush2.bf16.msra.mxu0 0
    %119 = vmatprep.subr.bf16.mxu0 0
    %120 = vmatpush2.bf16.msra.mxu0 0
    %121 = vmatprep.subr.bf16.mxu0 0
    %122 = vmatpush2.bf16.msra.mxu0 0
    %123 = vmatprep.subr.bf16.mxu0 0
    %124 = vmatpush2.bf16.msra.mxu0 0
    %125 = vmatprep.subr.bf16.mxu0 0
    %126 = vmatpush2.bf16.msra.mxu0 0
    %127 = vmatprep.subr.bf16.mxu0 0
    %128 = vmatpush2.bf16.msra.mxu0 0
    %129 = vmatprep.subr.bf16.mxu0 0
    %130 = vmatpush2.bf16.msra.mxu0 0
    %131 = vmatprep.mubr.bf16.mxu0 0
    %132 = vmatmul.mubr.bf16.gmra.mxu0 %v90
    %v133 = vpop.f32.mrf.mxu0
    %v134 = vadd.f32 %v76, %v133
    %v135 = vpop.f32.mrf.mxu0
    %v136 = vadd.f32 %v80, %v135
    %v137 = vpop.f32.mrf.mxu0
    %v138 = vadd.f32 %v76, %v137
    %v139 = vpop.f32.mrf.mxu0
    %v140 = vadd.f32 %v80, %v139
    %141 = vdwg.mxu0
    %v142 = vld [vmem:[%s6] sm:$0x3]
    %v143 = vld [vmem:[%s3] sm:$0xff]
    %v144 = vld [vmem:[%s3 + $0x8] sm:$0xff]
    %v145 = vld [vmem:[%s3 + $0x10] sm:$0xff]
    %v146 = vld [vmem:[%s3 + $0x18] sm:$0xff]
    %v147 = vld [vmem:[%s3 + $0x20] sm:$0xff]
    %v148 = vld [vmem:[%s3 + $0x28] sm:$0xff]
    %v149 = vld [vmem:[%s3 + $0x30] sm:$0xff]
    %v150 = vld [vmem:[%s3 + $0x38] sm:$0xff]
    %v159 = vunpack.c.l.b16 %v143
    %v160 = vunpack.c.h.b16 %v143
    %v161 = vunpack.c.l.b16 %v144
    %v162 = vunpack.c.h.b16 %v144
    %v163 = vunpack.c.l.b16 %v145
    %v164 = vunpack.c.h.b16 %v145
    %v165 = vunpack.c.l.b16 %v146
    %v166 = vunpack.c.h.b16 %v146
    %v167 = vunpack.c.l.b16 %v147
    %v168 = vunpack.c.h.b16 %v147
    %v169 = vunpack.c.l.b16 %v148
    %v170 = vunpack.c.h.b16 %v148
    %v171 = vunpack.c.l.b16 %v149
    %v172 = vunpack.c.h.b16 %v149
    %v173 = vunpack.c.l.b16 %v150
    %v174 = vunpack.c.h.b16 %v150
    %v175 = vpack.c.b16 %v161, %v159
    %v176 = vpack.c.b16 %v162, %v160
    %v177 = vpack.c.b16 %v165, %v163
    %v178 = vpack.c.b16 %v166, %v164
    %v179 = vpack.c.b16 %v169, %v167
    %v180 = vpack.c.b16 %v170, %v168
    %v181 = vpack.c.b16 %v173, %v171
    %v182 = vpack.c.b16 %v174, %v172
    %vm191 = vcmask 523264
    %v193 = vsel %vm191, 0, 0
    %195 = vmatprep.subr.bf16.mxu0 0
    %196 = vmatpush1.bf16.msra.mxu0 0
    %197 = vmatprep.subr.bf16.mxu0 0
    %198 = vmatpush1.bf16.msra.mxu0 0
    %199 = vmatprep.subr.bf16.mxu0 0
    %200 = vmatpush1.bf16.msra.mxu0 0
    %201 = vmatprep.subr.bf16.mxu0 0
    %202 = vmatpush1.bf16.msra.mxu0 0
    %203 = vmatprep.subr.bf16.mxu0 %v182
    %204 = vmatpush1.bf16.msra.mxu0 %v181
    %205 = vmatprep.subr.bf16.mxu0 %v180
    %206 = vmatpush1.bf16.msra.mxu0 %v179
    %207 = vmatprep.subr.bf16.mxu0 %v178
    %208 = vmatpush1.bf16.msra.mxu0 %v177
    %209 = vmatprep.subr.bf16.mxu0 %v176
    %210 = vmatpush1.bf16.msra.mxu0 %v175
    %211 = vmatprep.subr.bf16.mxu0 0
    %212 = vmatpush2.bf16.msra.mxu0 0
    %213 = vmatprep.subr.bf16.mxu0 0
    %214 = vmatpush2.bf16.msra.mxu0 0
    %215 = vmatprep.subr.bf16.mxu0 0
    %216 = vmatpush2.bf16.msra.mxu0 0
    %217 = vmatprep.subr.bf16.mxu0 0
    %218 = vmatpush2.bf16.msra.mxu0 0
    %219 = vmatprep.subr.bf16.mxu0 0
    %220 = vmatpush2.bf16.msra.mxu0 0
    %221 = vmatprep.subr.bf16.mxu0 0
    %222 = vmatpush2.bf16.msra.mxu0 0
    %223 = vmatprep.subr.bf16.mxu0 0
    %224 = vmatpush2.bf16.msra.mxu0 0
    %225 = vmatprep.subr.bf16.mxu0 0
    %226 = vmatpush2.bf16.msra.mxu0 0
    %227 = vmatprep.mubr.bf16.mxu0 0
    %228 = vmatmul.mubr.bf16.gmra.mxu0 %v193
    %v229 = vpop.f32.mrf.mxu0
    %v230 = vadd.f32 0.0, %v229
    %v231 = vpop.f32.mrf.mxu0
    %v232 = vadd.f32 0.0, %v231
    %v233 = vpop.f32.mrf.mxu0
    %v234 = vpop.f32.mrf.mxu0
    %235 = vdwg.mxu0
    %v238 = vrot.slane %v230, 1
    %v239 = vrot.slane %v232, 1
    %v244 = vadd.f32 %v134, %v230
    %v245 = vadd.f32 %v136, %v232
    %v246 = vadd.f32 %v138, %v238
    %v247 = vadd.f32 %v140, %v239
    %v248 = vxor.u32 %v244, 2147483648
    %v249 = vxor.u32 %v245, 2147483648
    %v250 = vxor.u32 %v246, 2147483648
    %v251 = vxor.u32 %v247, 2147483648
    %v252 = vmul.f32 %v248, 1.442695
    %v253 = vpow.pop %v252
    %v254 = vmul.f32 %v249, 1.442695
    %v255 = vpow.pop %v254
    %v256 = vmul.f32 %v250, 1.442695
    %v257 = vpow.pop %v256
    %v258 = vmul.f32 %v251, 1.442695
    %v259 = vpow.pop %v258
    %v260 = vadd.f32 %v253, 1.0
    %v261 = vadd.f32 %v255, 1.0
    %v262 = vadd.f32 %v257, 1.0
    %v263 = vadd.f32 %v259, 1.0
    %v264 = vrcp.pop %v260
    %v265 = vmul.f32 1.0, %v264
    %v266 = vrcp.pop %v261
    %v267 = vmul.f32 1.0, %v266
    %v268 = vrcp.pop %v262
    %v269 = vmul.f32 1.0, %v268
    %v270 = vrcp.pop %v263
    %v271 = vmul.f32 1.0, %v270
    %v272 = vtanh.pop %v245
    %v273 = vtanh.pop %v247
    %v274 = vmul.f32 %v265, 0.0
    %v275 = vmul.f32 %v269, 0.0
    %278 = vrot.lane.b32.xlu0 %v272, 64
    %v279 = vpop.permute.xlu0 %278
    %280 = vrot.lane.b32.xlu0 %v273, 64
    %v281 = vpop.permute.xlu0 %280
    %v284 = vmul.f32 %v265, %v279
    %v285 = vmul.f32 %v269, %v281
    %288 = vrot.lane.b32.xlu0 %v284, 64
    %v289 = vpop.permute.xlu0 %288
    %290 = vrot.lane.b32.xlu0 %v285, 64
    %v291 = vpop.permute.xlu0 %290
    %v294 = vadd.f32 %v274, %v289
    %v295 = vadd.f32 %v275, %v291
    %v296 = vtanh.pop %v294
    %v297 = vtanh.pop %v295
    %300 = vrot.lane.b32.xlu0 %v296, 64
    %v301 = vpop.permute.xlu0 %300
    %302 = vrot.lane.b32.xlu0 %v297, 64
    %v303 = vpop.permute.xlu0 %302
    %v306 = vmul.f32 %v267, %v301
    %v307 = vmul.f32 %v271, %v303
    %v308 = vpack.c.bf16 %v306, %v306
    %v309 = vpack.c.bf16 %v307, %v307
    %v310 = vld [vmem:[#allocation2] sm:$0xff]
    %v311 = vld [vmem:[#allocation2 + $0x8] sm:$0xff]
    %v312 = vld [vmem:[#allocation2 + $0x10] sm:$0xff]
    %v313 = vld [vmem:[#allocation2 + $0x18] sm:$0xff]
    %v314 = vld [vmem:[#allocation2 + $0x20] sm:$0xff]
    %v315 = vld [vmem:[#allocation2 + $0x28] sm:$0xff]
    %v316 = vld [vmem:[#allocation2 + $0x30] sm:$0xff]
    %v317 = vld [vmem:[#allocation2 + $0x38] sm:$0xff]
    %v318 = vld [vmem:[#allocation4] sm:$0xff]
    %v319 = vld [vmem:[#allocation4 + $0x8] sm:$0xff]
    %v320 = vld [vmem:[#allocation4 + $0x10] sm:$0xff]
    %v321 = vld [vmem:[#allocation4 + $0x18] sm:$0xff]
    %v322 = vld [vmem:[#allocation4 + $0x20] sm:$0xff]
    %v323 = vld [vmem:[#allocation4 + $0x28] sm:$0xff]
    %v324 = vld [vmem:[#allocation4 + $0x30] sm:$0xff]
    %v325 = vld [vmem:[#allocation4 + $0x38] sm:$0xff]
    %v334 = vunpack.c.l.b16 %v318
    %v335 = vunpack.c.h.b16 %v318
    %v336 = vunpack.c.l.b16 %v319
    %v337 = vunpack.c.h.b16 %v319
    %v338 = vunpack.c.l.b16 %v320
    %v339 = vunpack.c.h.b16 %v320
    %v340 = vunpack.c.l.b16 %v321
    %v341 = vunpack.c.h.b16 %v321
    %v342 = vunpack.c.l.b16 %v322
    %v343 = vunpack.c.h.b16 %v322
    %v344 = vunpack.c.l.b16 %v323
    %v345 = vunpack.c.h.b16 %v323
    %v346 = vunpack.c.l.b16 %v324
    %v347 = vunpack.c.h.b16 %v324
    %v348 = vunpack.c.l.b16 %v325
    %v349 = vunpack.c.h.b16 %v325
    %v350 = vpack.c.b16 %v336, %v334
    %v351 = vpack.c.b16 %v337, %v335
    %v352 = vpack.c.b16 %v340, %v338
    %v353 = vpack.c.b16 %v341, %v339
    %v354 = vpack.c.b16 %v344, %v342
    %v355 = vpack.c.b16 %v345, %v343
    %v356 = vpack.c.b16 %v348, %v346
    %v357 = vpack.c.b16 %v349, %v347
    %366 = vmatprep.subr.bf16.mxu0 0
    %367 = vmatpush1.bf16.msra.mxu0 0
    %368 = vmatprep.subr.bf16.mxu0 0
    %369 = vmatpush1.bf16.msra.mxu0 0
    %370 = vmatprep.subr.bf16.mxu0 0
    %371 = vmatpush1.bf16.msra.mxu0 0
    %372 = vmatprep.subr.bf16.mxu0 0
    %373 = vmatpush1.bf16.msra.mxu0 0
    %374 = vmatprep.subr.bf16.mxu0 %v357
    %375 = vmatpush1.bf16.msra.mxu0 %v356
    %376 = vmatprep.subr.bf16.mxu0 %v355
    %377 = vmatpush1.bf16.msra.mxu0 %v354
    %378 = vmatprep.subr.bf16.mxu0 %v353
    %379 = vmatpush1.bf16.msra.mxu0 %v352
    %380 = vmatprep.subr.bf16.mxu0 %v351
    %381 = vmatpush1.bf16.msra.mxu0 %v350
    %382 = vmatprep.subr.bf16.mxu0 0
    %383 = vmatpush2.bf16.msra.mxu0 0
    %384 = vmatprep.subr.bf16.mxu0 0
    %385 = vmatpush2.bf16.msra.mxu0 0
    %386 = vmatprep.subr.bf16.mxu0 0
    %387 = vmatpush2.bf16.msra.mxu0 0
    %388 = vmatprep.subr.bf16.mxu0 0
    %389 = vmatpush2.bf16.msra.mxu0 0
    %390 = vmatprep.subr.bf16.mxu0 0
    %391 = vmatpush2.bf16.msra.mxu0 0
    %392 = vmatprep.subr.bf16.mxu0 0
    %393 = vmatpush2.bf16.msra.mxu0 0
    %394 = vmatprep.subr.bf16.mxu0 0
    %395 = vmatpush2.bf16.msra.mxu0 0
    %396 = vmatprep.subr.bf16.mxu0 0
    %397 = vmatpush2.bf16.msra.mxu0 0
    %398 = vmatprep.mubr.bf16.mxu0 0
    %399 = vmatmul.mubr.bf16.gmra.mxu0 %v193
    %v400 = vpop.f32.mrf.mxu0
    %v401 = vadd.f32 0.0, %v400
    %v402 = vpop.f32.mrf.mxu0
    %v403 = vadd.f32 0.0, %v402
    %v404 = vpop.f32.mrf.mxu0
    %v405 = vpop.f32.mrf.mxu0
    %406 = vdwg.mxu0
    %v409 = vunpack.c.l.b16 %v308
    %v410 = vunpack.c.l.b16 %v309
    %v411 = vrot.slane %v410, 7
    %vm412 = vcmask 1041409
    %v413 = vsel %vm412, %v411, %v409
    %v414 = vpack.c.b16 %v413, %v413
    %v423 = vunpack.c.l.b16 %v310
    %v424 = vunpack.c.h.b16 %v310
    %v425 = vunpack.c.l.b16 %v311
    %v426 = vunpack.c.h.b16 %v311
    %v427 = vunpack.c.l.b16 %v312
    %v428 = vunpack.c.h.b16 %v312
    %v429 = vunpack.c.l.b16 %v313
    %v430 = vunpack.c.h.b16 %v313
    %v431 = vunpack.c.l.b16 %v314
    %v432 = vunpack.c.h.b16 %v314
    %v433 = vunpack.c.l.b16 %v315
    %v434 = vunpack.c.h.b16 %v315
    %v435 = vunpack.c.l.b16 %v316
    %v436 = vunpack.c.h.b16 %v316
    %v437 = vunpack.c.l.b16 %v317
    %v438 = vunpack.c.h.b16 %v317
    %v439 = vpack.c.b16 %v425, %v423
    %v440 = vpack.c.b16 %v426, %v424
    %v441 = vpack.c.b16 %v429, %v427
    %v442 = vpack.c.b16 %v430, %v428
    %v443 = vpack.c.b16 %v433, %v431
    %v444 = vpack.c.b16 %v434, %v432
    %v445 = vpack.c.b16 %v437, %v435
    %v446 = vpack.c.b16 %v438, %v436
    %v456 = vsel %vm191, %v414, 0
    %458 = vmatprep.subr.bf16.mxu0 0
    %459 = vmatpush1.bf16.msra.mxu0 0
    %460 = vmatprep.subr.bf16.mxu0 0
    %461 = vmatpush1.bf16.msra.mxu0 0
    %462 = vmatprep.subr.bf16.mxu0 0
    %463 = vmatpush1.bf16.msra.mxu0 0
    %464 = vmatprep.subr.bf16.mxu0 0
    %465 = vmatpush1.bf16.msra.mxu0 0
    %466 = vmatprep.subr.bf16.mxu0 %v446
    %467 = vmatpush1.bf16.msra.mxu0 %v445
    %468 = vmatprep.subr.bf16.mxu0 %v444
    %469 = vmatpush1.bf16.msra.mxu0 %v443
    %470 = vmatprep.subr.bf16.mxu0 %v442
    %471 = vmatpush1.bf16.msra.mxu0 %v441
    %472 = vmatprep.subr.bf16.mxu0 %v440
    %473 = vmatpush1.bf16.msra.mxu0 %v439
    %474 = vmatprep.subr.bf16.mxu0 0
    %475 = vmatpush2.bf16.msra.mxu0 0
    %476 = vmatprep.subr.bf16.mxu0 0
    %477 = vmatpush2.bf16.msra.mxu0 0
    %478 = vmatprep.subr.bf16.mxu0 0
    %479 = vmatpush2.bf16.msra.mxu0 0
    %480 = vmatprep.subr.bf16.mxu0 0
    %481 = vmatpush2.bf16.msra.mxu0 0
    %482 = vmatprep.subr.bf16.mxu0 0
    %483 = vmatpush2.bf16.msra.mxu0 0
    %484 = vmatprep.subr.bf16.mxu0 0
    %485 = vmatpush2.bf16.msra.mxu0 0
    %486 = vmatprep.subr.bf16.mxu0 0
    %487 = vmatpush2.bf16.msra.mxu0 0
    %488 = vmatprep.subr.bf16.mxu0 0
    %489 = vmatpush2.bf16.msra.mxu0 0
    %490 = vmatprep.mubr.bf16.mxu0 0
    %491 = vmatmul.mubr.bf16.gmra.mxu0 %v456
    %v492 = vpop.f32.mrf.mxu0
    %v493 = vadd.f32 %v401, %v492
    %v494 = vpop.f32.mrf.mxu0
    %v495 = vadd.f32 %v403, %v494
    %v496 = vpop.f32.mrf.mxu0
    %v497 = vpop.f32.mrf.mxu0
    %498 = vdwg.mxu0
    %v500 = vlaneseq
    %v501 = vshrl.u32 %v500, 7
    %v502 = vsub.s32 0, %v501
    %v503 = vrot.slane %v142, %v502
    %v504 = vlaneseq
    %v505 = vshrl.u32 %v504, 7
    %v506 = vsub.s32 1, %v505
    %v507 = vrot.slane %v142, %v506
    %v510 = vadd.f32 %v493, %v503
    %v511 = vadd.f32 %v495, %v507
    %v512 = vxor.u32 %v510, 2147483648
    %v513 = vxor.u32 %v511, 2147483648
    %v514 = vmul.f32 %v512, 1.442695
    %v515 = vpow.pop %v514
    %v516 = vmul.f32 %v513, 1.442695
    %v517 = vpow.pop %v516
    %v518 = vadd.f32 %v515, 1.0
    %v519 = vadd.f32 %v517, 1.0
    %v520 = vrcp.pop %v518
    %v521 = vmul.f32 1.0, %v520
    %v522 = vrcp.pop %v519
    %v523 = vmul.f32 1.0, %v522
    %v524 = vtanh.pop %v511
    %v525 = vmul.f32 %v521, 0.0
    %527 = vrot.lane.b32.xlu0 %v524, 64
    %v528 = vpop.permute.xlu0 %527
    %v530 = vmul.f32 %v521, %v528
    %532 = vrot.lane.b32.xlu0 %v530, 64
    %v533 = vpop.permute.xlu0 %532
    %v535 = vadd.f32 %v525, %v533
    %v536 = vtanh.pop %v535
    %538 = vrot.lane.b32.xlu0 %v536, 64
    %v539 = vpop.permute.xlu0 %538
    %v541 = vmul.f32 %v523, %v539
    %v544 = vunpack.c.l.s4 1966171168
    %v545 = vunpack.c.0.s8 %v544
    %v546 = vlaneseq
    %v547 = vshrl.u32 %v546, 7
    %v548 = vsub.s32 %v545, %v547
    %v549 = vrot.slane %v541, %v548
    %v550 = vcombine.high %v549, %v549
    %v552 = vunpack.c.l.s4 1966171168
    %v553 = vunpack.c.0.s8 %v552
    %v554 = vlaneseq
    %v555 = vshrl.u32 %v554, 7
    %v556 = vsub.s32 %v553, %v555
    %v557 = vrot.slane %v549, %v556
    %v559 = vunpack.c.l.s4 1966171168
    %v560 = vunpack.c.0.s8 %v559
    %v561 = vlaneseq
    %v562 = vshrl.u32 %v561, 7
    %v563 = vsub.s32 %v560, %v562
    %v564 = vrot.slane %v550, %v563
    %567 = vmatprep.subr.bf16.mxu0 0
    %568 = vmatpush1.bf16.msra.mxu0 0
    %569 = vmatprep.subr.bf16.mxu0 0
    %570 = vmatpush1.bf16.msra.mxu0 0
    %571 = vmatprep.subr.bf16.mxu0 0
    %572 = vmatpush1.bf16.msra.mxu0 0
    %573 = vmatprep.subr.bf16.mxu0 0
    %574 = vmatpush1.bf16.msra.mxu0 0
    %575 = vmatprep.subr.bf16.mxu0 %v182
    %576 = vmatpush1.bf16.msra.mxu0 %v181
    %577 = vmatprep.subr.bf16.mxu0 %v180
    %578 = vmatpush1.bf16.msra.mxu0 %v179
    %579 = vmatprep.subr.bf16.mxu0 %v178
    %580 = vmatpush1.bf16.msra.mxu0 %v177
    %581 = vmatprep.subr.bf16.mxu0 %v176
    %582 = vmatpush1.bf16.msra.mxu0 %v175
    %583 = vmatprep.subr.bf16.mxu0 0
    %584 = vmatpush2.bf16.msra.mxu0 0
    %585 = vmatprep.subr.bf16.mxu0 0
    %586 = vmatpush2.bf16.msra.mxu0 0
    %587 = vmatprep.subr.bf16.mxu0 0
    %588 = vmatpush2.bf16.msra.mxu0 0
    %589 = vmatprep.subr.bf16.mxu0 0
    %590 = vmatpush2.bf16.msra.mxu0 0
    %591 = vmatprep.subr.bf16.mxu0 0
    %592 = vmatpush2.bf16.msra.mxu0 0
    %593 = vmatprep.subr.bf16.mxu0 0
    %594 = vmatpush2.bf16.msra.mxu0 0
    %595 = vmatprep.subr.bf16.mxu0 0
    %596 = vmatpush2.bf16.msra.mxu0 0
    %597 = vmatprep.subr.bf16.mxu0 0
    %598 = vmatpush2.bf16.msra.mxu0 0
    %599 = vmatprep.mubr.bf16.mxu0 0
    %600 = vmatmul.mubr.bf16.gmra.mxu0 %v456
    %v601 = vpop.f32.mrf.mxu0
    %v602 = vadd.f32 0.0, %v601
    %v603 = vpop.f32.mrf.mxu0
    %v604 = vadd.f32 0.0, %v603
    %v605 = vpop.f32.mrf.mxu0
    %v606 = vpop.f32.mrf.mxu0
    %607 = vdwg.mxu0
    %v610 = vrot.slane %v602, 7
    %v611 = vrot.slane %v604, 7
    %v616 = vadd.f32 %v134, %v610
    %v617 = vadd.f32 %v136, %v611
    %v618 = vadd.f32 %v138, %v602
    %v619 = vadd.f32 %v140, %v604
    %v620 = vxor.u32 %v616, 2147483648
    %v621 = vxor.u32 %v617, 2147483648
    %v622 = vxor.u32 %v618, 2147483648
    %v623 = vxor.u32 %v619, 2147483648
    %v624 = vmul.f32 %v620, 1.442695
    %v625 = vpow.pop %v624
    %v626 = vmul.f32 %v621, 1.442695
    %v627 = vpow.pop %v626
    %v628 = vmul.f32 %v622, 1.442695
    %v629 = vpow.pop %v628
    %v630 = vmul.f32 %v623, 1.442695
    %v631 = vpow.pop %v630
    %v632 = vadd.f32 %v625, 1.0
    %v633 = vadd.f32 %v627, 1.0
    %v634 = vadd.f32 %v629, 1.0
    %v635 = vadd.f32 %v631, 1.0
    %v636 = vrcp.pop %v632
    %v637 = vmul.f32 1.0, %v636
    %v638 = vrcp.pop %v633
    %v639 = vmul.f32 1.0, %v638
    %v640 = vrcp.pop %v634
    %v641 = vmul.f32 1.0, %v640
    %v642 = vrcp.pop %v635
    %v643 = vmul.f32 1.0, %v642
    %v644 = vtanh.pop %v617
    %v645 = vtanh.pop %v619
    %v648 = vrot.slane %v294, 7
    %v649 = vrot.slane %v295, 7
    %v652 = vmul.f32 %v637, %v648
    %v653 = vmul.f32 %v641, %v649
    %656 = vrot.lane.b32.xlu0 %v644, 64
    %v657 = vpop.permute.xlu0 %656
    %658 = vrot.lane.b32.xlu0 %v645, 64
    %v659 = vpop.permute.xlu0 %658
    %v662 = vmul.f32 %v637, %v657
    %v663 = vmul.f32 %v641, %v659
    %666 = vrot.lane.b32.xlu0 %v662, 64
    %v667 = vpop.permute.xlu0 %666
    %668 = vrot.lane.b32.xlu0 %v663, 64
    %v669 = vpop.permute.xlu0 %668
    %v672 = vadd.f32 %v652, %v667
    %v673 = vadd.f32 %v653, %v669
    %v674 = vtanh.pop %v672
    %v675 = vtanh.pop %v673
    %678 = vrot.lane.b32.xlu0 %v674, 64
    %v679 = vpop.permute.xlu0 %678
    %680 = vrot.lane.b32.xlu0 %v675, 64
    %v681 = vpop.permute.xlu0 %680
    %v684 = vmul.f32 %v639, %v679
    %v685 = vmul.f32 %v643, %v681
    %v686 = vpack.c.bf16 %v684, %v684
    %v687 = vpack.c.bf16 %v685, %v685
    %v688 = vpack.c.bf16 %v541, %v541
    %v690 = vsel %vm191, %v688, 0
    %692 = vmatprep.subr.bf16.mxu0 0
    %693 = vmatpush1.bf16.msra.mxu0 0
    %694 = vmatprep.subr.bf16.mxu0 0
    %695 = vmatpush1.bf16.msra.mxu0 0
    %696 = vmatprep.subr.bf16.mxu0 0
    %697 = vmatpush1.bf16.msra.mxu0 0
    %698 = vmatprep.subr.bf16.mxu0 0
    %699 = vmatpush1.bf16.msra.mxu0 0
    %700 = vmatprep.subr.bf16.mxu0 %v357
    %701 = vmatpush1.bf16.msra.mxu0 %v356
    %702 = vmatprep.subr.bf16.mxu0 %v355
    %703 = vmatpush1.bf16.msra.mxu0 %v354
    %704 = vmatprep.subr.bf16.mxu0 %v353
    %705 = vmatpush1.bf16.msra.mxu0 %v352
    %706 = vmatprep.subr.bf16.mxu0 %v351
    %707 = vmatpush1.bf16.msra.mxu0 %v350
    %708 = vmatprep.subr.bf16.mxu0 0
    %709 = vmatpush2.bf16.msra.mxu0 0
    %710 = vmatprep.subr.bf16.mxu0 0
    %711 = vmatpush2.bf16.msra.mxu0 0
    %712 = vmatprep.subr.bf16.mxu0 0
    %713 = vmatpush2.bf16.msra.mxu0 0
    %714 = vmatprep.subr.bf16.mxu0 0
    %715 = vmatpush2.bf16.msra.mxu0 0
    %716 = vmatprep.subr.bf16.mxu0 0
    %717 = vmatpush2.bf16.msra.mxu0 0
    %718 = vmatprep.subr.bf16.mxu0 0
    %719 = vmatpush2.bf16.msra.mxu0 0
    %720 = vmatprep.subr.bf16.mxu0 0
    %721 = vmatpush2.bf16.msra.mxu0 0
    %722 = vmatprep.subr.bf16.mxu0 0
    %723 = vmatpush2.bf16.msra.mxu0 0
    %724 = vmatprep.mubr.bf16.mxu0 0
    %725 = vmatmul.mubr.bf16.gmra.mxu0 %v690
    %v726 = vpop.f32.mrf.mxu0
    %v727 = vadd.f32 0.0, %v726
    %v728 = vpop.f32.mrf.mxu0
    %v729 = vadd.f32 0.0, %v728
    %v730 = vpop.f32.mrf.mxu0
    %v731 = vpop.f32.mrf.mxu0
    %732 = vdwg.mxu0
    %v735 = vunpack.c.l.b16 %v686
    %v736 = vunpack.c.l.b16 %v687
    %v737 = vrot.slane %v735, 1
    %v738 = vsel %vm412, %v736, %v737
    %v739 = vpack.c.b16 %v738, %v738
    %v741 = vsel %vm191, %v739, 0
    %743 = vmatprep.subr.bf16.mxu0 0
    %744 = vmatpush1.bf16.msra.mxu0 0
    %745 = vmatprep.subr.bf16.mxu0 0
    %746 = vmatpush1.bf16.msra.mxu0 0
    %747 = vmatprep.subr.bf16.mxu0 0
    %748 = vmatpush1.bf16.msra.mxu0 0
    %749 = vmatprep.subr.bf16.mxu0 0
    %750 = vmatpush1.bf16.msra.mxu0 0
    %751 = vmatprep.subr.bf16.mxu0 %v446
    %752 = vmatpush1.bf16.msra.mxu0 %v445
    %753 = vmatprep.subr.bf16.mxu0 %v444
    %754 = vmatpush1.bf16.msra.mxu0 %v443
    %755 = vmatprep.subr.bf16.mxu0 %v442
    %756 = vmatpush1.bf16.msra.mxu0 %v441
    %757 = vmatprep.subr.bf16.mxu0 %v440
    %758 = vmatpush1.bf16.msra.mxu0 %v439
    %759 = vmatprep.subr.bf16.mxu0 0
    %760 = vmatpush2.bf16.msra.mxu0 0
    %761 = vmatprep.subr.bf16.mxu0 0
    %762 = vmatpush2.bf16.msra.mxu0 0
    %763 = vmatprep.subr.bf16.mxu0 0
    %764 = vmatpush2.bf16.msra.mxu0 0
    %765 = vmatprep.subr.bf16.mxu0 0
    %766 = vmatpush2.bf16.msra.mxu0 0
    %767 = vmatprep.subr.bf16.mxu0 0
    %768 = vmatpush2.bf16.msra.mxu0 0
    %769 = vmatprep.subr.bf16.mxu0 0
    %770 = vmatpush2.bf16.msra.mxu0 0
    %771 = vmatprep.subr.bf16.mxu0 0
    %772 = vmatpush2.bf16.msra.mxu0 0
    %773 = vmatprep.subr.bf16.mxu0 0
    %774 = vmatpush2.bf16.msra.mxu0 0
    %775 = vmatprep.mubr.bf16.mxu0 0
    %776 = vmatmul.mubr.bf16.gmra.mxu0 %v741
    %v777 = vpop.f32.mrf.mxu0
    %v778 = vadd.f32 %v727, %v777
    %v779 = vpop.f32.mrf.mxu0
    %v780 = vadd.f32 %v729, %v779
    %v781 = vpop.f32.mrf.mxu0
    %v782 = vpop.f32.mrf.mxu0
    %783 = vdwg.mxu0
    %v784 = vadd.f32 %v778, %v503
    %v785 = vadd.f32 %v780, %v507
    %v786 = vxor.u32 %v784, 2147483648
    %v787 = vxor.u32 %v785, 2147483648
    %v788 = vmul.f32 %v786, 1.442695
    %v789 = vpow.pop %v788
    %v790 = vmul.f32 %v787, 1.442695
    %v791 = vpow.pop %v790
    %v792 = vadd.f32 %v789, 1.0
    %v793 = vadd.f32 %v791, 1.0
    %v794 = vrcp.pop %v792
    %v795 = vmul.f32 1.0, %v794
    %v796 = vrcp.pop %v793
    %v797 = vmul.f32 1.0, %v796
    %v798 = vtanh.pop %v785
    %v799 = vmul.f32 %v795, %v535
    %801 = vrot.lane.b32.xlu0 %v798, 64
    %v802 = vpop.permute.xlu0 %801
    %v804 = vmul.f32 %v795, %v802
    %806 = vrot.lane.b32.xlu0 %v804, 64
    %v807 = vpop.permute.xlu0 %806
    %v809 = vadd.f32 %v799, %v807
    %v810 = vtanh.pop %v809
    %812 = vrot.lane.b32.xlu0 %v810, 64
    %v813 = vpop.permute.xlu0 %812
    %v815 = vmul.f32 %v797, %v813
    %v818 = vunpack.c.l.s4 1966171168
    %v819 = vunpack.c.0.s8 %v818
    %v820 = vlaneseq
    %v821 = vshrl.u32 %v820, 7
    %v822 = vsub.s32 %v819, %v821
    %v823 = vrot.slane %v815, %v822
    %v824 = vcombine.high %v823, %v823
    %v826 = vunpack.c.l.s4 1966171168
    %v827 = vunpack.c.0.s8 %v826
    %v828 = vlaneseq
    %v829 = vshrl.u32 %v828, 7
    %v830 = vsub.s32 %v827, %v829
    %v831 = vrot.slane %v823, %v830
    %v833 = vunpack.c.l.s4 1966171168
    %v834 = vunpack.c.0.s8 %v833
    %v835 = vlaneseq
    %v836 = vshrl.u32 %v835, 7
    %v837 = vsub.s32 %v834, %v836
    %v838 = vrot.slane %v824, %v837
    %839 = vmatprep.subr.bf16.mxu0 0
    %840 = vmatpush1.bf16.msra.mxu0 0
    %841 = vmatprep.subr.bf16.mxu0 0
    %842 = vmatpush1.bf16.msra.mxu0 0
    %843 = vmatprep.subr.bf16.mxu0 0
    %844 = vmatpush1.bf16.msra.mxu0 0
    %845 = vmatprep.subr.bf16.mxu0 0
    %846 = vmatpush1.bf16.msra.mxu0 0
    %847 = vmatprep.subr.bf16.mxu0 %v182
    %848 = vmatpush1.bf16.msra.mxu0 %v181
    %849 = vmatprep.subr.bf16.mxu0 %v180
    %850 = vmatpush1.bf16.msra.mxu0 %v179
    %851 = vmatprep.subr.bf16.mxu0 %v178
    %852 = vmatpush1.bf16.msra.mxu0 %v177
    %853 = vmatprep.subr.bf16.mxu0 %v176
    %854 = vmatpush1.bf16.msra.mxu0 %v175
    %855 = vmatprep.subr.bf16.mxu0 0
    %856 = vmatpush2.bf16.msra.mxu0 0
    %857 = vmatprep.subr.bf16.mxu0 0
    %858 = vmatpush2.bf16.msra.mxu0 0
    %859 = vmatprep.subr.bf16.mxu0 0
    %860 = vmatpush2.bf16.msra.mxu0 0
    %861 = vmatprep.subr.bf16.mxu0 0
    %862 = vmatpush2.bf16.msra.mxu0 0
    %863 = vmatprep.subr.bf16.mxu0 0
    %864 = vmatpush2.bf16.msra.mxu0 0
    %865 = vmatprep.subr.bf16.mxu0 0
    %866 = vmatpush2.bf16.msra.mxu0 0
    %867 = vmatprep.subr.bf16.mxu0 0
    %868 = vmatpush2.bf16.msra.mxu0 0
    %869 = vmatprep.subr.bf16.mxu0 0
    %870 = vmatpush2.bf16.msra.mxu0 0
    %871 = vmatprep.mubr.bf16.mxu0 0
    %872 = vmatmul.mubr.bf16.gmra.mxu0 %v741
    %v873 = vpop.f32.mrf.mxu0
    %v874 = vadd.f32 0.0, %v873
    %v875 = vpop.f32.mrf.mxu0
    %v876 = vadd.f32 0.0, %v875
    %v877 = vpop.f32.mrf.mxu0
    %v878 = vpop.f32.mrf.mxu0
    %879 = vdwg.mxu0
    %v882 = vrot.slane %v874, 6
    %v883 = vrot.slane %v876, 6
    %v884 = vrot.slane %v874, 7
    %v885 = vrot.slane %v876, 7
    %v890 = vadd.f32 %v134, %v882
    %v891 = vadd.f32 %v136, %v883
    %v892 = vadd.f32 %v138, %v884
    %v893 = vadd.f32 %v140, %v885
    %v894 = vxor.u32 %v890, 2147483648
    %v895 = vxor.u32 %v891, 2147483648
    %v896 = vxor.u32 %v892, 2147483648
    %v897 = vxor.u32 %v893, 2147483648
    %v898 = vmul.f32 %v894, 1.442695
    %v899 = vpow.pop %v898
    %v900 = vmul.f32 %v895, 1.442695
    %v901 = vpow.pop %v900
    %v902 = vmul.f32 %v896, 1.442695
    %v903 = vpow.pop %v902
    %v904 = vmul.f32 %v897, 1.442695
    %v905 = vpow.pop %v904
    %v906 = vadd.f32 %v899, 1.0
    %v907 = vadd.f32 %v901, 1.0
    %v908 = vadd.f32 %v903, 1.0
    %v909 = vadd.f32 %v905, 1.0
    %v910 = vrcp.pop %v906
    %v911 = vmul.f32 1.0, %v910
    %v912 = vrcp.pop %v907
    %v913 = vmul.f32 1.0, %v912
    %v914 = vrcp.pop %v908
    %v915 = vmul.f32 1.0, %v914
    %v916 = vrcp.pop %v909
    %v917 = vmul.f32 1.0, %v916
    %v918 = vtanh.pop %v891
    %v919 = vtanh.pop %v893
    %v922 = vrot.slane %v672, 7
    %v923 = vrot.slane %v673, 7
    %v926 = vmul.f32 %v911, %v922
    %v927 = vmul.f32 %v915, %v923
    %930 = vrot.lane.b32.xlu0 %v918, 64
    %v931 = vpop.permute.xlu0 %930
    %932 = vrot.lane.b32.xlu0 %v919, 64
    %v933 = vpop.permute.xlu0 %932
    %v936 = vmul.f32 %v911, %v931
    %v937 = vmul.f32 %v915, %v933
    %940 = vrot.lane.b32.xlu0 %v936, 64
    %v941 = vpop.permute.xlu0 %940
    %942 = vrot.lane.b32.xlu0 %v937, 64
    %v943 = vpop.permute.xlu0 %942
    %v946 = vadd.f32 %v926, %v941
    %v947 = vadd.f32 %v927, %v943
    %v948 = vtanh.pop %v946
    %v949 = vtanh.pop %v947
    %952 = vrot.lane.b32.xlu0 %v948, 64
    %v953 = vpop.permute.xlu0 %952
    %954 = vrot.lane.b32.xlu0 %v949, 64
    %v955 = vpop.permute.xlu0 %954
    %v958 = vmul.f32 %v913, %v953
    %v959 = vmul.f32 %v917, %v955
    %v960 = vpack.c.bf16 %v958, %v958
    %v961 = vpack.c.bf16 %v959, %v959
    %v962 = vpack.c.bf16 %v815, %v815
    %v964 = vsel %vm191, %v962, 0
    %966 = vmatprep.subr.bf16.mxu0 0
    %967 = vmatpush1.bf16.msra.mxu0 0
    %968 = vmatprep.subr.bf16.mxu0 0
    %969 = vmatpush1.bf16.msra.mxu0 0
    %970 = vmatprep.subr.bf16.mxu0 0
    %971 = vmatpush1.bf16.msra.mxu0 0
    %972 = vmatprep.subr.bf16.mxu0 0
    %973 = vmatpush1.bf16.msra.mxu0 0
    %974 = vmatprep.subr.bf16.mxu0 %v357
    %975 = vmatpush1.bf16.msra.mxu0 %v356
    %976 = vmatprep.subr.bf16.mxu0 %v355
    %977 = vmatpush1.bf16.msra.mxu0 %v354
    %978 = vmatprep.subr.bf16.mxu0 %v353
    %979 = vmatpush1.bf16.msra.mxu0 %v352
    %980 = vmatprep.subr.bf16.mxu0 %v351
    %981 = vmatpush1.bf16.msra.mxu0 %v350
    %982 = vmatprep.subr.bf16.mxu0 0
    %983 = vmatpush2.bf16.msra.mxu0 0
    %984 = vmatprep.subr.bf16.mxu0 0
    %985 = vmatpush2.bf16.msra.mxu0 0
    %986 = vmatprep.subr.bf16.mxu0 0
    %987 = vmatpush2.bf16.msra.mxu0 0
    %988 = vmatprep.subr.bf16.mxu0 0
    %989 = vmatpush2.bf16.msra.mxu0 0
    %990 = vmatprep.subr.bf16.mxu0 0
    %991 = vmatpush2.bf16.msra.mxu0 0
    %992 = vmatprep.subr.bf16.mxu0 0
    %993 = vmatpush2.bf16.msra.mxu0 0
    %994 = vmatprep.subr.bf16.mxu0 0
    %995 = vmatpush2.bf16.msra.mxu0 0
    %996 = vmatprep.subr.bf16.mxu0 0
    %997 = vmatpush2.bf16.msra.mxu0 0
    %998 = vmatprep.mubr.bf16.mxu0 0
    %999 = vmatmul.mubr.bf16.gmra.mxu0 %v964
    %v1000 = vpop.f32.mrf.mxu0
    %v1001 = vadd.f32 0.0, %v1000
    %v1002 = vpop.f32.mrf.mxu0
    %v1003 = vadd.f32 0.0, %v1002
    %v1004 = vpop.f32.mrf.mxu0
    %v1005 = vpop.f32.mrf.mxu0
    %1006 = vdwg.mxu0
    %v1009 = vunpack.c.l.b16 %v960
    %v1010 = vunpack.c.l.b16 %v961
    %v1011 = vrot.slane %v1009, 2
    %v1012 = vrot.slane %v1010, 1
    %v1013 = vsel %vm412, %v1012, %v1011
    %v1014 = vpack.c.b16 %v1013, %v1013
    %v1016 = vsel %vm191, %v1014, 0
    %1018 = vmatprep.subr.bf16.mxu0 0
    %1019 = vmatpush1.bf16.msra.mxu0 0
    %1020 = vmatprep.subr.bf16.mxu0 0
    %1021 = vmatpush1.bf16.msra.mxu0 0
    %1022 = vmatprep.subr.bf16.mxu0 0
    %1023 = vmatpush1.bf16.msra.mxu0 0
    %1024 = vmatprep.subr.bf16.mxu0 0
    %1025 = vmatpush1.bf16.msra.mxu0 0
    %1026 = vmatprep.subr.bf16.mxu0 %v446
    %1027 = vmatpush1.bf16.msra.mxu0 %v445
    %1028 = vmatprep.subr.bf16.mxu0 %v444
    %1029 = vmatpush1.bf16.msra.mxu0 %v443
    %1030 = vmatprep.subr.bf16.mxu0 %v442
    %1031 = vmatpush1.bf16.msra.mxu0 %v441
    %1032 = vmatprep.subr.bf16.mxu0 %v440
    %1033 = vmatpush1.bf16.msra.mxu0 %v439
    %1034 = vmatprep.subr.bf16.mxu0 0
    %1035 = vmatpush2.bf16.msra.mxu0 0
    %1036 = vmatprep.subr.bf16.mxu0 0
    %1037 = vmatpush2.bf16.msra.mxu0 0
    %1038 = vmatprep.subr.bf16.mxu0 0
    %1039 = vmatpush2.bf16.msra.mxu0 0
    %1040 = vmatprep.subr.bf16.mxu0 0
    %1041 = vmatpush2.bf16.msra.mxu0 0
    %1042 = vmatprep.subr.bf16.mxu0 0
    %1043 = vmatpush2.bf16.msra.mxu0 0
    %1044 = vmatprep.subr.bf16.mxu0 0
    %1045 = vmatpush2.bf16.msra.mxu0 0
    %1046 = vmatprep.subr.bf16.mxu0 0
    %1047 = vmatpush2.bf16.msra.mxu0 0
    %1048 = vmatprep.subr.bf16.mxu0 0
    %1049 = vmatpush2.bf16.msra.mxu0 0
    %1050 = vmatprep.mubr.bf16.mxu0 0
    %1051 = vmatmul.mubr.bf16.gmra.mxu0 %v1016
    %v1052 = vpop.f32.mrf.mxu0
    %v1053 = vadd.f32 %v1001, %v1052
    %v1054 = vpop.f32.mrf.mxu0
    %v1055 = vadd.f32 %v1003, %v1054
    %v1056 = vpop.f32.mrf.mxu0
    %v1057 = vpop.f32.mrf.mxu0
    %1058 = vdwg.mxu0
    %v1059 = vadd.f32 %v1053, %v503
    %v1060 = vadd.f32 %v1055, %v507
    %v1061 = vxor.u32 %v1059, 2147483648
    %v1062 = vxor.u32 %v1060, 2147483648
    %v1063 = vmul.f32 %v1061, 1.442695
    %v1064 = vpow.pop %v1063
    %v1065 = vmul.f32 %v1062, 1.442695
    %v1066 = vpow.pop %v1065
    %v1067 = vadd.f32 %v1064, 1.0
    %v1068 = vadd.f32 %v1066, 1.0
    %v1069 = vrcp.pop %v1067
    %v1070 = vmul.f32 1.0, %v1069
    %v1071 = vrcp.pop %v1068
    %v1072 = vmul.f32 1.0, %v1071
    %v1073 = vtanh.pop %v1060
    %v1074 = vmul.f32 %v1070, %v809
    %1076 = vrot.lane.b32.xlu0 %v1073, 64
    %v1077 = vpop.permute.xlu0 %1076
    %v1079 = vmul.f32 %v1070, %v1077
    %1081 = vrot.lane.b32.xlu0 %v1079, 64
    %v1082 = vpop.permute.xlu0 %1081
    %v1084 = vadd.f32 %v1074, %v1082
    %v1085 = vtanh.pop %v1084
    %1087 = vrot.lane.b32.xlu0 %v1085, 64
    %v1088 = vpop.permute.xlu0 %1087
    %v1090 = vmul.f32 %v1072, %v1088
    %v1093 = vunpack.c.l.s4 1966171168
    %v1094 = vunpack.c.0.s8 %v1093
    %v1095 = vlaneseq
    %v1096 = vshrl.u32 %v1095, 7
    %v1097 = vsub.s32 %v1094, %v1096
    %v1098 = vrot.slane %v1090, %v1097
    %v1099 = vcombine.high %v1098, %v1098
    %v1101 = vunpack.c.l.s4 1966171168
    %v1102 = vunpack.c.0.s8 %v1101
    %v1103 = vlaneseq
    %v1104 = vshrl.u32 %v1103, 7
    %v1105 = vsub.s32 %v1102, %v1104
    %v1106 = vrot.slane %v1098, %v1105
    %v1108 = vunpack.c.l.s4 1966171168
    %v1109 = vunpack.c.0.s8 %v1108
    %v1110 = vlaneseq
    %v1111 = vshrl.u32 %v1110, 7
    %v1112 = vsub.s32 %v1109, %v1111
    %v1113 = vrot.slane %v1099, %v1112
    %1114 = vmatprep.subr.bf16.mxu0 0
    %1115 = vmatpush1.bf16.msra.mxu0 0
    %1116 = vmatprep.subr.bf16.mxu0 0
    %1117 = vmatpush1.bf16.msra.mxu0 0
    %1118 = vmatprep.subr.bf16.mxu0 0
    %1119 = vmatpush1.bf16.msra.mxu0 0
    %1120 = vmatprep.subr.bf16.mxu0 0
    %1121 = vmatpush1.bf16.msra.mxu0 0
    %1122 = vmatprep.subr.bf16.mxu0 %v182
    %1123 = vmatpush1.bf16.msra.mxu0 %v181
    %1124 = vmatprep.subr.bf16.mxu0 %v180
    %1125 = vmatpush1.bf16.msra.mxu0 %v179
    %1126 = vmatprep.subr.bf16.mxu0 %v178
    %1127 = vmatpush1.bf16.msra.mxu0 %v177
    %1128 = vmatprep.subr.bf16.mxu0 %v176
    %1129 = vmatpush1.bf16.msra.mxu0 %v175
    %1130 = vmatprep.subr.bf16.mxu0 0
    %1131 = vmatpush2.bf16.msra.mxu0 0
    %1132 = vmatprep.subr.bf16.mxu0 0
    %1133 = vmatpush2.bf16.msra.mxu0 0
    %1134 = vmatprep.subr.bf16.mxu0 0
    %1135 = vmatpush2.bf16.msra.mxu0 0
    %1136 = vmatprep.subr.bf16.mxu0 0
    %1137 = vmatpush2.bf16.msra.mxu0 0
    %1138 = vmatprep.subr.bf16.mxu0 0
    %1139 = vmatpush2.bf16.msra.mxu0 0
    %1140 = vmatprep.subr.bf16.mxu0 0
    %1141 = vmatpush2.bf16.msra.mxu0 0
    %1142 = vmatprep.subr.bf16.mxu0 0
    %1143 = vmatpush2.bf16.msra.mxu0 0
    %1144 = vmatprep.subr.bf16.mxu0 0
    %1145 = vmatpush2.bf16.msra.mxu0 0
    %1146 = vmatprep.mubr.bf16.mxu0 0
    %1147 = vmatmul.mubr.bf16.gmra.mxu0 %v1016
    %v1148 = vpop.f32.mrf.mxu0
    %v1149 = vadd.f32 0.0, %v1148
    %v1150 = vpop.f32.mrf.mxu0
    %v1151 = vadd.f32 0.0, %v1150
    %v1152 = vpop.f32.mrf.mxu0
    %v1153 = vpop.f32.mrf.mxu0
    %1154 = vdwg.mxu0
    %v1157 = vrot.slane %v1149, 5
    %v1158 = vrot.slane %v1151, 5
    %v1159 = vrot.slane %v1149, 6
    %v1160 = vrot.slane %v1151, 6
    %v1165 = vadd.f32 %v134, %v1157
    %v1166 = vadd.f32 %v136, %v1158
    %v1167 = vadd.f32 %v138, %v1159
    %v1168 = vadd.f32 %v140, %v1160
    %v1169 = vxor.u32 %v1165, 2147483648
    %v1170 = vxor.u32 %v1166, 2147483648
    %v1171 = vxor.u32 %v1167, 2147483648
    %v1172 = vxor.u32 %v1168, 2147483648
    %v1173 = vmul.f32 %v1169, 1.442695
    %v1174 = vpow.pop %v1173
    %v1175 = vmul.f32 %v1170, 1.442695
    %v1176 = vpow.pop %v1175
    %v1177 = vmul.f32 %v1171, 1.442695
    %v1178 = vpow.pop %v1177
    %v1179 = vmul.f32 %v1172, 1.442695
    %v1180 = vpow.pop %v1179
    %v1181 = vadd.f32 %v1174, 1.0
    %v1182 = vadd.f32 %v1176, 1.0
    %v1183 = vadd.f32 %v1178, 1.0
    %v1184 = vadd.f32 %v1180, 1.0
    %v1185 = vrcp.pop %v1181
    %v1186 = vmul.f32 1.0, %v1185
    %v1187 = vrcp.pop %v1182
    %v1188 = vmul.f32 1.0, %v1187
    %v1189 = vrcp.pop %v1183
    %v1190 = vmul.f32 1.0, %v1189
    %v1191 = vrcp.pop %v1184
    %v1192 = vmul.f32 1.0, %v1191
    %v1193 = vtanh.pop %v1166
    %v1194 = vtanh.pop %v1168
    %v1197 = vrot.slane %v946, 7
    %v1198 = vrot.slane %v947, 7
    %v1201 = vmul.f32 %v1186, %v1197
    %v1202 = vmul.f32 %v1190, %v1198
    %1205 = vrot.lane.b32.xlu0 %v1193, 64
    %v1206 = vpop.permute.xlu0 %1205
    %1207 = vrot.lane.b32.xlu0 %v1194, 64
    %v1208 = vpop.permute.xlu0 %1207
    %v1211 = vmul.f32 %v1186, %v1206
    %v1212 = vmul.f32 %v1190, %v1208
    %1215 = vrot.lane.b32.xlu0 %v1211, 64
    %v1216 = vpop.permute.xlu0 %1215
    %1217 = vrot.lane.b32.xlu0 %v1212, 64
    %v1218 = vpop.permute.xlu0 %1217
    %v1221 = vadd.f32 %v1201, %v1216
    %v1222 = vadd.f32 %v1202, %v1218
    %v1223 = vtanh.pop %v1221
    %v1224 = vtanh.pop %v1222
    %1227 = vrot.lane.b32.xlu0 %v1223, 64
    %v1228 = vpop.permute.xlu0 %1227
    %1229 = vrot.lane.b32.xlu0 %v1224, 64
    %v1230 = vpop.permute.xlu0 %1229
    %v1233 = vmul.f32 %v1188, %v1228
    %v1234 = vmul.f32 %v1192, %v1230
    %v1235 = vpack.c.bf16 %v1233, %v1233
    %v1236 = vpack.c.bf16 %v1234, %v1234
    %v1237 = vpack.c.bf16 %v1090, %v1090
    %v1239 = vsel %vm191, %v1237, 0
    %1241 = vmatprep.subr.bf16.mxu0 0
    %1242 = vmatpush1.bf16.msra.mxu0 0
    %1243 = vmatprep.subr.bf16.mxu0 0
    %1244 = vmatpush1.bf16.msra.mxu0 0
    %1245 = vmatprep.subr.bf16.mxu0 0
    %1246 = vmatpush1.bf16.msra.mxu0 0
    %1247 = vmatprep.subr.bf16.mxu0 0
    %1248 = vmatpush1.bf16.msra.mxu0 0
    %1249 = vmatprep.subr.bf16.mxu0 %v357
    %1250 = vmatpush1.bf16.msra.mxu0 %v356
    %1251 = vmatprep.subr.bf16.mxu0 %v355
    %1252 = vmatpush1.bf16.msra.mxu0 %v354
    %1253 = vmatprep.subr.bf16.mxu0 %v353
    %1254 = vmatpush1.bf16.msra.mxu0 %v352
    %1255 = vmatprep.subr.bf16.mxu0 %v351
    %1256 = vmatpush1.bf16.msra.mxu0 %v350
    %1257 = vmatprep.subr.bf16.mxu0 0
    %1258 = vmatpush2.bf16.msra.mxu0 0
    %1259 = vmatprep.subr.bf16.mxu0 0
    %1260 = vmatpush2.bf16.msra.mxu0 0
    %1261 = vmatprep.subr.bf16.mxu0 0
    %1262 = vmatpush2.bf16.msra.mxu0 0
    %1263 = vmatprep.subr.bf16.mxu0 0
    %1264 = vmatpush2.bf16.msra.mxu0 0
    %1265 = vmatprep.subr.bf16.mxu0 0
    %1266 = vmatpush2.bf16.msra.mxu0 0
    %1267 = vmatprep.subr.bf16.mxu0 0
    %1268 = vmatpush2.bf16.msra.mxu0 0
    %1269 = vmatprep.subr.bf16.mxu0 0
    %1270 = vmatpush2.bf16.msra.mxu0 0
    %1271 = vmatprep.subr.bf16.mxu0 0
    %1272 = vmatpush2.bf16.msra.mxu0 0
    %1273 = vmatprep.mubr.bf16.mxu0 0
    %1274 = vmatmul.mubr.bf16.gmra.mxu0 %v1239
    %v1275 = vpop.f32.mrf.mxu0
    %v1276 = vadd.f32 0.0, %v1275
    %v1277 = vpop.f32.mrf.mxu0
    %v1278 = vadd.f32 0.0, %v1277
    %v1279 = vpop.f32.mrf.mxu0
    %v1280 = vpop.f32.mrf.mxu0
    %1281 = vdwg.mxu0
    %v1284 = vunpack.c.l.b16 %v1235
    %v1285 = vunpack.c.l.b16 %v1236
    %v1286 = vrot.slane %v1284, 3
    %v1287 = vrot.slane %v1285, 2
    %v1288 = vsel %vm412, %v1287, %v1286
    %v1289 = vpack.c.b16 %v1288, %v1288
    %v1291 = vsel %vm191, %v1289, 0
    %1293 = vmatprep.subr.bf16.mxu0 0
    %1294 = vmatpush1.bf16.msra.mxu0 0
    %1295 = vmatprep.subr.bf16.mxu0 0
    %1296 = vmatpush1.bf16.msra.mxu0 0
    %1297 = vmatprep.subr.bf16.mxu0 0
    %1298 = vmatpush1.bf16.msra.mxu0 0
    %1299 = vmatprep.subr.bf16.mxu0 0
    %1300 = vmatpush1.bf16.msra.mxu0 0
    %1301 = vmatprep.subr.bf16.mxu0 %v446
    %1302 = vmatpush1.bf16.msra.mxu0 %v445
    %1303 = vmatprep.subr.bf16.mxu0 %v444
    %1304 = vmatpush1.bf16.msra.mxu0 %v443
    %1305 = vmatprep.subr.bf16.mxu0 %v442
    %1306 = vmatpush1.bf16.msra.mxu0 %v441
    %1307 = vmatprep.subr.bf16.mxu0 %v440
    %1308 = vmatpush1.bf16.msra.mxu0 %v439
    %1309 = vmatprep.subr.bf16.mxu0 0
    %1310 = vmatpush2.bf16.msra.mxu0 0
    %1311 = vmatprep.subr.bf16.mxu0 0
    %1312 = vmatpush2.bf16.msra.mxu0 0
    %1313 = vmatprep.subr.bf16.mxu0 0
    %1314 = vmatpush2.bf16.msra.mxu0 0
    %1315 = vmatprep.subr.bf16.mxu0 0
    %1316 = vmatpush2.bf16.msra.mxu0 0
    %1317 = vmatprep.subr.bf16.mxu0 0
    %1318 = vmatpush2.bf16.msra.mxu0 0
    %1319 = vmatprep.subr.bf16.mxu0 0
    %1320 = vmatpush2.bf16.msra.mxu0 0
    %1321 = vmatprep.subr.bf16.mxu0 0
    %1322 = vmatpush2.bf16.msra.mxu0 0
    %1323 = vmatprep.subr.bf16.mxu0 0
    %1324 = vmatpush2.bf16.msra.mxu0 0
    %1325 = vmatprep.mubr.bf16.mxu0 0
    %1326 = vmatmul.mubr.bf16.gmra.mxu0 %v1291
    %v1327 = vpop.f32.mrf.mxu0
    %v1328 = vadd.f32 %v1276, %v1327
    %v1329 = vpop.f32.mrf.mxu0
    %v1330 = vadd.f32 %v1278, %v1329
    %v1331 = vpop.f32.mrf.mxu0
    %v1332 = vpop.f32.mrf.mxu0
    %1333 = vdwg.mxu0
    %v1334 = vadd.f32 %v1328, %v503
    %v1335 = vadd.f32 %v1330, %v507
    %v1336 = vxor.u32 %v1334, 2147483648
    %v1337 = vxor.u32 %v1335, 2147483648
    %v1338 = vmul.f32 %v1336, 1.442695
    %v1339 = vpow.pop %v1338
    %v1340 = vmul.f32 %v1337, 1.442695
    %v1341 = vpow.pop %v1340
    %v1342 = vadd.f32 %v1339, 1.0
    %v1343 = vadd.f32 %v1341, 1.0
    %v1344 = vrcp.pop %v1342
    %v1345 = vmul.f32 1.0, %v1344
    %v1346 = vrcp.pop %v1343
    %v1347 = vmul.f32 1.0, %v1346
    %v1348 = vtanh.pop %v1335
    %v1349 = vmul.f32 %v1345, %v1084
    %1351 = vrot.lane.b32.xlu0 %v1348, 64
    %v1352 = vpop.permute.xlu0 %1351
    %v1354 = vmul.f32 %v1345, %v1352
    %1356 = vrot.lane.b32.xlu0 %v1354, 64
    %v1357 = vpop.permute.xlu0 %1356
    %v1359 = vadd.f32 %v1349, %v1357
    %v1360 = vtanh.pop %v1359
    %1362 = vrot.lane.b32.xlu0 %v1360, 64
    %v1363 = vpop.permute.xlu0 %1362
    %v1365 = vmul.f32 %v1347, %v1363
    %v1368 = vunpack.c.l.s4 1966171168
    %v1369 = vunpack.c.0.s8 %v1368
    %v1370 = vlaneseq
    %v1371 = vshrl.u32 %v1370, 7
    %v1372 = vsub.s32 %v1369, %v1371
    %v1373 = vrot.slane %v1365, %v1372
    %v1374 = vcombine.high %v1373, %v1373
    %v1376 = vunpack.c.l.s4 1966171168
    %v1377 = vunpack.c.0.s8 %v1376
    %v1378 = vlaneseq
    %v1379 = vshrl.u32 %v1378, 7
    %v1380 = vsub.s32 %v1377, %v1379
    %v1381 = vrot.slane %v1373, %v1380
    %v1383 = vunpack.c.l.s4 1966171168
    %v1384 = vunpack.c.0.s8 %v1383
    %v1385 = vlaneseq
    %v1386 = vshrl.u32 %v1385, 7
    %v1387 = vsub.s32 %v1384, %v1386
    %v1388 = vrot.slane %v1374, %v1387
    %1389 = vmatprep.subr.bf16.mxu0 0
    %1390 = vmatpush1.bf16.msra.mxu0 0
    %1391 = vmatprep.subr.bf16.mxu0 0
    %1392 = vmatpush1.bf16.msra.mxu0 0
    %1393 = vmatprep.subr.bf16.mxu0 0
    %1394 = vmatpush1.bf16.msra.mxu0 0
    %1395 = vmatprep.subr.bf16.mxu0 0
    %1396 = vmatpush1.bf16.msra.mxu0 0
    %1397 = vmatprep.subr.bf16.mxu0 %v182
    %1398 = vmatpush1.bf16.msra.mxu0 %v181
    %1399 = vmatprep.subr.bf16.mxu0 %v180
    %1400 = vmatpush1.bf16.msra.mxu0 %v179
    %1401 = vmatprep.subr.bf16.mxu0 %v178
    %1402 = vmatpush1.bf16.msra.mxu0 %v177
    %1403 = vmatprep.subr.bf16.mxu0 %v176
    %1404 = vmatpush1.bf16.msra.mxu0 %v175
    %1405 = vmatprep.subr.bf16.mxu0 0
    %1406 = vmatpush2.bf16.msra.mxu0 0
    %1407 = vmatprep.subr.bf16.mxu0 0
    %1408 = vmatpush2.bf16.msra.mxu0 0
    %1409 = vmatprep.subr.bf16.mxu0 0
    %1410 = vmatpush2.bf16.msra.mxu0 0
    %1411 = vmatprep.subr.bf16.mxu0 0
    %1412 = vmatpush2.bf16.msra.mxu0 0
    %1413 = vmatprep.subr.bf16.mxu0 0
    %1414 = vmatpush2.bf16.msra.mxu0 0
    %1415 = vmatprep.subr.bf16.mxu0 0
    %1416 = vmatpush2.bf16.msra.mxu0 0
    %1417 = vmatprep.subr.bf16.mxu0 0
    %1418 = vmatpush2.bf16.msra.mxu0 0
    %1419 = vmatprep.subr.bf16.mxu0 0
    %1420 = vmatpush2.bf16.msra.mxu0 0
    %1421 = vmatprep.mubr.bf16.mxu0 0
    %1422 = vmatmul.mubr.bf16.gmra.mxu0 %v1291
    %v1423 = vpop.f32.mrf.mxu0
    %v1424 = vadd.f32 0.0, %v1423
    %v1425 = vpop.f32.mrf.mxu0
    %v1426 = vadd.f32 0.0, %v1425
    %v1427 = vpop.f32.mrf.mxu0
    %v1428 = vpop.f32.mrf.mxu0
    %1429 = vdwg.mxu0
    %v1432 = vrot.slane %v1424, 4
    %v1433 = vrot.slane %v1426, 4
    %v1434 = vrot.slane %v1424, 5
    %v1435 = vrot.slane %v1426, 5
    %v1440 = vadd.f32 %v134, %v1432
    %v1441 = vadd.f32 %v136, %v1433
    %v1442 = vadd.f32 %v138, %v1434
    %v1443 = vadd.f32 %v140, %v1435
    %v1444 = vxor.u32 %v1440, 2147483648
    %v1445 = vxor.u32 %v1441, 2147483648
    %v1446 = vxor.u32 %v1442, 2147483648
    %v1447 = vxor.u32 %v1443, 2147483648
    %v1448 = vmul.f32 %v1444, 1.442695
    %v1449 = vpow.pop %v1448
    %v1450 = vmul.f32 %v1445, 1.442695
    %v1451 = vpow.pop %v1450
    %v1452 = vmul.f32 %v1446, 1.442695
    %v1453 = vpow.pop %v1452
    %v1454 = vmul.f32 %v1447, 1.442695
    %v1455 = vpow.pop %v1454
    %v1456 = vadd.f32 %v1449, 1.0
    %v1457 = vadd.f32 %v1451, 1.0
    %v1458 = vadd.f32 %v1453, 1.0
    %v1459 = vadd.f32 %v1455, 1.0
    %v1460 = vrcp.pop %v1456
    %v1461 = vmul.f32 1.0, %v1460
    %v1462 = vrcp.pop %v1457
    %v1463 = vmul.f32 1.0, %v1462
    %v1464 = vrcp.pop %v1458
    %v1465 = vmul.f32 1.0, %v1464
    %v1466 = vrcp.pop %v1459
    %v1467 = vmul.f32 1.0, %v1466
    %v1468 = vtanh.pop %v1441
    %v1469 = vtanh.pop %v1443
    %v1472 = vrot.slane %v1221, 7
    %v1473 = vrot.slane %v1222, 7
    %v1476 = vmul.f32 %v1461, %v1472
    %v1477 = vmul.f32 %v1465, %v1473
    %1480 = vrot.lane.b32.xlu0 %v1468, 64
    %v1481 = vpop.permute.xlu0 %1480
    %1482 = vrot.lane.b32.xlu0 %v1469, 64
    %v1483 = vpop.permute.xlu0 %1482
    %v1486 = vmul.f32 %v1461, %v1481
    %v1487 = vmul.f32 %v1465, %v1483
    %1490 = vrot.lane.b32.xlu0 %v1486, 64
    %v1491 = vpop.permute.xlu0 %1490
    %1492 = vrot.lane.b32.xlu0 %v1487, 64
    %v1493 = vpop.permute.xlu0 %1492
    %v1496 = vadd.f32 %v1476, %v1491
    %v1497 = vadd.f32 %v1477, %v1493
    %v1498 = vtanh.pop %v1496
    %v1499 = vtanh.pop %v1497
    %1502 = vrot.lane.b32.xlu0 %v1498, 64
    %v1503 = vpop.permute.xlu0 %1502
    %1504 = vrot.lane.b32.xlu0 %v1499, 64
    %v1505 = vpop.permute.xlu0 %1504
    %v1508 = vmul.f32 %v1463, %v1503
    %v1509 = vmul.f32 %v1467, %v1505
    %v1510 = vpack.c.bf16 %v1508, %v1508
    %v1511 = vpack.c.bf16 %v1509, %v1509
    %v1512 = vpack.c.bf16 %v1365, %v1365
    %v1514 = vsel %vm191, %v1512, 0
    %1516 = vmatprep.subr.bf16.mxu0 0
    %1517 = vmatpush1.bf16.msra.mxu0 0
    %1518 = vmatprep.subr.bf16.mxu0 0
    %1519 = vmatpush1.bf16.msra.mxu0 0
    %1520 = vmatprep.subr.bf16.mxu0 0
    %1521 = vmatpush1.bf16.msra.mxu0 0
    %1522 = vmatprep.subr.bf16.mxu0 0
    %1523 = vmatpush1.bf16.msra.mxu0 0
    %1524 = vmatprep.subr.bf16.mxu0 %v357
    %1525 = vmatpush1.bf16.msra.mxu0 %v356
    %1526 = vmatprep.subr.bf16.mxu0 %v355
    %1527 = vmatpush1.bf16.msra.mxu0 %v354
    %1528 = vmatprep.subr.bf16.mxu0 %v353
    %1529 = vmatpush1.bf16.msra.mxu0 %v352
    %1530 = vmatprep.subr.bf16.mxu0 %v351
    %1531 = vmatpush1.bf16.msra.mxu0 %v350
    %1532 = vmatprep.subr.bf16.mxu0 0
    %1533 = vmatpush2.bf16.msra.mxu0 0
    %1534 = vmatprep.subr.bf16.mxu0 0
    %1535 = vmatpush2.bf16.msra.mxu0 0
    %1536 = vmatprep.subr.bf16.mxu0 0
    %1537 = vmatpush2.bf16.msra.mxu0 0
    %1538 = vmatprep.subr.bf16.mxu0 0
    %1539 = vmatpush2.bf16.msra.mxu0 0
    %1540 = vmatprep.subr.bf16.mxu0 0
    %1541 = vmatpush2.bf16.msra.mxu0 0
    %1542 = vmatprep.subr.bf16.mxu0 0
    %1543 = vmatpush2.bf16.msra.mxu0 0
    %1544 = vmatprep.subr.bf16.mxu0 0
    %1545 = vmatpush2.bf16.msra.mxu0 0
    %1546 = vmatprep.subr.bf16.mxu0 0
    %1547 = vmatpush2.bf16.msra.mxu0 0
    %1548 = vmatprep.mubr.bf16.mxu0 0
    %1549 = vmatmul.mubr.bf16.gmra.mxu0 %v1514
    %v1550 = vpop.f32.mrf.mxu0
    %v1551 = vadd.f32 0.0, %v1550
    %v1552 = vpop.f32.mrf.mxu0
    %v1553 = vadd.f32 0.0, %v1552
    %v1554 = vpop.f32.mrf.mxu0
    %v1555 = vpop.f32.mrf.mxu0
    %1556 = vdwg.mxu0
    %v1559 = vunpack.c.l.b16 %v1510
    %v1560 = vunpack.c.l.b16 %v1511
    %v1561 = vrot.slane %v1559, 4
    %v1562 = vrot.slane %v1560, 3
    %v1563 = vsel %vm412, %v1562, %v1561
    %v1564 = vpack.c.b16 %v1563, %v1563
    %v1566 = vsel %vm191, %v1564, 0
    %1568 = vmatprep.subr.bf16.mxu0 0
    %1569 = vmatpush1.bf16.msra.mxu0 0
    %1570 = vmatprep.subr.bf16.mxu0 0
    %1571 = vmatpush1.bf16.msra.mxu0 0
    %1572 = vmatprep.subr.bf16.mxu0 0
    %1573 = vmatpush1.bf16.msra.mxu0 0
    %1574 = vmatprep.subr.bf16.mxu0 0
    %1575 = vmatpush1.bf16.msra.mxu0 0
    %1576 = vmatprep.subr.bf16.mxu0 %v446
    %1577 = vmatpush1.bf16.msra.mxu0 %v445
    %1578 = vmatprep.subr.bf16.mxu0 %v444
    %1579 = vmatpush1.bf16.msra.mxu0 %v443
    %1580 = vmatprep.subr.bf16.mxu0 %v442
    %1581 = vmatpush1.bf16.msra.mxu0 %v441
    %1582 = vmatprep.subr.bf16.mxu0 %v440
    %1583 = vmatpush1.bf16.msra.mxu0 %v439
    %1584 = vmatprep.subr.bf16.mxu0 0
    %1585 = vmatpush2.bf16.msra.mxu0 0
    %1586 = vmatprep.subr.bf16.mxu0 0
    %1587 = vmatpush2.bf16.msra.mxu0 0
    %1588 = vmatprep.subr.bf16.mxu0 0
    %1589 = vmatpush2.bf16.msra.mxu0 0
    %1590 = vmatprep.subr.bf16.mxu0 0
    %1591 = vmatpush2.bf16.msra.mxu0 0
    %1592 = vmatprep.subr.bf16.mxu0 0
    %1593 = vmatpush2.bf16.msra.mxu0 0
    %1594 = vmatprep.subr.bf16.mxu0 0
    %1595 = vmatpush2.bf16.msra.mxu0 0
    %1596 = vmatprep.subr.bf16.mxu0 0
    %1597 = vmatpush2.bf16.msra.mxu0 0
    %1598 = vmatprep.subr.bf16.mxu0 0
    %1599 = vmatpush2.bf16.msra.mxu0 0
    %1600 = vmatprep.mubr.bf16.mxu0 0
    %1601 = vmatmul.mubr.bf16.gmra.mxu0 %v1566
    %v1602 = vpop.f32.mrf.mxu0
    %v1603 = vadd.f32 %v1551, %v1602
    %v1604 = vpop.f32.mrf.mxu0
    %v1605 = vadd.f32 %v1553, %v1604
    %v1606 = vpop.f32.mrf.mxu0
    %v1607 = vpop.f32.mrf.mxu0
    %1608 = vdwg.mxu0
    %v1609 = vadd.f32 %v1603, %v503
    %v1610 = vadd.f32 %v1605, %v507
    %v1611 = vxor.u32 %v1609, 2147483648
    %v1612 = vxor.u32 %v1610, 2147483648
    %v1613 = vmul.f32 %v1611, 1.442695
    %v1614 = vpow.pop %v1613
    %v1615 = vmul.f32 %v1612, 1.442695
    %v1616 = vpow.pop %v1615
    %v1617 = vadd.f32 %v1614, 1.0
    %v1618 = vadd.f32 %v1616, 1.0
    %v1619 = vrcp.pop %v1617
    %v1620 = vmul.f32 1.0, %v1619
    %v1621 = vrcp.pop %v1618
    %v1622 = vmul.f32 1.0, %v1621
    %v1623 = vtanh.pop %v1610
    %v1624 = vmul.f32 %v1620, %v1359
    %1626 = vrot.lane.b32.xlu0 %v1623, 64
    %v1627 = vpop.permute.xlu0 %1626
    %v1629 = vmul.f32 %v1620, %v1627
    %1631 = vrot.lane.b32.xlu0 %v1629, 64
    %v1632 = vpop.permute.xlu0 %1631
    %v1634 = vadd.f32 %v1624, %v1632
    %v1635 = vtanh.pop %v1634
    %1637 = vrot.lane.b32.xlu0 %v1635, 64
    %v1638 = vpop.permute.xlu0 %1637
    %v1640 = vmul.f32 %v1622, %v1638
    %v1643 = vunpack.c.l.s4 1966171168
    %v1644 = vunpack.c.0.s8 %v1643
    %v1645 = vlaneseq
    %v1646 = vshrl.u32 %v1645, 7
    %v1647 = vsub.s32 %v1644, %v1646
    %v1648 = vrot.slane %v1640, %v1647
    %v1649 = vcombine.high %v1648, %v1648
    %v1651 = vunpack.c.l.s4 1966171168
    %v1652 = vunpack.c.0.s8 %v1651
    %v1653 = vlaneseq
    %v1654 = vshrl.u32 %v1653, 7
    %v1655 = vsub.s32 %v1652, %v1654
    %v1656 = vrot.slane %v1648, %v1655
    %v1658 = vunpack.c.l.s4 1966171168
    %v1659 = vunpack.c.0.s8 %v1658
    %v1660 = vlaneseq
    %v1661 = vshrl.u32 %v1660, 7
    %v1662 = vsub.s32 %v1659, %v1661
    %v1663 = vrot.slane %v1649, %v1662
    %1664 = vmatprep.subr.bf16.mxu0 0
    %1665 = vmatpush1.bf16.msra.mxu0 0
    %1666 = vmatprep.subr.bf16.mxu0 0
    %1667 = vmatpush1.bf16.msra.mxu0 0
    %1668 = vmatprep.subr.bf16.mxu0 0
    %1669 = vmatpush1.bf16.msra.mxu0 0
    %1670 = vmatprep.subr.bf16.mxu0 0
    %1671 = vmatpush1.bf16.msra.mxu0 0
    %1672 = vmatprep.subr.bf16.mxu0 %v182
    %1673 = vmatpush1.bf16.msra.mxu0 %v181
    %1674 = vmatprep.subr.bf16.mxu0 %v180
    %1675 = vmatpush1.bf16.msra.mxu0 %v179
    %1676 = vmatprep.subr.bf16.mxu0 %v178
    %1677 = vmatpush1.bf16.msra.mxu0 %v177
    %1678 = vmatprep.subr.bf16.mxu0 %v176
    %1679 = vmatpush1.bf16.msra.mxu0 %v175
    %1680 = vmatprep.subr.bf16.mxu0 0
    %1681 = vmatpush2.bf16.msra.mxu0 0
    %1682 = vmatprep.subr.bf16.mxu0 0
    %1683 = vmatpush2.bf16.msra.mxu0 0
    %1684 = vmatprep.subr.bf16.mxu0 0
    %1685 = vmatpush2.bf16.msra.mxu0 0
    %1686 = vmatprep.subr.bf16.mxu0 0
    %1687 = vmatpush2.bf16.msra.mxu0 0
    %1688 = vmatprep.subr.bf16.mxu0 0
    %1689 = vmatpush2.bf16.msra.mxu0 0
    %1690 = vmatprep.subr.bf16.mxu0 0
    %1691 = vmatpush2.bf16.msra.mxu0 0
    %1692 = vmatprep.subr.bf16.mxu0 0
    %1693 = vmatpush2.bf16.msra.mxu0 0
    %1694 = vmatprep.subr.bf16.mxu0 0
    %1695 = vmatpush2.bf16.msra.mxu0 0
    %1696 = vmatprep.mubr.bf16.mxu0 0
    %1697 = vmatmul.mubr.bf16.gmra.mxu0 %v1566
    %v1698 = vpop.f32.mrf.mxu0
    %v1699 = vadd.f32 0.0, %v1698
    %v1700 = vpop.f32.mrf.mxu0
    %v1701 = vadd.f32 0.0, %v1700
    %v1702 = vpop.f32.mrf.mxu0
    %v1703 = vpop.f32.mrf.mxu0
    %1704 = vdwg.mxu0
    %v1707 = vrot.slane %v1699, 3
    %v1708 = vrot.slane %v1701, 3
    %v1709 = vrot.slane %v1699, 4
    %v1710 = vrot.slane %v1701, 4
    %v1715 = vadd.f32 %v134, %v1707
    %v1716 = vadd.f32 %v136, %v1708
    %v1717 = vadd.f32 %v138, %v1709
    %v1718 = vadd.f32 %v140, %v1710
    %v1719 = vxor.u32 %v1715, 2147483648
    %v1720 = vxor.u32 %v1716, 2147483648
    %v1721 = vxor.u32 %v1717, 2147483648
    %v1722 = vxor.u32 %v1718, 2147483648
    %v1723 = vmul.f32 %v1719, 1.442695
    %v1724 = vpow.pop %v1723
    %v1725 = vmul.f32 %v1720, 1.442695
    %v1726 = vpow.pop %v1725
    %v1727 = vmul.f32 %v1721, 1.442695
    %v1728 = vpow.pop %v1727
    %v1729 = vmul.f32 %v1722, 1.442695
    %v1730 = vpow.pop %v1729
    %v1731 = vadd.f32 %v1724, 1.0
    %v1732 = vadd.f32 %v1726, 1.0
    %v1733 = vadd.f32 %v1728, 1.0
    %v1734 = vadd.f32 %v1730, 1.0
    %v1735 = vrcp.pop %v1731
    %v1736 = vmul.f32 1.0, %v1735
    %v1737 = vrcp.pop %v1732
    %v1738 = vmul.f32 1.0, %v1737
    %v1739 = vrcp.pop %v1733
    %v1740 = vmul.f32 1.0, %v1739
    %v1741 = vrcp.pop %v1734
    %v1742 = vmul.f32 1.0, %v1741
    %v1743 = vtanh.pop %v1716
    %v1744 = vtanh.pop %v1718
    %v1747 = vrot.slane %v1496, 7
    %v1748 = vrot.slane %v1497, 7
    %v1751 = vmul.f32 %v1736, %v1747
    %v1752 = vmul.f32 %v1740, %v1748
    %1755 = vrot.lane.b32.xlu0 %v1743, 64
    %v1756 = vpop.permute.xlu0 %1755
    %1757 = vrot.lane.b32.xlu0 %v1744, 64
    %v1758 = vpop.permute.xlu0 %1757
    %v1761 = vmul.f32 %v1736, %v1756
    %v1762 = vmul.f32 %v1740, %v1758
    %1765 = vrot.lane.b32.xlu0 %v1761, 64
    %v1766 = vpop.permute.xlu0 %1765
    %1767 = vrot.lane.b32.xlu0 %v1762, 64
    %v1768 = vpop.permute.xlu0 %1767
    %v1771 = vadd.f32 %v1751, %v1766
    %v1772 = vadd.f32 %v1752, %v1768
    %v1773 = vtanh.pop %v1771
    %v1774 = vtanh.pop %v1772
    %1777 = vrot.lane.b32.xlu0 %v1773, 64
    %v1778 = vpop.permute.xlu0 %1777
    %1779 = vrot.lane.b32.xlu0 %v1774, 64
    %v1780 = vpop.permute.xlu0 %1779
    %v1783 = vmul.f32 %v1738, %v1778
    %v1784 = vmul.f32 %v1742, %v1780
    %v1785 = vpack.c.bf16 %v1783, %v1783
    %v1786 = vpack.c.bf16 %v1784, %v1784
    %v1787 = vpack.c.bf16 %v1640, %v1640
    %v1789 = vsel %vm191, %v1787, 0
    %1791 = vmatprep.subr.bf16.mxu0 0
    %1792 = vmatpush1.bf16.msra.mxu0 0
    %1793 = vmatprep.subr.bf16.mxu0 0
    %1794 = vmatpush1.bf16.msra.mxu0 0
    %1795 = vmatprep.subr.bf16.mxu0 0
    %1796 = vmatpush1.bf16.msra.mxu0 0
    %1797 = vmatprep.subr.bf16.mxu0 0
    %1798 = vmatpush1.bf16.msra.mxu0 0
    %1799 = vmatprep.subr.bf16.mxu0 %v357
    %1800 = vmatpush1.bf16.msra.mxu0 %v356
    %1801 = vmatprep.subr.bf16.mxu0 %v355
    %1802 = vmatpush1.bf16.msra.mxu0 %v354
    %1803 = vmatprep.subr.bf16.mxu0 %v353
    %1804 = vmatpush1.bf16.msra.mxu0 %v352
    %1805 = vmatprep.subr.bf16.mxu0 %v351
    %1806 = vmatpush1.bf16.msra.mxu0 %v350
    %1807 = vmatprep.subr.bf16.mxu0 0
    %1808 = vmatpush2.bf16.msra.mxu0 0
    %1809 = vmatprep.subr.bf16.mxu0 0
    %1810 = vmatpush2.bf16.msra.mxu0 0
    %1811 = vmatprep.subr.bf16.mxu0 0
    %1812 = vmatpush2.bf16.msra.mxu0 0
    %1813 = vmatprep.subr.bf16.mxu0 0
    %1814 = vmatpush2.bf16.msra.mxu0 0
    %1815 = vmatprep.subr.bf16.mxu0 0
    %1816 = vmatpush2.bf16.msra.mxu0 0
    %1817 = vmatprep.subr.bf16.mxu0 0
    %1818 = vmatpush2.bf16.msra.mxu0 0
    %1819 = vmatprep.subr.bf16.mxu0 0
    %1820 = vmatpush2.bf16.msra.mxu0 0
    %1821 = vmatprep.subr.bf16.mxu0 0
    %1822 = vmatpush2.bf16.msra.mxu0 0
    %1823 = vmatprep.mubr.bf16.mxu0 0
    %1824 = vmatmul.mubr.bf16.gmra.mxu0 %v1789
    %v1825 = vpop.f32.mrf.mxu0
    %v1826 = vadd.f32 0.0, %v1825
    %v1827 = vpop.f32.mrf.mxu0
    %v1828 = vadd.f32 0.0, %v1827
    %v1829 = vpop.f32.mrf.mxu0
    %v1830 = vpop.f32.mrf.mxu0
    %1831 = vdwg.mxu0
    %v1834 = vunpack.c.l.b16 %v1785
    %v1835 = vunpack.c.l.b16 %v1786
    %v1836 = vrot.slane %v1834, 5
    %v1837 = vrot.slane %v1835, 4
    %v1838 = vsel %vm412, %v1837, %v1836
    %v1839 = vpack.c.b16 %v1838, %v1838
    %v1841 = vsel %vm191, %v1839, 0
    %1843 = vmatprep.subr.bf16.mxu0 0
    %1844 = vmatpush1.bf16.msra.mxu0 0
    %1845 = vmatprep.subr.bf16.mxu0 0
    %1846 = vmatpush1.bf16.msra.mxu0 0
    %1847 = vmatprep.subr.bf16.mxu0 0
    %1848 = vmatpush1.bf16.msra.mxu0 0
    %1849 = vmatprep.subr.bf16.mxu0 0
    %1850 = vmatpush1.bf16.msra.mxu0 0
    %1851 = vmatprep.subr.bf16.mxu0 %v446
    %1852 = vmatpush1.bf16.msra.mxu0 %v445
    %1853 = vmatprep.subr.bf16.mxu0 %v444
    %1854 = vmatpush1.bf16.msra.mxu0 %v443
    %1855 = vmatprep.subr.bf16.mxu0 %v442
    %1856 = vmatpush1.bf16.msra.mxu0 %v441
    %1857 = vmatprep.subr.bf16.mxu0 %v440
    %1858 = vmatpush1.bf16.msra.mxu0 %v439
    %1859 = vmatprep.subr.bf16.mxu0 0
    %1860 = vmatpush2.bf16.msra.mxu0 0
    %1861 = vmatprep.subr.bf16.mxu0 0
    %1862 = vmatpush2.bf16.msra.mxu0 0
    %1863 = vmatprep.subr.bf16.mxu0 0
    %1864 = vmatpush2.bf16.msra.mxu0 0
    %1865 = vmatprep.subr.bf16.mxu0 0
    %1866 = vmatpush2.bf16.msra.mxu0 0
    %1867 = vmatprep.subr.bf16.mxu0 0
    %1868 = vmatpush2.bf16.msra.mxu0 0
    %1869 = vmatprep.subr.bf16.mxu0 0
    %1870 = vmatpush2.bf16.msra.mxu0 0
    %1871 = vmatprep.subr.bf16.mxu0 0
    %1872 = vmatpush2.bf16.msra.mxu0 0
    %1873 = vmatprep.subr.bf16.mxu0 0
    %1874 = vmatpush2.bf16.msra.mxu0 0
    %1875 = vmatprep.mubr.bf16.mxu0 0
    %1876 = vmatmul.mubr.bf16.gmra.mxu0 %v1841
    %v1877 = vpop.f32.mrf.mxu0
    %v1878 = vadd.f32 %v1826, %v1877
    %v1879 = vpop.f32.mrf.mxu0
    %v1880 = vadd.f32 %v1828, %v1879
    %v1881 = vpop.f32.mrf.mxu0
    %v1882 = vpop.f32.mrf.mxu0
    %1883 = vdwg.mxu0
    %v1884 = vadd.f32 %v1878, %v503
    %v1885 = vadd.f32 %v1880, %v507
    %v1886 = vxor.u32 %v1884, 2147483648
    %v1887 = vxor.u32 %v1885, 2147483648
    %v1888 = vmul.f32 %v1886, 1.442695
    %v1889 = vpow.pop %v1888
    %v1890 = vmul.f32 %v1887, 1.442695
    %v1891 = vpow.pop %v1890
    %v1892 = vadd.f32 %v1889, 1.0
    %v1893 = vadd.f32 %v1891, 1.0
    %v1894 = vrcp.pop %v1892
    %v1895 = vmul.f32 1.0, %v1894
    %v1896 = vrcp.pop %v1893
    %v1897 = vmul.f32 1.0, %v1896
    %v1898 = vtanh.pop %v1885
    %v1899 = vmul.f32 %v1895, %v1634
    %1901 = vrot.lane.b32.xlu0 %v1898, 64
    %v1902 = vpop.permute.xlu0 %1901
    %v1904 = vmul.f32 %v1895, %v1902
    %1906 = vrot.lane.b32.xlu0 %v1904, 64
    %v1907 = vpop.permute.xlu0 %1906
    %v1909 = vadd.f32 %v1899, %v1907
    %v1910 = vtanh.pop %v1909
    %1912 = vrot.lane.b32.xlu0 %v1910, 64
    %v1913 = vpop.permute.xlu0 %1912
    %v1915 = vmul.f32 %v1897, %v1913
    %v1918 = vunpack.c.l.s4 1966171168
    %v1919 = vunpack.c.0.s8 %v1918
    %v1920 = vlaneseq
    %v1921 = vshrl.u32 %v1920, 7
    %v1922 = vsub.s32 %v1919, %v1921
    %v1923 = vrot.slane %v1915, %v1922
    %v1924 = vcombine.high %v1923, %v1923
    %v1926 = vunpack.c.l.s4 1966171168
    %v1927 = vunpack.c.0.s8 %v1926
    %v1928 = vlaneseq
    %v1929 = vshrl.u32 %v1928, 7
    %v1930 = vsub.s32 %v1927, %v1929
    %v1931 = vrot.slane %v1923, %v1930
    %v1933 = vunpack.c.l.s4 1966171168
    %v1934 = vunpack.c.0.s8 %v1933
    %v1935 = vlaneseq
    %v1936 = vshrl.u32 %v1935, 7
    %v1937 = vsub.s32 %v1934, %v1936
    %v1938 = vrot.slane %v1924, %v1937
    %1939 = vmatprep.subr.bf16.mxu0 0
    %1940 = vmatpush1.bf16.msra.mxu0 0
    %1941 = vmatprep.subr.bf16.mxu0 0
    %1942 = vmatpush1.bf16.msra.mxu0 0
    %1943 = vmatprep.subr.bf16.mxu0 0
    %1944 = vmatpush1.bf16.msra.mxu0 0
    %1945 = vmatprep.subr.bf16.mxu0 0
    %1946 = vmatpush1.bf16.msra.mxu0 0
    %1947 = vmatprep.subr.bf16.mxu0 %v182
    %1948 = vmatpush1.bf16.msra.mxu0 %v181
    %1949 = vmatprep.subr.bf16.mxu0 %v180
    %1950 = vmatpush1.bf16.msra.mxu0 %v179
    %1951 = vmatprep.subr.bf16.mxu0 %v178
    %1952 = vmatpush1.bf16.msra.mxu0 %v177
    %1953 = vmatprep.subr.bf16.mxu0 %v176
    %1954 = vmatpush1.bf16.msra.mxu0 %v175
    %1955 = vmatprep.subr.bf16.mxu0 0
    %1956 = vmatpush2.bf16.msra.mxu0 0
    %1957 = vmatprep.subr.bf16.mxu0 0
    %1958 = vmatpush2.bf16.msra.mxu0 0
    %1959 = vmatprep.subr.bf16.mxu0 0
    %1960 = vmatpush2.bf16.msra.mxu0 0
    %1961 = vmatprep.subr.bf16.mxu0 0
    %1962 = vmatpush2.bf16.msra.mxu0 0
    %1963 = vmatprep.subr.bf16.mxu0 0
    %1964 = vmatpush2.bf16.msra.mxu0 0
    %1965 = vmatprep.subr.bf16.mxu0 0
    %1966 = vmatpush2.bf16.msra.mxu0 0
    %1967 = vmatprep.subr.bf16.mxu0 0
    %1968 = vmatpush2.bf16.msra.mxu0 0
    %1969 = vmatprep.subr.bf16.mxu0 0
    %1970 = vmatpush2.bf16.msra.mxu0 0
    %1971 = vmatprep.mubr.bf16.mxu0 0
    %1972 = vmatmul.mubr.bf16.gmra.mxu0 %v1841
    %v1973 = vpop.f32.mrf.mxu0
    %v1974 = vadd.f32 0.0, %v1973
    %v1975 = vpop.f32.mrf.mxu0
    %v1976 = vadd.f32 0.0, %v1975
    %v1977 = vpop.f32.mrf.mxu0
    %v1978 = vpop.f32.mrf.mxu0
    %1979 = vdwg.mxu0
    %v1982 = vrot.slane %v1974, 2
    %v1983 = vrot.slane %v1976, 2
    %v1984 = vrot.slane %v1974, 3
    %v1985 = vrot.slane %v1976, 3
    %v1990 = vadd.f32 %v134, %v1982
    %v1991 = vadd.f32 %v136, %v1983
    %v1992 = vadd.f32 %v138, %v1984
    %v1993 = vadd.f32 %v140, %v1985
    %v1994 = vxor.u32 %v1990, 2147483648
    %v1995 = vxor.u32 %v1991, 2147483648
    %v1996 = vxor.u32 %v1992, 2147483648
    %v1997 = vxor.u32 %v1993, 2147483648
    %v1998 = vmul.f32 %v1994, 1.442695
    %v1999 = vpow.pop %v1998
    %v2000 = vmul.f32 %v1995, 1.442695
    %v2001 = vpow.pop %v2000
    %v2002 = vmul.f32 %v1996, 1.442695
    %v2003 = vpow.pop %v2002
    %v2004 = vmul.f32 %v1997, 1.442695
    %v2005 = vpow.pop %v2004
    %v2006 = vadd.f32 %v1999, 1.0
    %v2007 = vadd.f32 %v2001, 1.0
    %v2008 = vadd.f32 %v2003, 1.0
    %v2009 = vadd.f32 %v2005, 1.0
    %v2010 = vrcp.pop %v2006
    %v2011 = vmul.f32 1.0, %v2010
    %v2012 = vrcp.pop %v2007
    %v2013 = vmul.f32 1.0, %v2012
    %v2014 = vrcp.pop %v2008
    %v2015 = vmul.f32 1.0, %v2014
    %v2016 = vrcp.pop %v2009
    %v2017 = vmul.f32 1.0, %v2016
    %v2018 = vtanh.pop %v1991
    %v2019 = vtanh.pop %v1993
    %v2022 = vrot.slane %v1771, 7
    %v2023 = vrot.slane %v1772, 7
    %v2026 = vmul.f32 %v2011, %v2022
    %v2027 = vmul.f32 %v2015, %v2023
    %2030 = vrot.lane.b32.xlu0 %v2018, 64
    %v2031 = vpop.permute.xlu0 %2030
    %2032 = vrot.lane.b32.xlu0 %v2019, 64
    %v2033 = vpop.permute.xlu0 %2032
    %v2036 = vmul.f32 %v2011, %v2031
    %v2037 = vmul.f32 %v2015, %v2033
    %2040 = vrot.lane.b32.xlu0 %v2036, 64
    %v2041 = vpop.permute.xlu0 %2040
    %2042 = vrot.lane.b32.xlu0 %v2037, 64
    %v2043 = vpop.permute.xlu0 %2042
    %v2046 = vadd.f32 %v2026, %v2041
    %v2047 = vadd.f32 %v2027, %v2043
    %v2048 = vtanh.pop %v2046
    %v2049 = vtanh.pop %v2047
    %2052 = vrot.lane.b32.xlu0 %v2048, 64
    %v2053 = vpop.permute.xlu0 %2052
    %2054 = vrot.lane.b32.xlu0 %v2049, 64
    %v2055 = vpop.permute.xlu0 %2054
    %v2058 = vmul.f32 %v2013, %v2053
    %v2059 = vmul.f32 %v2017, %v2055
    %v2060 = vpack.c.bf16 %v2058, %v2058
    %v2061 = vpack.c.bf16 %v2059, %v2059
    %v2062 = vpack.c.bf16 %v1915, %v1915
    %v2064 = vsel %vm191, %v2062, 0
    %2066 = vmatprep.subr.bf16.mxu0 0
    %2067 = vmatpush1.bf16.msra.mxu0 0
    %2068 = vmatprep.subr.bf16.mxu0 0
    %2069 = vmatpush1.bf16.msra.mxu0 0
    %2070 = vmatprep.subr.bf16.mxu0 0
    %2071 = vmatpush1.bf16.msra.mxu0 0
    %2072 = vmatprep.subr.bf16.mxu0 0
    %2073 = vmatpush1.bf16.msra.mxu0 0
    %2074 = vmatprep.subr.bf16.mxu0 %v357
    %2075 = vmatpush1.bf16.msra.mxu0 %v356
    %2076 = vmatprep.subr.bf16.mxu0 %v355
    %2077 = vmatpush1.bf16.msra.mxu0 %v354
    %2078 = vmatprep.subr.bf16.mxu0 %v353
    %2079 = vmatpush1.bf16.msra.mxu0 %v352
    %2080 = vmatprep.subr.bf16.mxu0 %v351
    %2081 = vmatpush1.bf16.msra.mxu0 %v350
    %2082 = vmatprep.subr.bf16.mxu0 0
    %2083 = vmatpush2.bf16.msra.mxu0 0
    %2084 = vmatprep.subr.bf16.mxu0 0
    %2085 = vmatpush2.bf16.msra.mxu0 0
    %2086 = vmatprep.subr.bf16.mxu0 0
    %2087 = vmatpush2.bf16.msra.mxu0 0
    %2088 = vmatprep.subr.bf16.mxu0 0
    %2089 = vmatpush2.bf16.msra.mxu0 0
    %2090 = vmatprep.subr.bf16.mxu0 0
    %2091 = vmatpush2.bf16.msra.mxu0 0
    %2092 = vmatprep.subr.bf16.mxu0 0
    %2093 = vmatpush2.bf16.msra.mxu0 0
    %2094 = vmatprep.subr.bf16.mxu0 0
    %2095 = vmatpush2.bf16.msra.mxu0 0
    %2096 = vmatprep.subr.bf16.mxu0 0
    %2097 = vmatpush2.bf16.msra.mxu0 0
    %2098 = vmatprep.mubr.bf16.mxu0 0
    %2099 = vmatmul.mubr.bf16.gmra.mxu0 %v2064
    %v2100 = vpop.f32.mrf.mxu0
    %v2101 = vadd.f32 0.0, %v2100
    %v2102 = vpop.f32.mrf.mxu0
    %v2103 = vadd.f32 0.0, %v2102
    %v2104 = vpop.f32.mrf.mxu0
    %v2105 = vpop.f32.mrf.mxu0
    %2106 = vdwg.mxu0
    %v2109 = vunpack.c.l.b16 %v2060
    %v2110 = vunpack.c.l.b16 %v2061
    %v2111 = vrot.slane %v2109, 6
    %v2112 = vrot.slane %v2110, 5
    %v2113 = vsel %vm412, %v2112, %v2111
    %v2114 = vpack.c.b16 %v2113, %v2113
    %v2116 = vsel %vm191, %v2114, 0
    %2118 = vmatprep.subr.bf16.mxu0 0
    %2119 = vmatpush1.bf16.msra.mxu0 0
    %2120 = vmatprep.subr.bf16.mxu0 0
    %2121 = vmatpush1.bf16.msra.mxu0 0
    %2122 = vmatprep.subr.bf16.mxu0 0
    %2123 = vmatpush1.bf16.msra.mxu0 0
    %2124 = vmatprep.subr.bf16.mxu0 0
    %2125 = vmatpush1.bf16.msra.mxu0 0
    %2126 = vmatprep.subr.bf16.mxu0 %v446
    %2127 = vmatpush1.bf16.msra.mxu0 %v445
    %2128 = vmatprep.subr.bf16.mxu0 %v444
    %2129 = vmatpush1.bf16.msra.mxu0 %v443
    %2130 = vmatprep.subr.bf16.mxu0 %v442
    %2131 = vmatpush1.bf16.msra.mxu0 %v441
    %2132 = vmatprep.subr.bf16.mxu0 %v440
    %2133 = vmatpush1.bf16.msra.mxu0 %v439
    %2134 = vmatprep.subr.bf16.mxu0 0
    %2135 = vmatpush2.bf16.msra.mxu0 0
    %2136 = vmatprep.subr.bf16.mxu0 0
    %2137 = vmatpush2.bf16.msra.mxu0 0
    %2138 = vmatprep.subr.bf16.mxu0 0
    %2139 = vmatpush2.bf16.msra.mxu0 0
    %2140 = vmatprep.subr.bf16.mxu0 0
    %2141 = vmatpush2.bf16.msra.mxu0 0
    %2142 = vmatprep.subr.bf16.mxu0 0
    %2143 = vmatpush2.bf16.msra.mxu0 0
    %2144 = vmatprep.subr.bf16.mxu0 0
    %2145 = vmatpush2.bf16.msra.mxu0 0
    %2146 = vmatprep.subr.bf16.mxu0 0
    %2147 = vmatpush2.bf16.msra.mxu0 0
    %2148 = vmatprep.subr.bf16.mxu0 0
    %2149 = vmatpush2.bf16.msra.mxu0 0
    %2150 = vmatprep.mubr.bf16.mxu0 0
    %2151 = vmatmul.mubr.bf16.gmra.mxu0 %v2116
    %v2152 = vpop.f32.mrf.mxu0
    %v2153 = vadd.f32 %v2101, %v2152
    %v2154 = vpop.f32.mrf.mxu0
    %v2155 = vadd.f32 %v2103, %v2154
    %v2156 = vpop.f32.mrf.mxu0
    %v2157 = vpop.f32.mrf.mxu0
    %2158 = vdwg.mxu0
    %v2159 = vadd.f32 %v2153, %v503
    %v2160 = vadd.f32 %v2155, %v507
    %v2161 = vxor.u32 %v2159, 2147483648
    %v2162 = vxor.u32 %v2160, 2147483648
    %v2163 = vmul.f32 %v2161, 1.442695
    %v2164 = vpow.pop %v2163
    %v2165 = vmul.f32 %v2162, 1.442695
    %v2166 = vpow.pop %v2165
    %v2167 = vadd.f32 %v2164, 1.0
    %v2168 = vadd.f32 %v2166, 1.0
    %v2169 = vrcp.pop %v2167
    %v2170 = vmul.f32 1.0, %v2169
    %v2171 = vrcp.pop %v2168
    %v2172 = vmul.f32 1.0, %v2171
    %v2173 = vtanh.pop %v2160
    %v2174 = vmul.f32 %v2170, %v1909
    %2176 = vrot.lane.b32.xlu0 %v2173, 64
    %v2177 = vpop.permute.xlu0 %2176
    %v2179 = vmul.f32 %v2170, %v2177
    %2181 = vrot.lane.b32.xlu0 %v2179, 64
    %v2182 = vpop.permute.xlu0 %2181
    %v2184 = vadd.f32 %v2174, %v2182
    %v2185 = vtanh.pop %v2184
    %2187 = vrot.lane.b32.xlu0 %v2185, 64
    %v2188 = vpop.permute.xlu0 %2187
    %v2190 = vmul.f32 %v2172, %v2188
    %v2193 = vunpack.c.l.s4 1966171168
    %v2194 = vunpack.c.0.s8 %v2193
    %v2195 = vlaneseq
    %v2196 = vshrl.u32 %v2195, 7
    %v2197 = vsub.s32 %v2194, %v2196
    %v2198 = vrot.slane %v2190, %v2197
    %v2199 = vcombine.high %v2198, %v2198
    %v2201 = vunpack.c.l.s4 1966171168
    %v2202 = vunpack.c.0.s8 %v2201
    %v2203 = vlaneseq
    %v2204 = vshrl.u32 %v2203, 7
    %v2205 = vsub.s32 %v2202, %v2204
    %v2206 = vrot.slane %v2198, %v2205
    %v2208 = vunpack.c.l.s4 1966171168
    %v2209 = vunpack.c.0.s8 %v2208
    %v2210 = vlaneseq
    %v2211 = vshrl.u32 %v2210, 7
    %v2212 = vsub.s32 %v2209, %v2211
    %v2213 = vrot.slane %v2199, %v2212
    %2214 = vmatprep.subr.bf16.mxu0 0
    %2215 = vmatpush1.bf16.msra.mxu0 0
    %2216 = vmatprep.subr.bf16.mxu0 0
    %2217 = vmatpush1.bf16.msra.mxu0 0
    %2218 = vmatprep.subr.bf16.mxu0 0
    %2219 = vmatpush1.bf16.msra.mxu0 0
    %2220 = vmatprep.subr.bf16.mxu0 0
    %2221 = vmatpush1.bf16.msra.mxu0 0
    %2222 = vmatprep.subr.bf16.mxu0 %v182
    %2223 = vmatpush1.bf16.msra.mxu0 %v181
    %2224 = vmatprep.subr.bf16.mxu0 %v180
    %2225 = vmatpush1.bf16.msra.mxu0 %v179
    %2226 = vmatprep.subr.bf16.mxu0 %v178
    %2227 = vmatpush1.bf16.msra.mxu0 %v177
    %2228 = vmatprep.subr.bf16.mxu0 %v176
    %2229 = vmatpush1.bf16.msra.mxu0 %v175
    %2230 = vmatprep.subr.bf16.mxu0 0
    %2231 = vmatpush2.bf16.msra.mxu0 0
    %2232 = vmatprep.subr.bf16.mxu0 0
    %2233 = vmatpush2.bf16.msra.mxu0 0
    %2234 = vmatprep.subr.bf16.mxu0 0
    %2235 = vmatpush2.bf16.msra.mxu0 0
    %2236 = vmatprep.subr.bf16.mxu0 0
    %2237 = vmatpush2.bf16.msra.mxu0 0
    %2238 = vmatprep.subr.bf16.mxu0 0
    %2239 = vmatpush2.bf16.msra.mxu0 0
    %2240 = vmatprep.subr.bf16.mxu0 0
    %2241 = vmatpush2.bf16.msra.mxu0 0
    %2242 = vmatprep.subr.bf16.mxu0 0
    %2243 = vmatpush2.bf16.msra.mxu0 0
    %2244 = vmatprep.subr.bf16.mxu0 0
    %2245 = vmatpush2.bf16.msra.mxu0 0
    %2246 = vmatprep.mubr.bf16.mxu0 0
    %2247 = vmatmul.mubr.bf16.gmra.mxu0 %v2116
    %v2248 = vpop.f32.mrf.mxu0
    %v2249 = vadd.f32 0.0, %v2248
    %v2250 = vpop.f32.mrf.mxu0
    %v2251 = vadd.f32 0.0, %v2250
    %v2252 = vpop.f32.mrf.mxu0
    %v2253 = vpop.f32.mrf.mxu0
    %2254 = vdwg.mxu0
    %v2257 = vrot.slane %v2249, 1
    %v2258 = vrot.slane %v2251, 1
    %v2259 = vrot.slane %v2249, 2
    %v2260 = vrot.slane %v2251, 2
    %v2265 = vadd.f32 %v134, %v2257
    %v2266 = vadd.f32 %v136, %v2258
    %v2267 = vadd.f32 %v138, %v2259
    %v2268 = vadd.f32 %v140, %v2260
    %v2269 = vxor.u32 %v2265, 2147483648
    %v2270 = vxor.u32 %v2266, 2147483648
    %v2271 = vxor.u32 %v2267, 2147483648
    %v2272 = vxor.u32 %v2268, 2147483648
    %v2273 = vmul.f32 %v2269, 1.442695
    %v2274 = vpow.pop %v2273
    %v2275 = vmul.f32 %v2270, 1.442695
    %v2276 = vpow.pop %v2275
    %v2277 = vmul.f32 %v2271, 1.442695
    %v2278 = vpow.pop %v2277
    %v2279 = vmul.f32 %v2272, 1.442695
    %v2280 = vpow.pop %v2279
    %v2281 = vadd.f32 %v2274, 1.0
    %v2282 = vadd.f32 %v2276, 1.0
    %v2283 = vadd.f32 %v2278, 1.0
    %v2284 = vadd.f32 %v2280, 1.0
    %v2285 = vrcp.pop %v2281
    %v2286 = vmul.f32 1.0, %v2285
    %v2287 = vrcp.pop %v2282
    %v2288 = vmul.f32 1.0, %v2287
    %v2289 = vrcp.pop %v2283
    %v2290 = vmul.f32 1.0, %v2289
    %v2291 = vrcp.pop %v2284
    %v2292 = vmul.f32 1.0, %v2291
    %v2293 = vtanh.pop %v2266
    %v2294 = vtanh.pop %v2268
    %v2297 = vrot.slane %v2046, 7
    %v2298 = vrot.slane %v2047, 7
    %v2301 = vmul.f32 %v2286, %v2297
    %v2302 = vmul.f32 %v2290, %v2298
    %2305 = vrot.lane.b32.xlu0 %v2293, 64
    %v2306 = vpop.permute.xlu0 %2305
    %2307 = vrot.lane.b32.xlu0 %v2294, 64
    %v2308 = vpop.permute.xlu0 %2307
    %v2311 = vmul.f32 %v2286, %v2306
    %v2312 = vmul.f32 %v2290, %v2308
    %2315 = vrot.lane.b32.xlu0 %v2311, 64
    %v2316 = vpop.permute.xlu0 %2315
    %2317 = vrot.lane.b32.xlu0 %v2312, 64
    %v2318 = vpop.permute.xlu0 %2317
    %v2321 = vadd.f32 %v2301, %v2316
    %v2322 = vadd.f32 %v2302, %v2318
    %v2323 = vtanh.pop %v2321
    %v2324 = vtanh.pop %v2322
    %2327 = vrot.lane.b32.xlu0 %v2323, 64
    %v2328 = vpop.permute.xlu0 %2327
    %2329 = vrot.lane.b32.xlu0 %v2324, 64
    %v2330 = vpop.permute.xlu0 %2329
    %v2333 = vmul.f32 %v2288, %v2328
    %v2334 = vmul.f32 %v2292, %v2330
    %v2335 = vpack.c.bf16 %v2333, %v2333
    %v2336 = vpack.c.bf16 %v2334, %v2334
    %v2337 = vpack.c.bf16 %v2190, %v2190
    %v2339 = vsel %vm191, %v2337, 0
    %2341 = vmatprep.subr.bf16.mxu0 0
    %2342 = vmatpush1.bf16.msra.mxu0 0
    %2343 = vmatprep.subr.bf16.mxu0 0
    %2344 = vmatpush1.bf16.msra.mxu0 0
    %2345 = vmatprep.subr.bf16.mxu0 0
    %2346 = vmatpush1.bf16.msra.mxu0 0
    %2347 = vmatprep.subr.bf16.mxu0 0
    %2348 = vmatpush1.bf16.msra.mxu0 0
    %2349 = vmatprep.subr.bf16.mxu0 %v357
    %2350 = vmatpush1.bf16.msra.mxu0 %v356
    %2351 = vmatprep.subr.bf16.mxu0 %v355
    %2352 = vmatpush1.bf16.msra.mxu0 %v354
    %2353 = vmatprep.subr.bf16.mxu0 %v353
    %2354 = vmatpush1.bf16.msra.mxu0 %v352
    %2355 = vmatprep.subr.bf16.mxu0 %v351
    %2356 = vmatpush1.bf16.msra.mxu0 %v350
    %2357 = vmatprep.subr.bf16.mxu0 0
    %2358 = vmatpush2.bf16.msra.mxu0 0
    %2359 = vmatprep.subr.bf16.mxu0 0
    %2360 = vmatpush2.bf16.msra.mxu0 0
    %2361 = vmatprep.subr.bf16.mxu0 0
    %2362 = vmatpush2.bf16.msra.mxu0 0
    %2363 = vmatprep.subr.bf16.mxu0 0
    %2364 = vmatpush2.bf16.msra.mxu0 0
    %2365 = vmatprep.subr.bf16.mxu0 0
    %2366 = vmatpush2.bf16.msra.mxu0 0
    %2367 = vmatprep.subr.bf16.mxu0 0
    %2368 = vmatpush2.bf16.msra.mxu0 0
    %2369 = vmatprep.subr.bf16.mxu0 0
    %2370 = vmatpush2.bf16.msra.mxu0 0
    %2371 = vmatprep.subr.bf16.mxu0 0
    %2372 = vmatpush2.bf16.msra.mxu0 0
    %2373 = vmatprep.mubr.bf16.mxu0 0
    %2374 = vmatmul.mubr.bf16.gmra.mxu0 %v2339
    %v2375 = vpop.f32.mrf.mxu0
    %v2376 = vadd.f32 0.0, %v2375
    %v2377 = vpop.f32.mrf.mxu0
    %v2378 = vadd.f32 0.0, %v2377
    %v2379 = vpop.f32.mrf.mxu0
    %v2380 = vpop.f32.mrf.mxu0
    %2381 = vdwg.mxu0
    %v2384 = vunpack.c.l.b16 %v2335
    %v2385 = vunpack.c.l.b16 %v2336
    %v2386 = vrot.slane %v2384, 7
    %v2387 = vrot.slane %v2385, 6
    %v2388 = vsel %vm412, %v2387, %v2386
    %v2389 = vpack.c.b16 %v2388, %v2388
    %v2391 = vsel %vm191, %v2389, 0
    %2393 = vmatprep.subr.bf16.mxu0 0
    %2394 = vmatpush1.bf16.msra.mxu0 0
    %2395 = vmatprep.subr.bf16.mxu0 0
    %2396 = vmatpush1.bf16.msra.mxu0 0
    %2397 = vmatprep.subr.bf16.mxu0 0
    %2398 = vmatpush1.bf16.msra.mxu0 0
    %2399 = vmatprep.subr.bf16.mxu0 0
    %2400 = vmatpush1.bf16.msra.mxu0 0
    %2401 = vmatprep.subr.bf16.mxu0 %v446
    %2402 = vmatpush1.bf16.msra.mxu0 %v445
    %2403 = vmatprep.subr.bf16.mxu0 %v444
    %2404 = vmatpush1.bf16.msra.mxu0 %v443
    %2405 = vmatprep.subr.bf16.mxu0 %v442
    %2406 = vmatpush1.bf16.msra.mxu0 %v441
    %2407 = vmatprep.subr.bf16.mxu0 %v440
    %2408 = vmatpush1.bf16.msra.mxu0 %v439
    %2409 = vmatprep.subr.bf16.mxu0 0
    %2410 = vmatpush2.bf16.msra.mxu0 0
    %2411 = vmatprep.subr.bf16.mxu0 0
    %2412 = vmatpush2.bf16.msra.mxu0 0
    %2413 = vmatprep.subr.bf16.mxu0 0
    %2414 = vmatpush2.bf16.msra.mxu0 0
    %2415 = vmatprep.subr.bf16.mxu0 0
    %2416 = vmatpush2.bf16.msra.mxu0 0
    %2417 = vmatprep.subr.bf16.mxu0 0
    %2418 = vmatpush2.bf16.msra.mxu0 0
    %2419 = vmatprep.subr.bf16.mxu0 0
    %2420 = vmatpush2.bf16.msra.mxu0 0
    %2421 = vmatprep.subr.bf16.mxu0 0
    %2422 = vmatpush2.bf16.msra.mxu0 0
    %2423 = vmatprep.subr.bf16.mxu0 0
    %2424 = vmatpush2.bf16.msra.mxu0 0
    %2425 = vmatprep.mubr.bf16.mxu0 0
    %2426 = vmatmul.mubr.bf16.gmra.mxu0 %v2391
    %v2427 = vpop.f32.mrf.mxu0
    %v2428 = vadd.f32 %v2376, %v2427
    %v2429 = vpop.f32.mrf.mxu0
    %v2430 = vadd.f32 %v2378, %v2429
    %v2431 = vpop.f32.mrf.mxu0
    %v2432 = vpop.f32.mrf.mxu0
    %2433 = vdwg.mxu0
    %v2434 = vadd.f32 %v2428, %v503
    %v2435 = vadd.f32 %v2430, %v507
    %v2436 = vxor.u32 %v2434, 2147483648
    %v2437 = vxor.u32 %v2435, 2147483648
    %v2438 = vmul.f32 %v2436, 1.442695
    %v2439 = vpow.pop %v2438
    %v2440 = vmul.f32 %v2437, 1.442695
    %v2441 = vpow.pop %v2440
    %v2442 = vadd.f32 %v2439, 1.0
    %v2443 = vadd.f32 %v2441, 1.0
    %v2444 = vrcp.pop %v2442
    %v2445 = vmul.f32 1.0, %v2444
    %v2446 = vrcp.pop %v2443
    %v2447 = vmul.f32 1.0, %v2446
    %v2448 = vtanh.pop %v2435
    %v2449 = vmul.f32 %v2445, %v2184
    %2451 = vrot.lane.b32.xlu0 %v2448, 64
    %v2452 = vpop.permute.xlu0 %2451
    %v2454 = vmul.f32 %v2445, %v2452
    %2456 = vrot.lane.b32.xlu0 %v2454, 64
    %v2457 = vpop.permute.xlu0 %2456
    %v2459 = vadd.f32 %v2449, %v2457
    %v2460 = vtanh.pop %v2459
    %2462 = vrot.lane.b32.xlu0 %v2460, 64
    %v2463 = vpop.permute.xlu0 %2462
    %v2465 = vmul.f32 %v2447, %v2463
    %v2468 = vunpack.c.l.s4 1966171168
    %v2469 = vunpack.c.0.s8 %v2468
    %v2470 = vlaneseq
    %v2471 = vshrl.u32 %v2470, 7
    %v2472 = vsub.s32 %v2469, %v2471
    %v2473 = vrot.slane %v2465, %v2472
    %v2474 = vcombine.high %v2473, %v2473
    %v2476 = vunpack.c.l.s4 1966171168
    %v2477 = vunpack.c.0.s8 %v2476
    %v2478 = vlaneseq
    %v2479 = vshrl.u32 %v2478, 7
    %v2480 = vsub.s32 %v2477, %v2479
    %v2481 = vrot.slane %v2473, %v2480
    %v2483 = vunpack.c.l.s4 1966171168
    %v2484 = vunpack.c.0.s8 %v2483
    %v2485 = vlaneseq
    %v2486 = vshrl.u32 %v2485, 7
    %v2487 = vsub.s32 %v2484, %v2486
    %v2488 = vrot.slane %v2474, %v2487
    %v2489 = vlaneseq
    %v2490 = vshrl.u32 %v2489, 7
    %v2491 = vsub.s32 0, %v2490
    %v2492 = vrot.slane %v831, %v2491
    %v2493 = vlaneseq
    %v2494 = vshrl.u32 %v2493, 7
    %v2495 = vsub.s32 0, %v2494
    %v2496 = vrot.slane %v838, %v2495
    %v2499 = vlaneseq
    %v2500 = vshrl.u32 %v2499, 7
    %v2501 = vsub.s32 0, %v2500
    %v2502 = vrot.slane %v1106, %v2501
    %v2503 = vlaneseq
    %v2504 = vshrl.u32 %v2503, 7
    %v2505 = vsub.s32 0, %v2504
    %v2506 = vrot.slane %v1113, %v2505
    %v2509 = vlaneseq
    %v2510 = vshrl.u32 %v2509, 7
    %v2511 = vsub.s32 0, %v2510
    %v2512 = vrot.slane %v1381, %v2511
    %v2513 = vlaneseq
    %v2514 = vshrl.u32 %v2513, 7
    %v2515 = vsub.s32 0, %v2514
    %v2516 = vrot.slane %v1388, %v2515
    %v2519 = vlaneseq
    %v2520 = vshrl.u32 %v2519, 7
    %v2521 = vsub.s32 0, %v2520
    %v2522 = vrot.slane %v1656, %v2521
    %v2523 = vlaneseq
    %v2524 = vshrl.u32 %v2523, 7
    %v2525 = vsub.s32 0, %v2524
    %v2526 = vrot.slane %v1663, %v2525
    %v2529 = vlaneseq
    %v2530 = vshrl.u32 %v2529, 7
    %v2531 = vsub.s32 0, %v2530
    %v2532 = vrot.slane %v1931, %v2531
    %v2533 = vlaneseq
    %v2534 = vshrl.u32 %v2533, 7
    %v2535 = vsub.s32 0, %v2534
    %v2536 = vrot.slane %v1938, %v2535
    %v2539 = vlaneseq
    %v2540 = vshrl.u32 %v2539, 7
    %v2541 = vsub.s32 0, %v2540
    %v2542 = vrot.slane %v2206, %v2541
    %v2543 = vlaneseq
    %v2544 = vshrl.u32 %v2543, 7
    %v2545 = vsub.s32 0, %v2544
    %v2546 = vrot.slane %v2213, %v2545
    %v2549 = vlaneseq
    %v2550 = vshrl.u32 %v2549, 7
    %v2551 = vsub.s32 0, %v2550
    %v2552 = vrot.slane %v2481, %v2551
    %v2553 = vlaneseq
    %v2554 = vshrl.u32 %v2553, 7
    %v2555 = vsub.s32 0, %v2554
    %v2556 = vrot.slane %v2488, %v2555
    %vm2559 = vcmask 1040384
    %v2560 = vsel %vm2559, %v557, %v2492
    %v2561 = vsel %vm2559, %v564, %v2496
    %vm2562 = vcmask 1041408
    %v2563 = vsel %vm2562, %v2560, %v2502
    %v2564 = vsel %vm2562, %v2561, %v2506
    %v2565 = vsel %vm92, %v2563, %v2512
    %v2566 = vsel %vm92, %v2564, %v2516
    %vm2567 = vcmask 1043456
    %v2568 = vsel %vm2567, %v2565, %v2522
    %v2569 = vsel %vm2567, %v2566, %v2526
    %vm2570 = vcmask 1044480
    %v2571 = vsel %vm2570, %v2568, %v2532
    %v2572 = vsel %vm2570, %v2569, %v2536
    %vm2573 = vcmask 1045504
    %v2574 = vsel %vm2573, %v2571, %v2542
    %v2575 = vsel %vm2573, %v2572, %v2546
    %vm2576 = vcmask 1046528
    %v2577 = vsel %vm2576, %v2574, %v2552
    %v2578 = vsel %vm2576, %v2575, %v2556
    %v2579 = vpack.c.bf16 %v2578, %v2577
    %v2580 = vld [vmem:[%s7] sm:$0xf]
    %v2581 = vld [vmem:[%s7 + $0x4] sm:$0xf]
    %v2582 = vld [vmem:[%s7 + $0x8] sm:$0xf]
    %v2583 = vld [vmem:[%s7 + $0xc] sm:$0xf]
    %v2584 = vld [vmem:[%s7 + $0x10] sm:$0xf]
    %v2585 = vld [vmem:[%s7 + $0x14] sm:$0xf]
    %v2586 = vld [vmem:[%s7 + $0x18] sm:$0xf]
    %v2587 = vld [vmem:[%s7 + $0x1c] sm:$0xf]
    %v2588 = vld [vmem:[%s8] sm:$0x1]
    %v2590 = vlaneseq
    %v2591 = vshrl.u32 %v2590, 7
    %v2592 = vsub.s32 0, %v2591
    %v2593 = vrot.slane %v2588, %v2592
    %v2603 = vunpack.c.l.b16 %v2580
    %v2604 = vunpack.c.l.b16 %v2581
    %v2605 = vunpack.c.l.b16 %v2582
    %v2606 = vunpack.c.l.b16 %v2583
    %v2607 = vunpack.c.l.b16 %v2584
    %v2608 = vunpack.c.l.b16 %v2585
    %v2609 = vunpack.c.l.b16 %v2586
    %v2610 = vunpack.c.l.b16 %v2587
    %v2611 = vpack.c.b16 %v2604, %v2603
    %v2612 = vpack.c.b16 %v2606, %v2605
    %v2613 = vpack.c.b16 %v2608, %v2607
    %v2614 = vpack.c.b16 %v2610, %v2609
    %v2620 = vsel %vm191, %v2579, 0
    %2622 = vmatprep.subr.bf16.mxu0 0
    %2623 = vmatpush1.bf16.msra.mxu0 0
    %2624 = vmatprep.subr.bf16.mxu0 0
    %2625 = vmatpush1.bf16.msra.mxu0 0
    %2626 = vmatprep.subr.bf16.mxu0 0
    %2627 = vmatpush1.bf16.msra.mxu0 0
    %2628 = vmatprep.subr.bf16.mxu0 0
    %2629 = vmatpush1.bf16.msra.mxu0 0
    %2630 = vmatprep.subr.bf16.mxu0 0
    %2631 = vmatpush1.bf16.msra.mxu0 %v2614
    %2632 = vmatprep.subr.bf16.mxu0 0
    %2633 = vmatpush1.bf16.msra.mxu0 %v2613
    %2634 = vmatprep.subr.bf16.mxu0 0
    %2635 = vmatpush1.bf16.msra.mxu0 %v2612
    %2636 = vmatprep.subr.bf16.mxu0 0
    %2637 = vmatpush1.bf16.msra.mxu0 %v2611
    %2638 = vmatprep.subr.bf16.mxu0 0
    %2639 = vmatpush2.bf16.msra.mxu0 0
    %2640 = vmatprep.subr.bf16.mxu0 0
    %2641 = vmatpush2.bf16.msra.mxu0 0
    %2642 = vmatprep.subr.bf16.mxu0 0
    %2643 = vmatpush2.bf16.msra.mxu0 0
    %2644 = vmatprep.subr.bf16.mxu0 0
    %2645 = vmatpush2.bf16.msra.mxu0 0
    %2646 = vmatprep.subr.bf16.mxu0 0
    %2647 = vmatpush2.bf16.msra.mxu0 0
    %2648 = vmatprep.subr.bf16.mxu0 0
    %2649 = vmatpush2.bf16.msra.mxu0 0
    %2650 = vmatprep.subr.bf16.mxu0 0
    %2651 = vmatpush2.bf16.msra.mxu0 0
    %2652 = vmatprep.subr.bf16.mxu0 0
    %2653 = vmatpush2.bf16.msra.mxu0 0
    %2654 = vmatprep.mubr.bf16.mxu0 0
    %2655 = vmatmul.mubr.bf16.gmra.mxu0 %v2620
    %v2656 = vpop.f32.mrf.mxu0
    %v2657 = vadd.f32 %v2593, %v2656
    %v2658 = vpop.f32.mrf.mxu0
    %v2659 = vpop.f32.mrf.mxu0
    %v2660 = vadd.f32 %v2593, %v2659
    %v2661 = vpop.f32.mrf.mxu0
    %2662 = vdwg.mxu0
    %v2663 = vmax.f32 %v2657, 0.0
    %v2664 = vmax.f32 %v2660, 0.0
    %v2665 = vpack.c.bf16 %v2664, %v2663
    %v2666 = vld [vmem:[%s9] sm:$0xf]
    %v2667 = vld [vmem:[%s9 + $0x4] sm:$0xf]
    %v2668 = vld [vmem:[%s9 + $0x8] sm:$0xf]
    %v2669 = vld [vmem:[%s9 + $0xc] sm:$0xf]
    %v2670 = vld [vmem:[%s10] sm:$0x1]
    %v2672 = vlaneseq
    %v2673 = vshrl.u32 %v2672, 7
    %v2674 = vsub.s32 0, %v2673
    %v2675 = vrot.slane %v2670, %v2674
    %v2681 = vunpack.c.l.b16 %v2666
    %v2682 = vunpack.c.l.b16 %v2667
    %v2683 = vunpack.c.l.b16 %v2668
    %v2684 = vunpack.c.l.b16 %v2669
    %v2685 = vpack.c.b16 %v2682, %v2681
    %v2686 = vpack.c.b16 %v2684, %v2683
    %vm2689 = vcmask 261120
    %v2691 = vsel %vm2689, %v2665, 0
    %2693 = vmatprep.subr.bf16.mxu0 0
    %2694 = vmatpush1.bf16.msra.mxu0 0
    %2695 = vmatprep.subr.bf16.mxu0 0
    %2696 = vmatpush1.bf16.msra.mxu0 0
    %2697 = vmatprep.subr.bf16.mxu0 0
    %2698 = vmatpush1.bf16.msra.mxu0 0
    %2699 = vmatprep.subr.bf16.mxu0 0
    %2700 = vmatpush1.bf16.msra.mxu0 0
    %2701 = vmatprep.subr.bf16.mxu0 0
    %2702 = vmatpush1.bf16.msra.mxu0 0
    %2703 = vmatprep.subr.bf16.mxu0 0
    %2704 = vmatpush1.bf16.msra.mxu0 0
    %2705 = vmatprep.subr.bf16.mxu0 0
    %2706 = vmatpush1.bf16.msra.mxu0 %v2686
    %2707 = vmatprep.subr.bf16.mxu0 0
    %2708 = vmatpush1.bf16.msra.mxu0 %v2685
    %2709 = vmatprep.subr.bf16.mxu0 0
    %2710 = vmatpush2.bf16.msra.mxu0 0
    %2711 = vmatprep.subr.bf16.mxu0 0
    %2712 = vmatpush2.bf16.msra.mxu0 0
    %2713 = vmatprep.subr.bf16.mxu0 0
    %2714 = vmatpush2.bf16.msra.mxu0 0
    %2715 = vmatprep.subr.bf16.mxu0 0
    %2716 = vmatpush2.bf16.msra.mxu0 0
    %2717 = vmatprep.subr.bf16.mxu0 0
    %2718 = vmatpush2.bf16.msra.mxu0 0
    %2719 = vmatprep.subr.bf16.mxu0 0
    %2720 = vmatpush2.bf16.msra.mxu0 0
    %2721 = vmatprep.subr.bf16.mxu0 0
    %2722 = vmatpush2.bf16.msra.mxu0 0
    %2723 = vmatprep.subr.bf16.mxu0 0
    %2724 = vmatpush2.bf16.msra.mxu0 0
    %2725 = vmatprep.mubr.bf16.mxu0 0
    %2726 = vmatmul.mubr.bf16.gmra.mxu0 %v2691
    %v2727 = vpop.f32.mrf.mxu0
    %v2728 = vadd.f32 %v2675, %v2727
    %v2729 = vpop.f32.mrf.mxu0
    %v2730 = vpop.f32.mrf.mxu0
    %v2731 = vadd.f32 %v2675, %v2730
    %v2732 = vpop.f32.mrf.mxu0
    %2733 = vdwg.mxu0
    %2734 = vst.msk [vmem:[%s11] sm:$0xff] %vm88, %v2728
    %2735 = vst.msk [vmem:[%s11 + $0x8] sm:$0xff] %vm88, %v2731
    // Predicated region
    $region54: #{tpu_custom_call.1} parent=1 // pred_check
      _
    $region55: #{tpu_custom_call.1} parent=1 // pred_check_branch
      %2737 = sbr.rel (0) target = $region57
    $region56: #{tpu_custom_call.1} parent=1 // pred_region
      _
    $region57: #{tpu_custom_call.1} parent=1 // pred_fallthru
      _
    // Predicated region
    $region58: #{tpu_custom_call.1} parent=1 // pred_check
      _
    $region59: #{tpu_custom_call.1} parent=1 // pred_check_branch
      %2739 = sbr.rel (0) target = $region61
    $region60: #{tpu_custom_call.1} parent=1 // pred_region
      _
    $region61: #{tpu_custom_call.1} parent=1 // pred_fallthru
      _
    %2740 = vsyncpa [#allocation3], 1
    %2741 = vsyncpa [#allocation5], 1

</llo_original>
